<compile_context>
chip_gen: v7x
topology: tpu7x:2x2x1
jax: 0.10.0
libtpu: 0.0.40
codegen_flags: <defaults>
</compile_context>

<pallas_src>
import random

import jax
import jax.numpy as jnp
from jax.experimental import pallas as pl
from jax.experimental.pallas import tpu as pltpu

# ----------------------------- model sizes ---------------------------------
VOCAB = 16      # shared source/target vocab
EMB = 16        # embedding dim
ENC_HID = 32    # encoder GRU hidden
DEC_HID = 32    # decoder GRU hidden
MAX_LEN = 8     # sequence length
BATCH = 2       # batch size


def _resident_spec(shape):
    """Whole-array block, constant index map -> stays VMEM-resident across the grid."""
    n = len(shape)
    return pl.BlockSpec(shape, lambda *_, _n=n: (0,) * _n)


# ----------------------------- encoder kernel -------------------------------
def encoder_kernel(emb_ref, xl_ref, wih_ref, whh_ref, bih_ref, bhh_ref,
                   fc_w_ref, fc_b_ref, attn_we_ref,
                   enc_out_ref, eproj_ref, hid_out_ref, h_scr):
    # grid=(S,) sequential ("arbitrary") recurrence over time.
    # emb: (1,B,EMB) block; xl: (B,1) int32 lengths (resident); wih: (EMB,3H);
    # whh: (H,3H); biases: (1,3H); per-step outputs enc_out (1,B,H), eproj (1,B,Hd);
    # final hidden (B,Hd) written on the last step only.
    t = pl.program_id(0)
    H = h_scr.shape[1]

    @pl.when(t == 0)
    def _init():
        h_scr[...] = jnp.zeros_like(h_scr)

    x = emb_ref[0]                                        # (B, EMB)
    m = (xl_ref[...] > t).astype(jnp.float32)             # (B, 1): 1 inside length
    h = h_scr[...]                                        # (B, H)

    # packed-gate GRU: 2 matmuls, gates ordered [r | z | n] (PyTorch convention)
    gi = jnp.dot(x, wih_ref[...], preferred_element_type=jnp.float32) + bih_ref[...]
    gh = jnp.dot(h, whh_ref[...], preferred_element_type=jnp.float32) + bhh_ref[...]
    r = jax.nn.sigmoid(gi[:, :H] + gh[:, :H])
    z = jax.nn.sigmoid(gi[:, H:2 * H] + gh[:, H:2 * H])
    n = jnp.tanh(gi[:, 2 * H:] + r * gh[:, 2 * H:])
    h_new = (1.0 - z) * n + z * h
    # pack_padded_sequence semantics: freeze hidden past each row's length
    h_next = m * h_new + (1.0 - m) * h
    h_scr[...] = h_next

    # pad_packed_sequence semantics: zero outputs on padded steps
    enc_t = h_next * m
    enc_out_ref[0] = enc_t
    # hoisted encoder-side attention projection (independent of decoder hidden)
    eproj_ref[0] = jnp.dot(enc_t, attn_we_ref[...], preferred_element_type=jnp.float32)

    @pl.when(t == pl.num_programs(0) - 1)
    def _finalize():
        hid_out_ref[...] = jnp.tanh(
            jnp.dot(h_next, fc_w_ref[...], preferred_element_type=jnp.float32)
            + fc_b_ref[...])


# ----------------------------- decoder kernel -------------------------------
def decoder_kernel(tf_ref,                                # scalar-prefetch (SMEM)
                   x1h_ref, enc_ref, eproj_ref, hid0_ref, emb_w_ref,
                   attn_wh_ref, attn_b_ref, attn_v_ref,
                   wih_e_ref, wih_c_ref, whh_ref, bih_ref, bhh_ref,
                   fo_wh_ref, fo_wc_ref, fo_we_ref, fo_b_ref,
                   out_ref, h_scr, tok_scr):
    # grid=(S,) sequential decode. Per step: embed current token (one-hot matmul),
    # additive attention over (S,B,He) encoder outputs, packed-gate GRU, fc_out,
    # then pick the next input token (teacher forcing vs greedy argmax).
    t = pl.program_id(0)
    B, H = h_scr.shape
    V = tok_scr.shape[1]

    @pl.when(t == 0)
    def _init():
        h_scr[...] = hid0_ref[...]
        col0 = jax.lax.broadcasted_iota(jnp.int32, (B, V), 1)
        tok_scr[...] = (col0 == 0).astype(jnp.float32)     # start token = x[0]*0 = 0

    hidden = h_scr[...]          # (B, H)
    onehot = tok_scr[...]        # (B, V)

    # embedding lookup as one-hot matmul (MXU, no dynamic gather)
    embedded = jnp.dot(onehot, emb_w_ref[...], preferred_element_type=jnp.float32)  # (B, EMB)

    # --- additive attention (batched, layout (S, B, *), no transposes) ---
    hproj = (jnp.dot(hidden, attn_wh_ref[...], preferred_element_type=jnp.float32)
             + attn_b_ref[...])                                       # (B, Hd)
    energy = jnp.tanh(eproj_ref[...] + hproj[None, :, :])             # (S, B, Hd)
    v = attn_v_ref[...][None, :, :]                                   # (1, 1, Hd)
    scores = jnp.sum(energy * v, axis=-1, keepdims=True)              # (S, B, 1)
    smax = jnp.max(scores, axis=0, keepdims=True)
    e = jnp.exp(scores - smax)
    denom = jnp.sum(e, axis=0, keepdims=True)
    a = e * pl.reciprocal(denom, approx=True)                         # (S, B, 1)
    ctx = jnp.sum(a * enc_ref[...], axis=0)                           # (B, He)

    # --- GRU cell: concat([embedded, ctx]) split into two partial matmuls ---
    gi = (jnp.dot(embedded, wih_e_ref[...], preferred_element_type=jnp.float32)
          + jnp.dot(ctx, wih_c_ref[...], preferred_element_type=jnp.float32)
          + bih_ref[...])
    gh = jnp.dot(hidden, whh_ref[...], preferred_element_type=jnp.float32) + bhh_ref[...]
    r = jax.nn.sigmoid(gi[:, :H] + gh[:, :H])
    z = jax.nn.sigmoid(gi[:, H:2 * H] + gh[:, H:2 * H])
    n = jnp.tanh(gi[:, 2 * H:] + r * gh[:, 2 * H:])
    h_new = (1.0 - z) * n + z * hidden
    h_scr[...] = h_new

    # --- fc_out on concat([h_new, ctx, embedded]) as three partial matmuls ---
    logits = (jnp.dot(h_new, fo_wh_ref[...], preferred_element_type=jnp.float32)
              + jnp.dot(ctx, fo_wc_ref[...], preferred_element_type=jnp.float32)
              + jnp.dot(embedded, fo_we_ref[...], preferred_element_type=jnp.float32)
              + fo_b_ref[...])                                        # (B, V)
    out_ref[0] = logits

    # --- next input: teacher forcing (x[t]) vs greedy argmax (first-max tie-break) ---
    col = jax.lax.broadcasted_iota(jnp.int32, (B, V), 1)
    lmax = jnp.max(logits, axis=1, keepdims=True)
    cand = jnp.where(logits == lmax, col, V)
    amin = jnp.min(cand, axis=1, keepdims=True)
    greedy_1h = (col == amin).astype(jnp.float32)                     # (B, V)
    tf = tf_ref[t].astype(jnp.float32)                                # SMEM scalar
    tok_scr[...] = tf * x1h_ref[0] + (1.0 - tf) * greedy_1h


# ----------------------------- pallas wrappers -------------------------------
def encoder_forward(params, emb, x_l2d):
    S, B, E = emb.shape
    grid_spec = pltpu.PrefetchScalarGridSpec(
        num_scalar_prefetch=0,
        grid=(S,),
        in_specs=[
            pl.BlockSpec((1, B, E), lambda t: (t, 0, 0)),       # embedded tokens
            _resident_spec((B, 1)),                             # lengths (int32)
            _resident_spec((E, 3 * ENC_HID)),                   # wih (resident)
            _resident_spec((ENC_HID, 3 * ENC_HID)),             # whh
            _resident_spec((1, 3 * ENC_HID)),                   # bih
            _resident_spec((1, 3 * ENC_HID)),                   # bhh
            _resident_spec((ENC_HID, DEC_HID)),                 # enc fc w
            _resident_spec((1, DEC_HID)),                       # enc fc b
            _resident_spec((ENC_HID, DEC_HID)),                 # attn_we (hoisted proj)
        ],
        out_specs=[
            pl.BlockSpec((1, B, ENC_HID), lambda t: (t, 0, 0)),  # encoder outputs
            pl.BlockSpec((1, B, DEC_HID), lambda t: (t, 0, 0)),  # enc @ attn_we
            _resident_spec((B, DEC_HID)),                        # final hidden
        ],
        scratch_shapes=[pltpu.VMEM((B, ENC_HID), jnp.float32)],
    )
    return pl.pallas_call(
        encoder_kernel,
        grid_spec=grid_spec,
        out_shape=[
            jax.ShapeDtypeStruct((S, B, ENC_HID), jnp.float32),
            jax.ShapeDtypeStruct((S, B, DEC_HID), jnp.float32),
            jax.ShapeDtypeStruct((B, DEC_HID), jnp.float32),
        ],
        compiler_params=pltpu.CompilerParams(dimension_semantics=("arbitrary",)),
    )(emb, x_l2d,
      params["enc_wih"], params["enc_whh"], params["enc_bih"], params["enc_bhh"],
      params["enc_fc_w"], params["enc_fc_b"], params["attn_we"])


def decoder_forward(params, tf_flags, x1h, enc_outs, eproj, hidden0):
    S, B, V = x1h.shape
    He = enc_outs.shape[2]
    Hd = hidden0.shape[1]
    E = params["dec_emb"].shape[1]
    grid_spec = pltpu.PrefetchScalarGridSpec(
        num_scalar_prefetch=1,                               # tf_flags -> SMEM
        grid=(S,),
        in_specs=[
            pl.BlockSpec((1, B, V), lambda t, *_: (t, 0, 0)),    # teacher-forced one-hot
            _resident_spec((S, B, He)),                          # encoder outputs
            _resident_spec((S, B, Hd)),                          # hoisted enc@attn_we
            _resident_spec((B, Hd)),                             # initial hidden
            _resident_spec((V, E)),                              # decoder embedding
            _resident_spec((Hd, Hd)),                            # attn_wh
            _resident_spec((1, Hd)),                             # attn_b
            _resident_spec((1, Hd)),                             # attn_v (row vector)
            _resident_spec((E, 3 * Hd)),                         # dec wih (emb part)
            _resident_spec((He, 3 * Hd)),                        # dec wih (ctx part)
            _resident_spec((Hd, 3 * Hd)),                        # dec whh
            _resident_spec((1, 3 * Hd)),                         # dec bih
            _resident_spec((1, 3 * Hd)),                         # dec bhh
            _resident_spec((Hd, V)),                             # fc_out (hidden part)
            _resident_spec((He, V)),                             # fc_out (ctx part)
            _resident_spec((E, V)),                              # fc_out (emb part)
            _resident_spec((1, V)),                              # fc_out bias
        ],
        out_specs=pl.BlockSpec((1, B, V), lambda t, *_: (t, 0, 0)),
        scratch_shapes=[
            pltpu.VMEM((B, Hd), jnp.float32),                    # hidden state
            pltpu.VMEM((B, V), jnp.float32),                     # current input one-hot
        ],
    )
    return pl.pallas_call(
        decoder_kernel,
        grid_spec=grid_spec,
        out_shape=jax.ShapeDtypeStruct((S, B, V), jnp.float32),
        compiler_params=pltpu.CompilerParams(dimension_semantics=("arbitrary",)),
    )(tf_flags, x1h, enc_outs, eproj, hidden0,
      params["dec_emb"], params["attn_wh"], params["attn_b"], params["attn_v"],
      params["dec_wih_e"], params["dec_wih_c"], params["dec_whh"],
      params["dec_bih"], params["dec_bhh"],
      params["fc_out_wh"], params["fc_out_wc"], params["fc_out_we"], params["fc_out_b"])


# ----------------------------- parameters -----------------------------------
def init_params(key):
    ks = jax.random.split(key, 16)
    s = 0.1

    def w(k, shape):
        return jax.random.normal(k, shape, jnp.float32) * s

    p = {}
    # encoder (GRU gates packed [r|z|n] along the last dim)
    p["enc_emb"] = w(ks[0], (VOCAB, EMB))
    p["enc_wih"] = w(ks[1], (EMB, 3 * ENC_HID))
    p["enc_whh"] = w(ks[2], (ENC_HID, 3 * ENC_HID))
    p["enc_bih"] = jnp.zeros((1, 3 * ENC_HID), jnp.float32)
    p["enc_bhh"] = jnp.zeros((1, 3 * ENC_HID), jnp.float32)
    p["enc_fc_w"] = w(ks[3], (ENC_HID, DEC_HID))
    p["enc_fc_b"] = jnp.zeros((1, DEC_HID), jnp.float32)
    # attention
    p["attn_wh"] = w(ks[4], (DEC_HID, DEC_HID))
    p["attn_we"] = w(ks[5], (ENC_HID, DEC_HID))
    p["attn_b"] = jnp.zeros((1, DEC_HID), jnp.float32)
    p["attn_v"] = w(ks[6], (1, DEC_HID))                     # v stored transposed
    # decoder (input weights split to avoid concat; gates packed)
    p["dec_emb"] = w(ks[7], (VOCAB, EMB))
    p["dec_wih_e"] = w(ks[8], (EMB, 3 * DEC_HID))
    p["dec_wih_c"] = w(ks[9], (ENC_HID, 3 * DEC_HID))
    p["dec_whh"] = w(ks[10], (DEC_HID, 3 * DEC_HID))
    p["dec_bih"] = jnp.zeros((1, 3 * DEC_HID), jnp.float32)
    p["dec_bhh"] = jnp.zeros((1, 3 * DEC_HID), jnp.float32)
    p["fc_out_wh"] = w(ks[11], (DEC_HID, VOCAB))
    p["fc_out_wc"] = w(ks[12], (ENC_HID, VOCAB))
    p["fc_out_we"] = w(ks[13], (EMB, VOCAB))
    p["fc_out_b"] = jnp.zeros((1, VOCAB), jnp.float32)
    return p


# ----------------------------- forward pass ----------------------------------
@jax.jit
def _seq2seq_forward_jit(params, x, x_l, tf_flags):
    S, B = x.shape
    emb = jnp.take(params["enc_emb"], x, axis=0)                       # (S, B, EMB)
    x_l2d = x_l.reshape(B, 1).astype(jnp.int32)                        # (B, 1) lengths
    enc_outs, eproj, hidden0 = encoder_forward(params, emb, x_l2d)
    x1h = jax.nn.one_hot(x, VOCAB, dtype=jnp.float32)                  # (S, B, VOCAB)
    return decoder_forward(params, tf_flags, x1h, enc_outs, eproj, hidden0)  # (S, B, V)


def seq2seq_forward(params, x, x_l, teacher_forcing_ratio=0.5):
    # Mirrors Seq2Seq.forward: one host-side random draw per decode step.
    S = x.shape[0]
    tf_flags = jnp.array(
        [1 if random.random() < teacher_forcing_ratio else 0 for _ in range(S)],
        dtype=jnp.int32)
    return _seq2seq_forward_jit(params, x, x_l, tf_flags)


# ----------------------------- main ------------------------------------------
if __name__ == "__main__":
    key = jax.random.PRNGKey(0)
    kp, kx = jax.random.split(key)
    params = init_params(kp)

    x = jax.random.randint(kx, (MAX_LEN, BATCH), 0, VOCAB, dtype=jnp.int32)
    x_l = jnp.array([MAX_LEN, MAX_LEN - 3], dtype=jnp.int32)

    random.seed(0)  # deterministic teacher-forcing decisions
    out = seq2seq_forward(params, x, x_l, teacher_forcing_ratio=0.5)
    out = jax.block_until_ready(out)

    assert out.shape == (MAX_LEN, BATCH, VOCAB)
    assert out.dtype == jnp.float32
    assert bool(jnp.all(jnp.isfinite(out)))
    print("KERNEL_OK")
</pallas_src>

<mosaic_0001>
module attributes {stable_mosaic.version = 11 : i64} {
  func.func @encoder_kernel(%arg0: i32, %arg1: memref<1x2x16xf32, #tpu.memory_space<vmem>>, %arg2: memref<2x1xi32, #tpu.memory_space<vmem>>, %arg3: memref<16x96xf32, #tpu.memory_space<vmem>>, %arg4: memref<32x96xf32, #tpu.memory_space<vmem>>, %arg5: memref<1x96xf32, #tpu.memory_space<vmem>>, %arg6: memref<1x96xf32, #tpu.memory_space<vmem>>, %arg7: memref<32x32xf32, #tpu.memory_space<vmem>>, %arg8: memref<1x32xf32, #tpu.memory_space<vmem>>, %arg9: memref<32x32xf32, #tpu.memory_space<vmem>>, %arg10: memref<1x2x32xf32, #tpu.memory_space<vmem>>, %arg11: memref<1x2x32xf32, #tpu.memory_space<vmem>>, %arg12: memref<2x32xf32, #tpu.memory_space<vmem>>, %arg13: memref<2x32xf32, #tpu.memory_space<vmem>>) attributes {dimension_semantics = [#tpu.dimension_semantics<arbitrary>], iteration_bounds = array<i64: 8>, scalar_prefetch = 0 : i64, scratch_operands = 1 : i64, tpu.core_type = #tpu.core_type<tc>, window_params = [{transform_indices = @transform_0, window_bounds = array<i64: 1, 2, 16>}, {pipeline_mode = #tpu.pipeline_mode<synchronous>, transform_indices = @transform_1, window_bounds = array<i64: 2, 1>}, {pipeline_mode = #tpu.pipeline_mode<synchronous>, transform_indices = @transform_2, window_bounds = array<i64: 16, 96>}, {pipeline_mode = #tpu.pipeline_mode<synchronous>, transform_indices = @transform_3, window_bounds = array<i64: 32, 96>}, {pipeline_mode = #tpu.pipeline_mode<synchronous>, transform_indices = @transform_4, window_bounds = array<i64: 1, 96>}, {pipeline_mode = #tpu.pipeline_mode<synchronous>, transform_indices = @transform_5, window_bounds = array<i64: 1, 96>}, {pipeline_mode = #tpu.pipeline_mode<synchronous>, transform_indices = @transform_6, window_bounds = array<i64: 32, 32>}, {pipeline_mode = #tpu.pipeline_mode<synchronous>, transform_indices = @transform_7, window_bounds = array<i64: 1, 32>}, {pipeline_mode = #tpu.pipeline_mode<synchronous>, transform_indices = @transform_8, window_bounds = array<i64: 32, 32>}, {transform_indices = @transform_9, window_bounds = array<i64: 1, 2, 32>}, {transform_indices = @transform_10, window_bounds = array<i64: 1, 2, 32>}, {pipeline_mode = #tpu.pipeline_mode<synchronous>, transform_indices = @transform_11, window_bounds = array<i64: 2, 32>}]} {
    %c0_i32 = arith.constant 0 : i32
    %0 = arith.cmpi eq, %arg0, %c0_i32 : i32
    %1 = arith.extui %0 : i1 to i32
    %c0_i32_0 = arith.constant 0 : i32
    %2 = arith.cmpi ne, %1, %c0_i32_0 : i32
    scf.if %2 {
      %cst_32 = arith.constant 0.000000e+00 : f32
      %68 = vector.broadcast %cst_32 : f32 to vector<2x32xf32>
      %c0_33 = arith.constant 0 : index
      %c0_34 = arith.constant 0 : index
      %69 = vector.load %arg13[%c0_33, %c0_34] : memref<2x32xf32, #tpu.memory_space<vmem>>, vector<2x32xf32>
      tpu.vector_store %arg13[%c0_33, %c0_34], %68 {strides = array<i32>} : memref<2x32xf32, #tpu.memory_space<vmem>>, vector<2x32xf32>,
    } else {
    }
    %c0 = arith.constant 0 : index
    %c0_1 = arith.constant 0 : index
    %c0_2 = arith.constant 0 : index
    %3 = vector.load %arg1[%c0, %c0_1, %c0_2] : memref<1x2x16xf32, #tpu.memory_space<vmem>>, vector<1x2x16xf32>
    %4 = vector.shape_cast %3 : vector<1x2x16xf32> to vector<2x16xf32>
    %c0_3 = arith.constant 0 : index
    %c0_4 = arith.constant 0 : index
    %5 = vector.load %arg2[%c0_3, %c0_4] : memref<2x1xi32, #tpu.memory_space<vmem>>, vector<2x1xi32>
    %6 = vector.broadcast %arg0 : i32 to vector<2x1xi32>
    %7 = arith.cmpi sgt, %5, %6 : vector<2x1xi32>
    %8 = arith.extui %7 : vector<2x1xi1> to vector<2x1xi32>
    %9 = arith.sitofp %8 : vector<2x1xi32> to vector<2x1xf32>
    %c0_5 = arith.constant 0 : index
    %c0_6 = arith.constant 0 : index
    %10 = vector.load %arg13[%c0_5, %c0_6] : memref<2x32xf32, #tpu.memory_space<vmem>>, vector<2x32xf32>
    %c0_7 = arith.constant 0 : index
    %c0_8 = arith.constant 0 : index
    %11 = vector.load %arg3[%c0_7, %c0_8] : memref<16x96xf32, #tpu.memory_space<vmem>>, vector<16x96xf32>
    %cst = arith.constant dense<0.000000e+00> : vector<2x96xf32>
    %12 = tpu.matmul %4, %11, %cst {dimension_numbers = #tpu.dot_dimension_numbers<[1], [0], [0], [1], [0, 0, 1, 1], [], []>} : vector<2x16xf32>, vector<16x96xf32>, vector<2x96xf32> -> vector<2x96xf32>
    %c0_9 = arith.constant 0 : index
    %c0_10 = arith.constant 0 : index
    %13 = vector.load %arg5[%c0_9, %c0_10] : memref<1x96xf32, #tpu.memory_space<vmem>>, vector<1x96xf32>
    %14 = vector.broadcast %13 : vector<1x96xf32> to vector<2x96xf32>
    %15 = arith.addf %12, %14 : vector<2x96xf32>
    %c0_11 = arith.constant 0 : index
    %c0_12 = arith.constant 0 : index
    %16 = vector.load %arg4[%c0_11, %c0_12] : memref<32x96xf32, #tpu.memory_space<vmem>>, vector<32x96xf32>
    %cst_13 = arith.constant dense<0.000000e+00> : vector<2x96xf32>
    %17 = tpu.matmul %10, %16, %cst_13 {dimension_numbers = #tpu.dot_dimension_numbers<[1], [0], [0], [1], [0, 0, 1, 1], [], []>} : vector<2x32xf32>, vector<32x96xf32>, vector<2x96xf32> -> vector<2x96xf32>
    %c0_14 = arith.constant 0 : index
    %c0_15 = arith.constant 0 : index
    %18 = vector.load %arg6[%c0_14, %c0_15] : memref<1x96xf32, #tpu.memory_space<vmem>>, vector<1x96xf32>
    %19 = vector.broadcast %18 : vector<1x96xf32> to vector<2x96xf32>
    %20 = arith.addf %17, %19 : vector<2x96xf32>
    %21 = vector.extract_strided_slice %15 {offsets = [0, 0], sizes = [2, 32], strides = [1, 1]} : vector<2x96xf32> to vector<2x32xf32>
    %22 = vector.extract_strided_slice %20 {offsets = [0, 0], sizes = [2, 32], strides = [1, 1]} : vector<2x96xf32> to vector<2x32xf32>
    %23 = arith.addf %21, %22 : vector<2x32xf32>
    %24 = arith.negf %23 : vector<2x32xf32>
    %25 = math.exp %24 : vector<2x32xf32>
    %cst_16 = arith.constant 1.000000e+00 : f32
    %26 = vector.broadcast %cst_16 : f32 to vector<2x32xf32>
    %27 = arith.addf %26, %25 : vector<2x32xf32>
    %28 = arith.divf %26, %27 : vector<2x32xf32>
    %29 = vector.extract_strided_slice %15 {offsets = [0, 32], sizes = [2, 32], strides = [1, 1]} : vector<2x96xf32> to vector<2x32xf32>
    %30 = vector.extract_strided_slice %20 {offsets = [0, 32], sizes = [2, 32], strides = [1, 1]} : vector<2x96xf32> to vector<2x32xf32>
    %31 = arith.addf %29, %30 : vector<2x32xf32>
    %32 = arith.negf %31 : vector<2x32xf32>
    %33 = math.exp %32 : vector<2x32xf32>
    %cst_17 = arith.constant 1.000000e+00 : f32
    %34 = vector.broadcast %cst_17 : f32 to vector<2x32xf32>
    %35 = arith.addf %34, %33 : vector<2x32xf32>
    %36 = arith.divf %34, %35 : vector<2x32xf32>
    %37 = vector.extract_strided_slice %15 {offsets = [0, 64], sizes = [2, 32], strides = [1, 1]} : vector<2x96xf32> to vector<2x32xf32>
    %38 = vector.extract_strided_slice %20 {offsets = [0, 64], sizes = [2, 32], strides = [1, 1]} : vector<2x96xf32> to vector<2x32xf32>
    %39 = arith.mulf %28, %38 : vector<2x32xf32>
    %40 = arith.addf %37, %39 : vector<2x32xf32>
    %41 = math.tanh %40 : vector<2x32xf32>
    %cst_18 = arith.constant 1.000000e+00 : f32
    %42 = vector.broadcast %cst_18 : f32 to vector<2x32xf32>
    %43 = arith.subf %42, %36 : vector<2x32xf32>
    %44 = arith.mulf %43, %41 : vector<2x32xf32>
    %45 = arith.mulf %36, %10 : vector<2x32xf32>
    %46 = arith.addf %44, %45 : vector<2x32xf32>
    %47 = vector.broadcast %9 : vector<2x1xf32> to vector<2x32xf32>
    %48 = arith.mulf %47, %46 : vector<2x32xf32>
    %cst_19 = arith.constant 1.000000e+00 : f32
    %49 = vector.broadcast %cst_19 : f32 to vector<2x1xf32>
    %50 = arith.subf %49, %9 : vector<2x1xf32>
    %51 = vector.broadcast %50 : vector<2x1xf32> to vector<2x32xf32>
    %52 = arith.mulf %51, %10 : vector<2x32xf32>
    %53 = arith.addf %48, %52 : vector<2x32xf32>
    %c0_20 = arith.constant 0 : index
    %c0_21 = arith.constant 0 : index
    %54 = vector.load %arg13[%c0_20, %c0_21] : memref<2x32xf32, #tpu.memory_space<vmem>>, vector<2x32xf32>
    tpu.vector_store %arg13[%c0_20, %c0_21], %53 {strides = array<i32>} : memref<2x32xf32, #tpu.memory_space<vmem>>, vector<2x32xf32>,
    %55 = vector.broadcast %9 : vector<2x1xf32> to vector<2x32xf32>
    %56 = arith.mulf %53, %55 : vector<2x32xf32>
    %c0_22 = arith.constant 0 : index
    %c0_23 = arith.constant 0 : index
    %c0_24 = arith.constant 0 : index
    %57 = vector.load %arg10[%c0_22, %c0_23, %c0_24] : memref<1x2x32xf32, #tpu.memory_space<vmem>>, vector<1x2x32xf32>
    %58 = vector.shape_cast %57 : vector<1x2x32xf32> to vector<2x32xf32>
    %59 = vector.shape_cast %56 : vector<2x32xf32> to vector<1x2x32xf32>
    tpu.vector_store %arg10[%c0_22, %c0_23, %c0_24], %59 {strides = array<i32>} : memref<1x2x32xf32, #tpu.memory_space<vmem>>, vector<1x2x32xf32>,
    %c0_25 = arith.constant 0 : index
    %c0_26 = arith.constant 0 : index
    %60 = vector.load %arg9[%c0_25, %c0_26] : memref<32x32xf32, #tpu.memory_space<vmem>>, vector<32x32xf32>
    %cst_27 = arith.constant dense<0.000000e+00> : vector<2x32xf32>
    %61 = tpu.matmul %56, %60, %cst_27 {dimension_numbers = #tpu.dot_dimension_numbers<[1], [0], [0], [1], [0, 0, 1, 1], [], []>} : vector<2x32xf32>, vector<32x32xf32>, vector<2x32xf32> -> vector<2x32xf32>
    %c0_28 = arith.constant 0 : index
    %c0_29 = arith.constant 0 : index
    %c0_30 = arith.constant 0 : index
    %62 = vector.load %arg11[%c0_28, %c0_29, %c0_30] : memref<1x2x32xf32, #tpu.memory_space<vmem>>, vector<1x2x32xf32>
    %63 = vector.shape_cast %62 : vector<1x2x32xf32> to vector<2x32xf32>
    %64 = vector.shape_cast %61 : vector<2x32xf32> to vector<1x2x32xf32>
    tpu.vector_store %arg11[%c0_28, %c0_29, %c0_30], %64 {strides = array<i32>} : memref<1x2x32xf32, #tpu.memory_space<vmem>>, vector<1x2x32xf32>,
    %c7_i32 = arith.constant 7 : i32
    %65 = arith.cmpi eq, %arg0, %c7_i32 : i32
    %66 = arith.extui %65 : i1 to i32
    %c0_i32_31 = arith.constant 0 : i32
    %67 = arith.cmpi ne, %66, %c0_i32_31 : i32
    scf.if %67 {
      %c0_32 = arith.constant 0 : index
      %c0_33 = arith.constant 0 : index
      %68 = vector.load %arg7[%c0_32, %c0_33] : memref<32x32xf32, #tpu.memory_space<vmem>>, vector<32x32xf32>
      %cst_34 = arith.constant dense<0.000000e+00> : vector<2x32xf32>
      %69 = tpu.matmul %53, %68, %cst_34 {dimension_numbers = #tpu.dot_dimension_numbers<[1], [0], [0], [1], [0, 0, 1, 1], [], []>} : vector<2x32xf32>, vector<32x32xf32>, vector<2x32xf32> -> vector<2x32xf32>
      %c0_35 = arith.constant 0 : index
      %c0_36 = arith.constant 0 : index
      %70 = vector.load %arg8[%c0_35, %c0_36] : memref<1x32xf32, #tpu.memory_space<vmem>>, vector<1x32xf32>
      %71 = vector.broadcast %70 : vector<1x32xf32> to vector<2x32xf32>
      %72 = arith.addf %69, %71 : vector<2x32xf32>
      %73 = math.tanh %72 : vector<2x32xf32>
      %c0_37 = arith.constant 0 : index
      %c0_38 = arith.constant 0 : index
      %74 = vector.load %arg12[%c0_37, %c0_38] : memref<2x32xf32, #tpu.memory_space<vmem>>, vector<2x32xf32>
      tpu.vector_store %arg12[%c0_37, %c0_38], %73 {strides = array<i32>} : memref<2x32xf32, #tpu.memory_space<vmem>>, vector<2x32xf32>,
    } else {
    }
    return
  }
  func.func @transform_0(%arg0: i32) -> (i32, i32, i32) {
    %c0_i32 = arith.constant 0 : i32
    %c0_i32_0 = arith.constant 0 : i32
    %c0_i32_1 = arith.constant 0 : i32
    return %arg0, %c0_i32, %c0_i32_0 : i32, i32, i32
  }
  func.func @transform_1(%arg0: i32) -> (i32, i32) {
    %c0_i32 = arith.constant 0 : i32
    %c0_i32_0 = arith.constant 0 : i32
    %c0_i32_1 = arith.constant 0 : i32
    return %c0_i32, %c0_i32_0 : i32, i32
  }
  func.func @transform_2(%arg0: i32) -> (i32, i32) {
    %c0_i32 = arith.constant 0 : i32
    %c0_i32_0 = arith.constant 0 : i32
    %c0_i32_1 = arith.constant 0 : i32
    return %c0_i32, %c0_i32_0 : i32, i32
  }
  func.func @transform_3(%arg0: i32) -> (i32, i32) {
    %c0_i32 = arith.constant 0 : i32
    %c0_i32_0 = arith.constant 0 : i32
    %c0_i32_1 = arith.constant 0 : i32
    return %c0_i32, %c0_i32_0 : i32, i32
  }
  func.func @transform_4(%arg0: i32) -> (i32, i32) {
    %c0_i32 = arith.constant 0 : i32
    %c0_i32_0 = arith.constant 0 : i32
    %c0_i32_1 = arith.constant 0 : i32
    return %c0_i32, %c0_i32_0 : i32, i32
  }
  func.func @transform_5(%arg0: i32) -> (i32, i32) {
    %c0_i32 = arith.constant 0 : i32
    %c0_i32_0 = arith.constant 0 : i32
    %c0_i32_1 = arith.constant 0 : i32
    return %c0_i32, %c0_i32_0 : i32, i32
  }
  func.func @transform_6(%arg0: i32) -> (i32, i32) {
    %c0_i32 = arith.constant 0 : i32
    %c0_i32_0 = arith.constant 0 : i32
    %c0_i32_1 = arith.constant 0 : i32
    return %c0_i32, %c0_i32_0 : i32, i32
  }
  func.func @transform_7(%arg0: i32) -> (i32, i32) {
    %c0_i32 = arith.constant 0 : i32
    %c0_i32_0 = arith.constant 0 : i32
    %c0_i32_1 = arith.constant 0 : i32
    return %c0_i32, %c0_i32_0 : i32, i32
  }
  func.func @transform_8(%arg0: i32) -> (i32, i32) {
    %c0_i32 = arith.constant 0 : i32
    %c0_i32_0 = arith.constant 0 : i32
    %c0_i32_1 = arith.constant 0 : i32
    return %c0_i32, %c0_i32_0 : i32, i32
  }
  func.func @transform_9(%arg0: i32) -> (i32, i32, i32) {
    %c0_i32 = arith.constant 0 : i32
    %c0_i32_0 = arith.constant 0 : i32
    %c0_i32_1 = arith.constant 0 : i32
    return %arg0, %c0_i32, %c0_i32_0 : i32, i32, i32
  }
  func.func @transform_10(%arg0: i32) -> (i32, i32, i32) {
    %c0_i32 = arith.constant 0 : i32
    %c0_i32_0 = arith.constant 0 : i32
    %c0_i32_1 = arith.constant 0 : i32
    return %arg0, %c0_i32, %c0_i32_0 : i32, i32, i32
  }
  func.func @transform_11(%arg0: i32) -> (i32, i32) {
    %c0_i32 = arith.constant 0 : i32
    %c0_i32_0 = arith.constant 0 : i32
    %c0_i32_1 = arith.constant 0 : i32
    return %c0_i32, %c0_i32_0 : i32, i32
  }
}

module attributes {stable_mosaic.version = 11 : i64} {
  func.func @decoder_kernel(%arg0: i32, %arg1: memref<8xi32, #tpu.memory_space<smem>>, %arg2: memref<1x2x16xf32, #tpu.memory_space<vmem>>, %arg3: memref<8x2x32xf32, #tpu.memory_space<vmem>>, %arg4: memref<8x2x32xf32, #tpu.memory_space<vmem>>, %arg5: memref<2x32xf32, #tpu.memory_space<vmem>>, %arg6: memref<16x16xf32, #tpu.memory_space<vmem>>, %arg7: memref<32x32xf32, #tpu.memory_space<vmem>>, %arg8: memref<1x32xf32, #tpu.memory_space<vmem>>, %arg9: memref<1x32xf32, #tpu.memory_space<vmem>>, %arg10: memref<16x96xf32, #tpu.memory_space<vmem>>, %arg11: memref<32x96xf32, #tpu.memory_space<vmem>>, %arg12: memref<32x96xf32, #tpu.memory_space<vmem>>, %arg13: memref<1x96xf32, #tpu.memory_space<vmem>>, %arg14: memref<1x96xf32, #tpu.memory_space<vmem>>, %arg15: memref<32x16xf32, #tpu.memory_space<vmem>>, %arg16: memref<32x16xf32, #tpu.memory_space<vmem>>, %arg17: memref<16x16xf32, #tpu.memory_space<vmem>>, %arg18: memref<1x16xf32, #tpu.memory_space<vmem>>, %arg19: memref<1x2x16xf32, #tpu.memory_space<vmem>>, %arg20: memref<2x32xf32, #tpu.memory_space<vmem>>, %arg21: memref<2x16xf32, #tpu.memory_space<vmem>>) attributes {dimension_semantics = [#tpu.dimension_semantics<arbitrary>], iteration_bounds = array<i64: 8>, scalar_prefetch = 1 : i64, scratch_operands = 2 : i64, tpu.core_type = #tpu.core_type<tc>, window_params = [{transform_indices = @transform_0, window_bounds = array<i64: 1, 2, 16>}, {pipeline_mode = #tpu.pipeline_mode<synchronous>, transform_indices = @transform_1, window_bounds = array<i64: 8, 2, 32>}, {pipeline_mode = #tpu.pipeline_mode<synchronous>, transform_indices = @transform_2, window_bounds = array<i64: 8, 2, 32>}, {pipeline_mode = #tpu.pipeline_mode<synchronous>, transform_indices = @transform_3, window_bounds = array<i64: 2, 32>}, {pipeline_mode = #tpu.pipeline_mode<synchronous>, transform_indices = @transform_4, window_bounds = array<i64: 16, 16>}, {pipeline_mode = #tpu.pipeline_mode<synchronous>, transform_indices = @transform_5, window_bounds = array<i64: 32, 32>}, {pipeline_mode = #tpu.pipeline_mode<synchronous>, transform_indices = @transform_6, window_bounds = array<i64: 1, 32>}, {pipeline_mode = #tpu.pipeline_mode<synchronous>, transform_indices = @transform_7, window_bounds = array<i64: 1, 32>}, {pipeline_mode = #tpu.pipeline_mode<synchronous>, transform_indices = @transform_8, window_bounds = array<i64: 16, 96>}, {pipeline_mode = #tpu.pipeline_mode<synchronous>, transform_indices = @transform_9, window_bounds = array<i64: 32, 96>}, {pipeline_mode = #tpu.pipeline_mode<synchronous>, transform_indices = @transform_10, window_bounds = array<i64: 32, 96>}, {pipeline_mode = #tpu.pipeline_mode<synchronous>, transform_indices = @transform_11, window_bounds = array<i64: 1, 96>}, {pipeline_mode = #tpu.pipeline_mode<synchronous>, transform_indices = @transform_12, window_bounds = array<i64: 1, 96>}, {pipeline_mode = #tpu.pipeline_mode<synchronous>, transform_indices = @transform_13, window_bounds = array<i64: 32, 16>}, {pipeline_mode = #tpu.pipeline_mode<synchronous>, transform_indices = @transform_14, window_bounds = array<i64: 32, 16>}, {pipeline_mode = #tpu.pipeline_mode<synchronous>, transform_indices = @transform_15, window_bounds = array<i64: 16, 16>}, {pipeline_mode = #tpu.pipeline_mode<synchronous>, transform_indices = @transform_16, window_bounds = array<i64: 1, 16>}, {transform_indices = @transform_17, window_bounds = array<i64: 1, 2, 16>}]} {
    %c0_i32 = arith.constant 0 : i32
    %0 = arith.cmpi eq, %arg0, %c0_i32 : i32
    %1 = arith.extui %0 : i1 to i32
    %c0_i32_0 = arith.constant 0 : i32
    %2 = arith.cmpi ne, %1, %c0_i32_0 : i32
    scf.if %2 {
      %c0_63 = arith.constant 0 : index
      %c0_64 = arith.constant 0 : index
      %116 = vector.load %arg5[%c0_63, %c0_64] : memref<2x32xf32, #tpu.memory_space<vmem>>, vector<2x32xf32>
      %c0_65 = arith.constant 0 : index
      %c0_66 = arith.constant 0 : index
      %117 = vector.load %arg20[%c0_65, %c0_66] : memref<2x32xf32, #tpu.memory_space<vmem>>, vector<2x32xf32>
      tpu.vector_store %arg20[%c0_65, %c0_66], %116 {strides = array<i32>} : memref<2x32xf32, #tpu.memory_space<vmem>>, vector<2x32xf32>,
      %118 = tpu.iota {dimensions = array<i32: 1>} : vector<2x16xi32>
      %c0_i32_67 = arith.constant 0 : i32
      %119 = vector.broadcast %c0_i32_67 : i32 to vector<2x16xi32>
      %120 = arith.cmpi eq, %118, %119 : vector<2x16xi32>
      %121 = arith.extui %120 : vector<2x16xi1> to vector<2x16xi32>
      %122 = arith.sitofp %121 : vector<2x16xi32> to vector<2x16xf32>
      %c0_68 = arith.constant 0 : index
      %c0_69 = arith.constant 0 : index
      %123 = vector.load %arg21[%c0_68, %c0_69] : memref<2x16xf32, #tpu.memory_space<vmem>>, vector<2x16xf32>
      tpu.vector_store %arg21[%c0_68, %c0_69], %122 {strides = array<i32>} : memref<2x16xf32, #tpu.memory_space<vmem>>, vector<2x16xf32>,
    } else {
    }
    %c0 = arith.constant 0 : index
    %c0_1 = arith.constant 0 : index
    %3 = vector.load %arg20[%c0, %c0_1] : memref<2x32xf32, #tpu.memory_space<vmem>>, vector<2x32xf32>
    %c0_2 = arith.constant 0 : index
    %c0_3 = arith.constant 0 : index
    %4 = vector.load %arg21[%c0_2, %c0_3] : memref<2x16xf32, #tpu.memory_space<vmem>>, vector<2x16xf32>
    %c0_4 = arith.constant 0 : index
    %c0_5 = arith.constant 0 : index
    %5 = vector.load %arg6[%c0_4, %c0_5] : memref<16x16xf32, #tpu.memory_space<vmem>>, vector<16x16xf32>
    %cst = arith.constant dense<0.000000e+00> : vector<2x16xf32>
    %6 = tpu.matmul %4, %5, %cst {dimension_numbers = #tpu.dot_dimension_numbers<[1], [0], [0], [1], [0, 0, 1, 1], [], []>} : vector<2x16xf32>, vector<16x16xf32>, vector<2x16xf32> -> vector<2x16xf32>
    %c0_6 = arith.constant 0 : index
    %c0_7 = arith.constant 0 : index
    %7 = vector.load %arg7[%c0_6, %c0_7] : memref<32x32xf32, #tpu.memory_space<vmem>>, vector<32x32xf32>
    %cst_8 = arith.constant dense<0.000000e+00> : vector<2x32xf32>
    %8 = tpu.matmul %3, %7, %cst_8 {dimension_numbers = #tpu.dot_dimension_numbers<[1], [0], [0], [1], [0, 0, 1, 1], [], []>} : vector<2x32xf32>, vector<32x32xf32>, vector<2x32xf32> -> vector<2x32xf32>
    %c0_9 = arith.constant 0 : index
    %c0_10 = arith.constant 0 : index
    %9 = vector.load %arg8[%c0_9, %c0_10] : memref<1x32xf32, #tpu.memory_space<vmem>>, vector<1x32xf32>
    %10 = vector.broadcast %9 : vector<1x32xf32> to vector<2x32xf32>
    %11 = arith.addf %8, %10 : vector<2x32xf32>
    %c0_11 = arith.constant 0 : index
    %c0_12 = arith.constant 0 : index
    %c0_13 = arith.constant 0 : index
    %12 = vector.load %arg4[%c0_11, %c0_12, %c0_13] : memref<8x2x32xf32, #tpu.memory_space<vmem>>, vector<8x2x32xf32>
    %13 = vector.shape_cast %11 : vector<2x32xf32> to vector<1x2x32xf32>
    %14 = vector.broadcast %13 : vector<1x2x32xf32> to vector<8x2x32xf32>
    %15 = arith.addf %12, %14 : vector<8x2x32xf32>
    %16 = math.tanh %15 : vector<8x2x32xf32>
    %c0_14 = arith.constant 0 : index
    %c0_15 = arith.constant 0 : index
    %17 = vector.load %arg9[%c0_14, %c0_15] : memref<1x32xf32, #tpu.memory_space<vmem>>, vector<1x32xf32>
    %18 = vector.shape_cast %17 : vector<1x32xf32> to vector<1x1x32xf32>
    %19 = vector.broadcast %18 : vector<1x1x32xf32> to vector<8x2x32xf32>
    %20 = arith.mulf %16, %19 : vector<8x2x32xf32>
    %cst_16 = arith.constant dense<0.000000e+00> : vector<8x2xf32>
    %21 = vector.multi_reduction <add>, %20, %cst_16 [2] : vector<8x2x32xf32> to vector<8x2xf32>
    %22 = vector.shape_cast %21 : vector<8x2xf32> to vector<8x2x1xf32>
    %cst_17 = arith.constant dense<0xFF800000> : vector<2x1xf32>
    %23 = vector.multi_reduction <maximumf>, %22, %cst_17 [0] : vector<8x2x1xf32> to vector<2x1xf32>
    %24 = vector.shape_cast %23 : vector<2x1xf32> to vector<1x2x1xf32>
    %25 = vector.broadcast %24 : vector<1x2x1xf32> to vector<8x2x1xf32>
    %26 = arith.subf %22, %25 : vector<8x2x1xf32>
    %27 = math.exp %26 : vector<8x2x1xf32>
    %cst_18 = arith.constant dense<0.000000e+00> : vector<2x1xf32>
    %28 = vector.multi_reduction <add>, %27, %cst_18 [0] : vector<8x2x1xf32> to vector<2x1xf32>
    %29 = vector.shape_cast %28 : vector<2x1xf32> to vector<1x2x1xf32>
    %30 = tpu.reciprocal %29 {approx = true} : vector<1x2x1xf32> -> vector<1x2x1xf32>
    %31 = vector.broadcast %30 : vector<1x2x1xf32> to vector<8x2x1xf32>
    %32 = arith.mulf %27, %31 : vector<8x2x1xf32>
    %c0_19 = arith.constant 0 : index
    %c0_20 = arith.constant 0 : index
    %c0_21 = arith.constant 0 : index
    %33 = vector.load %arg3[%c0_19, %c0_20, %c0_21] : memref<8x2x32xf32, #tpu.memory_space<vmem>>, vector<8x2x32xf32>
    %34 = vector.broadcast %32 : vector<8x2x1xf32> to vector<8x2x32xf32>
    %35 = arith.mulf %34, %33 : vector<8x2x32xf32>
    %cst_22 = arith.constant dense<0.000000e+00> : vector<2x32xf32>
    %36 = vector.multi_reduction <add>, %35, %cst_22 [0] : vector<8x2x32xf32> to vector<2x32xf32>
    %c0_23 = arith.constant 0 : index
    %c0_24 = arith.constant 0 : index
    %37 = vector.load %arg10[%c0_23, %c0_24] : memref<16x96xf32, #tpu.memory_space<vmem>>, vector<16x96xf32>
    %cst_25 = arith.constant dense<0.000000e+00> : vector<2x96xf32>
    %38 = tpu.matmul %6, %37, %cst_25 {dimension_numbers = #tpu.dot_dimension_numbers<[1], [0], [0], [1], [0, 0, 1, 1], [], []>} : vector<2x16xf32>, vector<16x96xf32>, vector<2x96xf32> -> vector<2x96xf32>
    %c0_26 = arith.constant 0 : index
    %c0_27 = arith.constant 0 : index
    %39 = vector.load %arg11[%c0_26, %c0_27] : memref<32x96xf32, #tpu.memory_space<vmem>>, vector<32x96xf32>
    %cst_28 = arith.constant dense<0.000000e+00> : vector<2x96xf32>
    %40 = tpu.matmul %36, %39, %cst_28 {dimension_numbers = #tpu.dot_dimension_numbers<[1], [0], [0], [1], [0, 0, 1, 1], [], []>} : vector<2x32xf32>, vector<32x96xf32>, vector<2x96xf32> -> vector<2x96xf32>
    %41 = arith.addf %38, %40 : vector<2x96xf32>
    %c0_29 = arith.constant 0 : index
    %c0_30 = arith.constant 0 : index
    %42 = vector.load %arg13[%c0_29, %c0_30] : memref<1x96xf32, #tpu.memory_space<vmem>>, vector<1x96xf32>
    %43 = vector.broadcast %42 : vector<1x96xf32> to vector<2x96xf32>
    %44 = arith.addf %41, %43 : vector<2x96xf32>
    %c0_31 = arith.constant 0 : index
    %c0_32 = arith.constant 0 : index
    %45 = vector.load %arg12[%c0_31, %c0_32] : memref<32x96xf32, #tpu.memory_space<vmem>>, vector<32x96xf32>
    %cst_33 = arith.constant dense<0.000000e+00> : vector<2x96xf32>
    %46 = tpu.matmul %3, %45, %cst_33 {dimension_numbers = #tpu.dot_dimension_numbers<[1], [0], [0], [1], [0, 0, 1, 1], [], []>} : vector<2x32xf32>, vector<32x96xf32>, vector<2x96xf32> -> vector<2x96xf32>
    %c0_34 = arith.constant 0 : index
    %c0_35 = arith.constant 0 : index
    %47 = vector.load %arg14[%c0_34, %c0_35] : memref<1x96xf32, #tpu.memory_space<vmem>>, vector<1x96xf32>
    %48 = vector.broadcast %47 : vector<1x96xf32> to vector<2x96xf32>
    %49 = arith.addf %46, %48 : vector<2x96xf32>
    %50 = vector.extract_strided_slice %44 {offsets = [0, 0], sizes = [2, 32], strides = [1, 1]} : vector<2x96xf32> to vector<2x32xf32>
    %51 = vector.extract_strided_slice %49 {offsets = [0, 0], sizes = [2, 32], strides = [1, 1]} : vector<2x96xf32> to vector<2x32xf32>
    %52 = arith.addf %50, %51 : vector<2x32xf32>
    %53 = arith.negf %52 : vector<2x32xf32>
    %54 = math.exp %53 : vector<2x32xf32>
    %cst_36 = arith.constant 1.000000e+00 : f32
    %55 = vector.broadcast %cst_36 : f32 to vector<2x32xf32>
    %56 = arith.addf %55, %54 : vector<2x32xf32>
    %57 = arith.divf %55, %56 : vector<2x32xf32>
    %58 = vector.extract_strided_slice %44 {offsets = [0, 32], sizes = [2, 32], strides = [1, 1]} : vector<2x96xf32> to vector<2x32xf32>
    %59 = vector.extract_strided_slice %49 {offsets = [0, 32], sizes = [2, 32], strides = [1, 1]} : vector<2x96xf32> to vector<2x32xf32>
    %60 = arith.addf %58, %59 : vector<2x32xf32>
    %61 = arith.negf %60 : vector<2x32xf32>
    %62 = math.exp %61 : vector<2x32xf32>
    %cst_37 = arith.constant 1.000000e+00 : f32
    %63 = vector.broadcast %cst_37 : f32 to vector<2x32xf32>
    %64 = arith.addf %63, %62 : vector<2x32xf32>
    %65 = arith.divf %63, %64 : vector<2x32xf32>
    %66 = vector.extract_strided_slice %44 {offsets = [0, 64], sizes = [2, 32], strides = [1, 1]} : vector<2x96xf32> to vector<2x32xf32>
    %67 = vector.extract_strided_slice %49 {offsets = [0, 64], sizes = [2, 32], strides = [1, 1]} : vector<2x96xf32> to vector<2x32xf32>
    %68 = arith.mulf %57, %67 : vector<2x32xf32>
    %69 = arith.addf %66, %68 : vector<2x32xf32>
    %70 = math.tanh %69 : vector<2x32xf32>
    %cst_38 = arith.constant 1.000000e+00 : f32
    %71 = vector.broadcast %cst_38 : f32 to vector<2x32xf32>
    %72 = arith.subf %71, %65 : vector<2x32xf32>
    %73 = arith.mulf %72, %70 : vector<2x32xf32>
    %74 = arith.mulf %65, %3 : vector<2x32xf32>
    %75 = arith.addf %73, %74 : vector<2x32xf32>
    %c0_39 = arith.constant 0 : index
    %c0_40 = arith.constant 0 : index
    %76 = vector.load %arg20[%c0_39, %c0_40] : memref<2x32xf32, #tpu.memory_space<vmem>>, vector<2x32xf32>
    tpu.vector_store %arg20[%c0_39, %c0_40], %75 {strides = array<i32>} : memref<2x32xf32, #tpu.memory_space<vmem>>, vector<2x32xf32>,
    %c0_41 = arith.constant 0 : index
    %c0_42 = arith.constant 0 : index
    %77 = vector.load %arg15[%c0_41, %c0_42] : memref<32x16xf32, #tpu.memory_space<vmem>>, vector<32x16xf32>
    %cst_43 = arith.constant dense<0.000000e+00> : vector<2x16xf32>
    %78 = tpu.matmul %75, %77, %cst_43 {dimension_numbers = #tpu.dot_dimension_numbers<[1], [0], [0], [1], [0, 0, 1, 1], [], []>} : vector<2x32xf32>, vector<32x16xf32>, vector<2x16xf32> -> vector<2x16xf32>
    %c0_44 = arith.constant 0 : index
    %c0_45 = arith.constant 0 : index
    %79 = vector.load %arg16[%c0_44, %c0_45] : memref<32x16xf32, #tpu.memory_space<vmem>>, vector<32x16xf32>
    %cst_46 = arith.constant dense<0.000000e+00> : vector<2x16xf32>
    %80 = tpu.matmul %36, %79, %cst_46 {dimension_numbers = #tpu.dot_dimension_numbers<[1], [0], [0], [1], [0, 0, 1, 1], [], []>} : vector<2x32xf32>, vector<32x16xf32>, vector<2x16xf32> -> vector<2x16xf32>
    %81 = arith.addf %78, %80 : vector<2x16xf32>
    %c0_47 = arith.constant 0 : index
    %c0_48 = arith.constant 0 : index
    %82 = vector.load %arg17[%c0_47, %c0_48] : memref<16x16xf32, #tpu.memory_space<vmem>>, vector<16x16xf32>
    %cst_49 = arith.constant dense<0.000000e+00> : vector<2x16xf32>
    %83 = tpu.matmul %6, %82, %cst_49 {dimension_numbers = #tpu.dot_dimension_numbers<[1], [0], [0], [1], [0, 0, 1, 1], [], []>} : vector<2x16xf32>, vector<16x16xf32>, vector<2x16xf32> -> vector<2x16xf32>
    %84 = arith.addf %81, %83 : vector<2x16xf32>
    %c0_50 = arith.constant 0 : index
    %c0_51 = arith.constant 0 : index
    %85 = vector.load %arg18[%c0_50, %c0_51] : memref<1x16xf32, #tpu.memory_space<vmem>>, vector<1x16xf32>
    %86 = vector.broadcast %85 : vector<1x16xf32> to vector<2x16xf32>
    %87 = arith.addf %84, %86 : vector<2x16xf32>
    %c0_52 = arith.constant 0 : index
    %c0_53 = arith.constant 0 : index
    %c0_54 = arith.constant 0 : index
    %88 = vector.load %arg19[%c0_52, %c0_53, %c0_54] : memref<1x2x16xf32, #tpu.memory_space<vmem>>, vector<1x2x16xf32>
    %89 = vector.shape_cast %88 : vector<1x2x16xf32> to vector<2x16xf32>
    %90 = vector.shape_cast %87 : vector<2x16xf32> to vector<1x2x16xf32>
    tpu.vector_store %arg19[%c0_52, %c0_53, %c0_54], %90 {strides = array<i32>} : memref<1x2x16xf32, #tpu.memory_space<vmem>>, vector<1x2x16xf32>,
    %91 = tpu.iota {dimensions = array<i32: 1>} : vector<2x16xi32>
    %cst_55 = arith.constant dense<0xFF800000> : vector<2xf32>
    %92 = vector.multi_reduction <maximumf>, %87, %cst_55 [1] : vector<2x16xf32> to vector<2xf32>
    %93 = vector.shape_cast %92 : vector<2xf32> to vector<2x1xf32>
    %94 = vector.broadcast %93 : vector<2x1xf32> to vector<2x16xf32>
    %95 = arith.cmpf oeq, %87, %94 : vector<2x16xf32>
    %c16_i32 = arith.constant 16 : i32
    %96 = vector.broadcast %c16_i32 : i32 to vector<2x16xi32>
    %97 = arith.select %95, %91, %96 : vector<2x16xi1>, vector<2x16xi32>
    %cst_56 = arith.constant dense<2147483647> : vector<2xi32>
    %98 = vector.multi_reduction <minsi>, %97, %cst_56 [1] : vector<2x16xi32> to vector<2xi32>
    %99 = vector.shape_cast %98 : vector<2xi32> to vector<2x1xi32>
    %100 = vector.broadcast %99 : vector<2x1xi32> to vector<2x16xi32>
    %101 = arith.cmpi eq, %91, %100 : vector<2x16xi32>
    %102 = arith.extui %101 : vector<2x16xi1> to vector<2x16xi32>
    %103 = arith.sitofp %102 : vector<2x16xi32> to vector<2x16xf32>
    %104 = arith.index_cast %arg0 : i32 to index
    %105 = memref.load %arg1[%104] : memref<8xi32, #tpu.memory_space<smem>>
    %106 = arith.sitofp %105 : i32 to f32
    %c0_57 = arith.constant 0 : index
    %c0_58 = arith.constant 0 : index
    %c0_59 = arith.constant 0 : index
    %107 = vector.load %arg2[%c0_57, %c0_58, %c0_59] : memref<1x2x16xf32, #tpu.memory_space<vmem>>, vector<1x2x16xf32>
    %108 = vector.shape_cast %107 : vector<1x2x16xf32> to vector<2x16xf32>
    %109 = vector.broadcast %106 : f32 to vector<2x16xf32>
    %110 = arith.mulf %109, %108 : vector<2x16xf32>
    %cst_60 = arith.constant 1.000000e+00 : f32
    %111 = arith.subf %cst_60, %106 : f32
    %112 = vector.broadcast %111 : f32 to vector<2x16xf32>
    %113 = arith.mulf %112, %103 : vector<2x16xf32>
    %114 = arith.addf %110, %113 : vector<2x16xf32>
    %c0_61 = arith.constant 0 : index
    %c0_62 = arith.constant 0 : index
    %115 = vector.load %arg21[%c0_61, %c0_62] : memref<2x16xf32, #tpu.memory_space<vmem>>, vector<2x16xf32>
    tpu.vector_store %arg21[%c0_61, %c0_62], %114 {strides = array<i32>} : memref<2x16xf32, #tpu.memory_space<vmem>>, vector<2x16xf32>,
    return
  }
  func.func @transform_0(%arg0: i32, %arg1: memref<8xi32, #tpu.memory_space<smem>>) -> (i32, i32, i32) {
    %c0_i32 = arith.constant 0 : i32
    %c0_i32_0 = arith.constant 0 : i32
    %c0_i32_1 = arith.constant 0 : i32
    return %arg0, %c0_i32, %c0_i32_0 : i32, i32, i32
  }
  func.func @transform_1(%arg0: i32, %arg1: memref<8xi32, #tpu.memory_space<smem>>) -> (i32, i32, i32) {
    %c0_i32 = arith.constant 0 : i32
    %c0_i32_0 = arith.constant 0 : i32
    %c0_i32_1 = arith.constant 0 : i32
    %c0_i32_2 = arith.constant 0 : i32
    return %c0_i32, %c0_i32_0, %c0_i32_1 : i32, i32, i32
  }
  func.func @transform_2(%arg0: i32, %arg1: memref<8xi32, #tpu.memory_space<smem>>) -> (i32, i32, i32) {
    %c0_i32 = arith.constant 0 : i32
    %c0_i32_0 = arith.constant 0 : i32
    %c0_i32_1 = arith.constant 0 : i32
    %c0_i32_2 = arith.constant 0 : i32
    return %c0_i32, %c0_i32_0, %c0_i32_1 : i32, i32, i32
  }
  func.func @transform_3(%arg0: i32, %arg1: memref<8xi32, #tpu.memory_space<smem>>) -> (i32, i32) {
    %c0_i32 = arith.constant 0 : i32
    %c0_i32_0 = arith.constant 0 : i32
    %c0_i32_1 = arith.constant 0 : i32
    return %c0_i32, %c0_i32_0 : i32, i32
  }
  func.func @transform_4(%arg0: i32, %arg1: memref<8xi32, #tpu.memory_space<smem>>) -> (i32, i32) {
    %c0_i32 = arith.constant 0 : i32
    %c0_i32_0 = arith.constant 0 : i32
    %c0_i32_1 = arith.constant 0 : i32
    return %c0_i32, %c0_i32_0 : i32, i32
  }
  func.func @transform_5(%arg0: i32, %arg1: memref<8xi32, #tpu.memory_space<smem>>) -> (i32, i32) {
    %c0_i32 = arith.constant 0 : i32
    %c0_i32_0 = arith.constant 0 : i32
    %c0_i32_1 = arith.constant 0 : i32
    return %c0_i32, %c0_i32_0 : i32, i32
  }
  func.func @transform_6(%arg0: i32, %arg1: memref<8xi32, #tpu.memory_space<smem>>) -> (i32, i32) {
    %c0_i32 = arith.constant 0 : i32
    %c0_i32_0 = arith.constant 0 : i32
    %c0_i32_1 = arith.constant 0 : i32
    return %c0_i32, %c0_i32_0 : i32, i32
  }
  func.func @transform_7(%arg0: i32, %arg1: memref<8xi32, #tpu.memory_space<smem>>) -> (i32, i32) {
    %c0_i32 = arith.constant 0 : i32
    %c0_i32_0 = arith.constant 0 : i32
    %c0_i32_1 = arith.constant 0 : i32
    return %c0_i32, %c0_i32_0 : i32, i32
  }
  func.func @transform_8(%arg0: i32, %arg1: memref<8xi32, #tpu.memory_space<smem>>) -> (i32, i32) {
    %c0_i32 = arith.constant 0 : i32
    %c0_i32_0 = arith.constant 0 : i32
    %c0_i32_1 = arith.constant 0 : i32
    return %c0_i32, %c0_i32_0 : i32, i32
  }
  func.func @transform_9(%arg0: i32, %arg1: memref<8xi32, #tpu.memory_space<smem>>) -> (i32, i32) {
    %c0_i32 = arith.constant 0 : i32
    %c0_i32_0 = arith.constant 0 : i32
    %c0_i32_1 = arith.constant 0 : i32
    return %c0_i32, %c0_i32_0 : i32, i32
  }
  func.func @transform_10(%arg0: i32, %arg1: memref<8xi32, #tpu.memory_space<smem>>) -> (i32, i32) {
    %c0_i32 = arith.constant 0 : i32
    %c0_i32_0 = arith.constant 0 : i32
    %c0_i32_1 = arith.constant 0 : i32
    return %c0_i32, %c0_i32_0 : i32, i32
  }
  func.func @transform_11(%arg0: i32, %arg1: memref<8xi32, #tpu.memory_space<smem>>) -> (i32, i32) {
    %c0_i32 = arith.constant 0 : i32
    %c0_i32_0 = arith.constant 0 : i32
    %c0_i32_1 = arith.constant 0 : i32
    return %c0_i32, %c0_i32_0 : i32, i32
  }
  func.func @transform_12(%arg0: i32, %arg1: memref<8xi32, #tpu.memory_space<smem>>) -> (i32, i32) {
    %c0_i32 = arith.constant 0 : i32
    %c0_i32_0 = arith.constant 0 : i32
    %c0_i32_1 = arith.constant 0 : i32
    return %c0_i32, %c0_i32_0 : i32, i32
  }
  func.func @transform_13(%arg0: i32, %arg1: memref<8xi32, #tpu.memory_space<smem>>) -> (i32, i32) {
    %c0_i32 = arith.constant 0 : i32
    %c0_i32_0 = arith.constant 0 : i32
    %c0_i32_1 = arith.constant 0 : i32
    return %c0_i32, %c0_i32_0 : i32, i32
  }
  func.func @transform_14(%arg0: i32, %arg1: memref<8xi32, #tpu.memory_space<smem>>) -> (i32, i32) {
    %c0_i32 = arith.constant 0 : i32
    %c0_i32_0 = arith.constant 0 : i32
    %c0_i32_1 = arith.constant 0 : i32
    return %c0_i32, %c0_i32_0 : i32, i32
  }
  func.func @transform_15(%arg0: i32, %arg1: memref<8xi32, #tpu.memory_space<smem>>) -> (i32, i32) {
    %c0_i32 = arith.constant 0 : i32
    %c0_i32_0 = arith.constant 0 : i32
    %c0_i32_1 = arith.constant 0 : i32
    return %c0_i32, %c0_i32_0 : i32, i32
  }
  func.func @transform_16(%arg0: i32, %arg1: memref<8xi32, #tpu.memory_space<smem>>) -> (i32, i32) {
    %c0_i32 = arith.constant 0 : i32
    %c0_i32_0 = arith.constant 0 : i32
    %c0_i32_1 = arith.constant 0 : i32
    return %c0_i32, %c0_i32_0 : i32, i32
  }
  func.func @transform_17(%arg0: i32, %arg1: memref<8xi32, #tpu.memory_space<smem>>) -> (i32, i32, i32) {
    %c0_i32 = arith.constant 0 : i32
    %c0_i32_0 = arith.constant 0 : i32
    %c0_i32_1 = arith.constant 0 : i32
    return %arg0, %c0_i32, %c0_i32_0 : i32, i32, i32
  }
}

</mosaic_0001>

<llo_original>
// kernel: _seq2seq_forward_jit.2
$region0: #{_seq2seq_forward_jit.2}
  #allocation0 [shape = 'u32[]', space=smem, size = 0x4, offset = 0x4, fixed_abs, tag = 'smem constant byte address 0x4 - core index']
  #allocation1 [shape = 'u32[144,128]{1,0:T(1,128)}', space=vmem, size = 0x12000, scoped, tag = 'internal scratch']
  #allocation2 [shape = 'f32[2,32]{1,0:T(2,128)}', space=vmem, size = 0x400, scoped, tag = 'scratch operand']
  %s0 = inlined_call_operand.vmem [shape: f32[8,2,16], index: 0, kind: input, shape index: {}]
  %s1 = inlined_call_operand.vmem [shape: s32[2,1], index: 1, kind: input, shape index: {}]
  %s2 = inlined_call_operand.vmem [shape: f32[16,96], index: 2, kind: input, shape index: {}]
  %s3 = inlined_call_operand.vmem [shape: f32[32,96], index: 3, kind: input, shape index: {}]
  %s4 = inlined_call_operand.vmem [shape: f32[1,96], index: 4, kind: input, shape index: {}]
  %s5 = inlined_call_operand.vmem [shape: f32[1,96], index: 5, kind: input, shape index: {}]
  %s6 = inlined_call_operand.vmem [shape: f32[32,32], index: 6, kind: input, shape index: {}]
  %s7 = inlined_call_operand.vmem [shape: f32[1,32], index: 7, kind: input, shape index: {}]
  %s8 = inlined_call_operand.vmem [shape: f32[32,32], index: 8, kind: input, shape index: {}]
  %s9 = inlined_call_operand.vmem [shape: f32[8,2,32], index: 9, kind: output, shape index: {0}]
  %s10 = inlined_call_operand.vmem [shape: f32[8,2,32], index: 10, kind: output, shape index: {1}]
  %s11 = inlined_call_operand.vmem [shape: f32[2,32], index: 11, kind: output, shape index: {2}]
  %12 = xla_tuple %s9, %s10, %s11
  %s13 = sld [smem:[#allocation0]]
  $region93: #{_seq2seq_forward_jit.2} parent=0
    _
  %s15 = ssub.s32 1, %s13
  %s16 = scalar_select 0, %s15, %s13
  loop: start=0, step=1, limit=10
  $region2: #{_seq2seq_forward_jit.2} parent=0 // loop_pre_header
    _
  $region3: #{_seq2seq_forward_jit.2} parent=0 // loop_header
    %s18 = sphi 0, %s22
    %p19 = scmp.ge.s32.totalorder %s18, 10
    %s28 = sphi 0, %s30
    %s31 = sphi 0, %s28
    %s32 = sphi 0, %s31
    %s48 = sphi 0, %s32
    %s52 = sphi 0, %s52
    %s54 = sphi 0, %s52
    %s55 = sphi 0, %s54
    %s69 = sphi 0, %s55
    %s73 = sphi 0, %s73
    %s75 = sphi 0, %s73
    %s76 = sphi 0, %s75
    %s90 = sphi 0, %s76
    %s94 = sphi 0, %s94
    %s96 = sphi 0, %s94
    %s97 = sphi 0, %s96
    %s111 = sphi 0, %s97
    %s115 = sphi 0, %s115
    %s117 = sphi 0, %s115
    %s118 = sphi 0, %s117
    %s132 = sphi 0, %s118
    %s136 = sphi 0, %s136
    %s138 = sphi 0, %s136
    %s139 = sphi 0, %s138
    %s153 = sphi 0, %s139
    %s157 = sphi 0, %s157
    %s159 = sphi 0, %s157
    %s160 = sphi 0, %s159
    %s174 = sphi 0, %s160
    %s178 = sphi 0, %s178
    %s180 = sphi 0, %s178
    %s181 = sphi 0, %s180
    %s195 = sphi 0, %s181
    %s199 = sphi 0, %s199
    %s201 = sphi 0, %s199
    %s202 = sphi 0, %s201
    %s216 = sphi 0, %s202
    %s222 = sphi 0, %s224
    %s225 = sphi 0, %s222
    %s226 = sphi 0, %s225
    %s242 = sphi 0, %s226
    %s248 = sphi 0, %s250
    %s251 = sphi 0, %s248
    %s252 = sphi 0, %s251
    %s268 = sphi 0, %s252
    %s272 = sphi 0, %s272
    %s274 = sphi 0, %s272
    %s275 = sphi 0, %s274
    %s289 = sphi 0, %s275
  $region4: #{_seq2seq_forward_jit.2} parent=0 // loop_header_branch
    %21 = sbr.rel (%p19) target = $region8
  $region5: #{_seq2seq_forward_jit.2} parent=0 // loop_body
    %s23 = ssub.s32 %s18, 1
    %s24 = ssub.s32 %s18, 2
    %s25 = sadd.s32 %s18, 1
    %s26 = ssub.s32 %s18, %s25
    %p27 = scmp.eq.s32.totalorder %s26, 0
    %s29 = sadd.s32 %s28, 1
    %s30 = scalar_select %p27, %s28, %s29
    %p33 = pneg %p27
    %p34 = scmp.eq.s32.totalorder %s18, 7
    %p35 = por %p33, %p34
    %p36 = scmp.ne.s32.totalorder %s28, %s31
    %p37 = scmp.eq.s32.totalorder %s18, 0
    %p38 = por %p36, %p37
    %p39 = scmp.ne.s32.totalorder %s28, %s31
    %p40 = scmp.eq.s32.totalorder %s23, 7
    %p41 = por %p39, %p40
    %p42 = scmp.ne.s32.totalorder %s31, %s32
    %p43 = scmp.eq.s32.totalorder %s23, 0
    %p44 = por %p42, %p43
    %p45 = scmp.ne.s32.totalorder %s31, %s32
    %p46 = scmp.eq.s32.totalorder %s24, 7
    %p47 = por %p45, %p46
    %p49 = scmp.ne.s32.totalorder %s32, %s48
    %p50 = scmp.eq.s32.totalorder %s24, 0
    %p51 = por %p49, %p50
    %s53 = sadd.s32 %s52, 1
    %p56 = scmp.eq.s32.totalorder %s18, 7
    %p57 = scmp.ne.s32.totalorder %s52, %s54
    %p58 = scmp.eq.s32.totalorder %s18, 0
    %p59 = por %p57, %p58
    %p60 = scmp.ne.s32.totalorder %s52, %s54
    %p61 = scmp.eq.s32.totalorder %s23, 7
    %p62 = por %p60, %p61
    %p63 = scmp.ne.s32.totalorder %s54, %s55
    %p64 = scmp.eq.s32.totalorder %s23, 0
    %p65 = por %p63, %p64
    %p66 = scmp.ne.s32.totalorder %s54, %s55
    %p67 = scmp.eq.s32.totalorder %s24, 7
    %p68 = por %p66, %p67
    %p70 = scmp.ne.s32.totalorder %s55, %s69
    %p71 = scmp.eq.s32.totalorder %s24, 0
    %p72 = por %p70, %p71
    %s74 = sadd.s32 %s73, 1
    %p77 = scmp.eq.s32.totalorder %s18, 7
    %p78 = scmp.ne.s32.totalorder %s73, %s75
    %p79 = scmp.eq.s32.totalorder %s18, 0
    %p80 = por %p78, %p79
    %p81 = scmp.ne.s32.totalorder %s73, %s75
    %p82 = scmp.eq.s32.totalorder %s23, 7
    %p83 = por %p81, %p82
    %p84 = scmp.ne.s32.totalorder %s75, %s76
    %p85 = scmp.eq.s32.totalorder %s23, 0
    %p86 = por %p84, %p85
    %p87 = scmp.ne.s32.totalorder %s75, %s76
    %p88 = scmp.eq.s32.totalorder %s24, 7
    %p89 = por %p87, %p88
    %p91 = scmp.ne.s32.totalorder %s76, %s90
    %p92 = scmp.eq.s32.totalorder %s24, 0
    %p93 = por %p91, %p92
    %s95 = sadd.s32 %s94, 1
    %p98 = scmp.eq.s32.totalorder %s18, 7
    %p99 = scmp.ne.s32.totalorder %s94, %s96
    %p100 = scmp.eq.s32.totalorder %s18, 0
    %p101 = por %p99, %p100
    %p102 = scmp.ne.s32.totalorder %s94, %s96
    %p103 = scmp.eq.s32.totalorder %s23, 7
    %p104 = por %p102, %p103
    %p105 = scmp.ne.s32.totalorder %s96, %s97
    %p106 = scmp.eq.s32.totalorder %s23, 0
    %p107 = por %p105, %p106
    %p108 = scmp.ne.s32.totalorder %s96, %s97
    %p109 = scmp.eq.s32.totalorder %s24, 7
    %p110 = por %p108, %p109
    %p112 = scmp.ne.s32.totalorder %s97, %s111
    %p113 = scmp.eq.s32.totalorder %s24, 0
    %p114 = por %p112, %p113
    %s116 = sadd.s32 %s115, 1
    %p119 = scmp.eq.s32.totalorder %s18, 7
    %p120 = scmp.ne.s32.totalorder %s115, %s117
    %p121 = scmp.eq.s32.totalorder %s18, 0
    %p122 = por %p120, %p121
    %p123 = scmp.ne.s32.totalorder %s115, %s117
    %p124 = scmp.eq.s32.totalorder %s23, 7
    %p125 = por %p123, %p124
    %p126 = scmp.ne.s32.totalorder %s117, %s118
    %p127 = scmp.eq.s32.totalorder %s23, 0
    %p128 = por %p126, %p127
    %p129 = scmp.ne.s32.totalorder %s117, %s118
    %p130 = scmp.eq.s32.totalorder %s24, 7
    %p131 = por %p129, %p130
    %p133 = scmp.ne.s32.totalorder %s118, %s132
    %p134 = scmp.eq.s32.totalorder %s24, 0
    %p135 = por %p133, %p134
    %s137 = sadd.s32 %s136, 1
    %p140 = scmp.eq.s32.totalorder %s18, 7
    %p141 = scmp.ne.s32.totalorder %s136, %s138
    %p142 = scmp.eq.s32.totalorder %s18, 0
    %p143 = por %p141, %p142
    %p144 = scmp.ne.s32.totalorder %s136, %s138
    %p145 = scmp.eq.s32.totalorder %s23, 7
    %p146 = por %p144, %p145
    %p147 = scmp.ne.s32.totalorder %s138, %s139
    %p148 = scmp.eq.s32.totalorder %s23, 0
    %p149 = por %p147, %p148
    %p150 = scmp.ne.s32.totalorder %s138, %s139
    %p151 = scmp.eq.s32.totalorder %s24, 7
    %p152 = por %p150, %p151
    %p154 = scmp.ne.s32.totalorder %s139, %s153
    %p155 = scmp.eq.s32.totalorder %s24, 0
    %p156 = por %p154, %p155
    %s158 = sadd.s32 %s157, 1
    %p161 = scmp.eq.s32.totalorder %s18, 7
    %p162 = scmp.ne.s32.totalorder %s157, %s159
    %p163 = scmp.eq.s32.totalorder %s18, 0
    %p164 = por %p162, %p163
    %p165 = scmp.ne.s32.totalorder %s157, %s159
    %p166 = scmp.eq.s32.totalorder %s23, 7
    %p167 = por %p165, %p166
    %p168 = scmp.ne.s32.totalorder %s159, %s160
    %p169 = scmp.eq.s32.totalorder %s23, 0
    %p170 = por %p168, %p169
    %p171 = scmp.ne.s32.totalorder %s159, %s160
    %p172 = scmp.eq.s32.totalorder %s24, 7
    %p173 = por %p171, %p172
    %p175 = scmp.ne.s32.totalorder %s160, %s174
    %p176 = scmp.eq.s32.totalorder %s24, 0
    %p177 = por %p175, %p176
    %s179 = sadd.s32 %s178, 1
    %p182 = scmp.eq.s32.totalorder %s18, 7
    %p183 = scmp.ne.s32.totalorder %s178, %s180
    %p184 = scmp.eq.s32.totalorder %s18, 0
    %p185 = por %p183, %p184
    %p186 = scmp.ne.s32.totalorder %s178, %s180
    %p187 = scmp.eq.s32.totalorder %s23, 7
    %p188 = por %p186, %p187
    %p189 = scmp.ne.s32.totalorder %s180, %s181
    %p190 = scmp.eq.s32.totalorder %s23, 0
    %p191 = por %p189, %p190
    %p192 = scmp.ne.s32.totalorder %s180, %s181
    %p193 = scmp.eq.s32.totalorder %s24, 7
    %p194 = por %p192, %p193
    %p196 = scmp.ne.s32.totalorder %s181, %s195
    %p197 = scmp.eq.s32.totalorder %s24, 0
    %p198 = por %p196, %p197
    %s200 = sadd.s32 %s199, 1
    %p203 = scmp.eq.s32.totalorder %s18, 7
    %p204 = scmp.ne.s32.totalorder %s199, %s201
    %p205 = scmp.eq.s32.totalorder %s18, 0
    %p206 = por %p204, %p205
    %p207 = scmp.ne.s32.totalorder %s199, %s201
    %p208 = scmp.eq.s32.totalorder %s23, 7
    %p209 = por %p207, %p208
    %p210 = scmp.ne.s32.totalorder %s201, %s202
    %p211 = scmp.eq.s32.totalorder %s23, 0
    %p212 = por %p210, %p211
    %p213 = scmp.ne.s32.totalorder %s201, %s202
    %p214 = scmp.eq.s32.totalorder %s24, 7
    %p215 = por %p213, %p214
    %p217 = scmp.ne.s32.totalorder %s202, %s216
    %p218 = scmp.eq.s32.totalorder %s24, 0
    %p219 = por %p217, %p218
    %s220 = ssub.s32 %s18, %s25
    %p221 = scmp.eq.s32.totalorder %s220, 0
    %s223 = sadd.s32 %s222, 1
    %s224 = scalar_select %p221, %s222, %s223
    %p227 = pneg %p221
    %p228 = scmp.eq.s32.totalorder %s18, 7
    %p229 = por %p227, %p228
    %p230 = scmp.ne.s32.totalorder %s222, %s225
    %p231 = scmp.eq.s32.totalorder %s18, 0
    %p232 = por %p230, %p231
    %p233 = scmp.ne.s32.totalorder %s222, %s225
    %p234 = scmp.eq.s32.totalorder %s23, 7
    %p235 = por %p233, %p234
    %p236 = scmp.ne.s32.totalorder %s225, %s226
    %p237 = scmp.eq.s32.totalorder %s23, 0
    %p238 = por %p236, %p237
    %p239 = scmp.ne.s32.totalorder %s225, %s226
    %p240 = scmp.eq.s32.totalorder %s24, 7
    %p241 = por %p239, %p240
    %p243 = scmp.ne.s32.totalorder %s226, %s242
    %p244 = scmp.eq.s32.totalorder %s24, 0
    %p245 = por %p243, %p244
    %s246 = ssub.s32 %s18, %s25
    %p247 = scmp.eq.s32.totalorder %s246, 0
    %s249 = sadd.s32 %s248, 1
    %s250 = scalar_select %p247, %s248, %s249
    %p253 = pneg %p247
    %p254 = scmp.eq.s32.totalorder %s18, 7
    %p255 = por %p253, %p254
    %p256 = scmp.ne.s32.totalorder %s248, %s251
    %p257 = scmp.eq.s32.totalorder %s18, 0
    %p258 = por %p256, %p257
    %p259 = scmp.ne.s32.totalorder %s248, %s251
    %p260 = scmp.eq.s32.totalorder %s23, 7
    %p261 = por %p259, %p260
    %p262 = scmp.ne.s32.totalorder %s251, %s252
    %p263 = scmp.eq.s32.totalorder %s23, 0
    %p264 = por %p262, %p263
    %p265 = scmp.ne.s32.totalorder %s251, %s252
    %p266 = scmp.eq.s32.totalorder %s24, 7
    %p267 = por %p265, %p266
    %p269 = scmp.ne.s32.totalorder %s252, %s268
    %p270 = scmp.eq.s32.totalorder %s24, 0
    %p271 = por %p269, %p270
    %s273 = sadd.s32 %s272, 1
    %p276 = scmp.eq.s32.totalorder %s18, 7
    %p277 = scmp.ne.s32.totalorder %s272, %s274
    %p278 = scmp.eq.s32.totalorder %s18, 0
    %p279 = por %p277, %p278
    %p280 = scmp.ne.s32.totalorder %s272, %s274
    %p281 = scmp.eq.s32.totalorder %s23, 7
    %p282 = por %p280, %p281
    %p283 = scmp.ne.s32.totalorder %s274, %s275
    %p284 = scmp.eq.s32.totalorder %s23, 0
    %p285 = por %p283, %p284
    %p286 = scmp.ne.s32.totalorder %s274, %s275
    %p287 = scmp.eq.s32.totalorder %s24, 7
    %p288 = por %p286, %p287
    %p290 = scmp.ne.s32.totalorder %s275, %s289
    %p291 = scmp.eq.s32.totalorder %s24, 0
    %p292 = por %p290, %p291
    %p293 = scmp.le.s32.totalorder 1, %s18
    %p294 = scmp.lt.s32.totalorder %s18, 9
    %p295 = pnand %p293, %p294
    %p296 = pneg %p295
    // Predicated region
    $region9: #{_seq2seq_forward_jit.2} parent=5 // pred_check
      _
    $region10: #{_seq2seq_forward_jit.2} parent=5 // pred_check_branch
      %298 = sbr.rel (%p295) target = $region12
    $region11: #{_seq2seq_forward_jit.2} parent=5 // pred_region
      %s299 = ssub.s32 %s18, 1
      // Predicated region
      $region13: #{_seq2seq_forward_jit.2} parent=11 // pred_check
        %p300 = pneg %p65
      $region14: #{_seq2seq_forward_jit.2} parent=11 // pred_check_branch
        %302 = sbr.rel (%p300) target = $region16
      $region15: #{_seq2seq_forward_jit.2} parent=11 // pred_region
        _
      $region16: #{_seq2seq_forward_jit.2} parent=11 // pred_fallthru
        _
      // Predicated region
      $region17: #{_seq2seq_forward_jit.2} parent=11 // pred_check
        %p303 = pneg %p86
      $region18: #{_seq2seq_forward_jit.2} parent=11 // pred_check_branch
        %305 = sbr.rel (%p303) target = $region20
      $region19: #{_seq2seq_forward_jit.2} parent=11 // pred_region
        _
      $region20: #{_seq2seq_forward_jit.2} parent=11 // pred_fallthru
        _
      // Predicated region
      $region21: #{_seq2seq_forward_jit.2} parent=11 // pred_check
        %p306 = pneg %p107
      $region22: #{_seq2seq_forward_jit.2} parent=11 // pred_check_branch
        %308 = sbr.rel (%p306) target = $region24
      $region23: #{_seq2seq_forward_jit.2} parent=11 // pred_region
        _
      $region24: #{_seq2seq_forward_jit.2} parent=11 // pred_fallthru
        _
      // Predicated region
      $region25: #{_seq2seq_forward_jit.2} parent=11 // pred_check
        %p309 = pneg %p128
      $region26: #{_seq2seq_forward_jit.2} parent=11 // pred_check_branch
        %311 = sbr.rel (%p309) target = $region28
      $region27: #{_seq2seq_forward_jit.2} parent=11 // pred_region
        _
      $region28: #{_seq2seq_forward_jit.2} parent=11 // pred_fallthru
        _
      // Predicated region
      $region29: #{_seq2seq_forward_jit.2} parent=11 // pred_check
        %p312 = pneg %p149
      $region30: #{_seq2seq_forward_jit.2} parent=11 // pred_check_branch
        %314 = sbr.rel (%p312) target = $region32
      $region31: #{_seq2seq_forward_jit.2} parent=11 // pred_region
        _
      $region32: #{_seq2seq_forward_jit.2} parent=11 // pred_fallthru
        _
      // Predicated region
      $region33: #{_seq2seq_forward_jit.2} parent=11 // pred_check
        %p315 = pneg %p170
      $region34: #{_seq2seq_forward_jit.2} parent=11 // pred_check_branch
        %317 = sbr.rel (%p315) target = $region36
      $region35: #{_seq2seq_forward_jit.2} parent=11 // pred_region
        _
      $region36: #{_seq2seq_forward_jit.2} parent=11 // pred_fallthru
        _
      // Predicated region
      $region37: #{_seq2seq_forward_jit.2} parent=11 // pred_check
        %p318 = pneg %p191
      $region38: #{_seq2seq_forward_jit.2} parent=11 // pred_check_branch
        %320 = sbr.rel (%p318) target = $region40
      $region39: #{_seq2seq_forward_jit.2} parent=11 // pred_region
        _
      $region40: #{_seq2seq_forward_jit.2} parent=11 // pred_fallthru
        _
      // Predicated region
      $region41: #{_seq2seq_forward_jit.2} parent=11 // pred_check
        %p321 = pneg %p212
      $region42: #{_seq2seq_forward_jit.2} parent=11 // pred_check_branch
        %323 = sbr.rel (%p321) target = $region44
      $region43: #{_seq2seq_forward_jit.2} parent=11 // pred_region
        _
      $region44: #{_seq2seq_forward_jit.2} parent=11 // pred_fallthru
        _
    $region12: #{_seq2seq_forward_jit.2} parent=5 // pred_fallthru
      _
    %p324 = scmp.lt.s32.totalorder %s18, 8
    // Predicated region
    $region45: #{_seq2seq_forward_jit.2} parent=5 // pred_check
      %p325 = pneg %p324
    $region46: #{_seq2seq_forward_jit.2} parent=5 // pred_check_branch
      %327 = sbr.rel (%p325) target = $region48
    $region47: #{_seq2seq_forward_jit.2} parent=5 // pred_region
      // Predicated region
      $region49: #{_seq2seq_forward_jit.2} parent=47 // pred_check
        %p328 = pneg %p38
      $region50: #{_seq2seq_forward_jit.2} parent=47 // pred_check_branch
        %330 = sbr.rel (%p328) target = $region52
      $region51: #{_seq2seq_forward_jit.2} parent=47 // pred_region
        %p331 = scmp.lt.s32.totalorder %s18, 7
        %s332 = scalar_select %p331, %s18, 7
        %s333 = smul.addr %s332, 2
        %s334 = scalar_lea.vmem %s0, %s333
      $region52: #{_seq2seq_forward_jit.2} parent=47 // pred_fallthru
        _
    $region48: #{_seq2seq_forward_jit.2} parent=5 // pred_fallthru
      _
    %p335 = scmp.le.s32.totalorder 1, %s18
    %p336 = scmp.lt.s32.totalorder %s18, 9
    %p337 = pnand %p335, %p336
    %p338 = pneg %p337
    // Predicated region
    $region53: #{_seq2seq_forward_jit.2} parent=5 // pred_check
      _
    $region54: #{_seq2seq_forward_jit.2} parent=5 // pred_check_branch
      %340 = sbr.rel (%p337) target = $region56
    $region55: #{_seq2seq_forward_jit.2} parent=5 // pred_region
      %s341 = ssub.s32 %s18, 1
      %p342 = scmp.lt.s32.totalorder %s23, 7
      %s343 = scalar_select %p342, %s23, 7
      %s344 = smul.addr %s343, 2
      %s345 = scalar_lea.vmem %s0, %s344
      %p346 = pneg %p44
      %p347 = pneg %p41
      %p348 = pneg %p65
      %p349 = pneg %p62
      %p350 = pneg %p86
      %p351 = pneg %p83
      %p352 = pneg %p107
      %p353 = pneg %p104
      %p354 = pneg %p128
      %p355 = pneg %p125
      %p356 = pneg %p149
      %p357 = pneg %p146
      %p358 = pneg %p170
      %p359 = pneg %p167
      %p360 = pneg %p191
      %p361 = pneg %p188
      %p362 = pneg %p212
      %p363 = pneg %p209
      %p364 = pneg %p238
      %p365 = pneg %p235
      %p366 = scmp.lt.s32.totalorder %s23, 7
      %s367 = scalar_select %p366, %s23, 7
      %s368 = smul.addr %s367, 2
      %s369 = scalar_lea.vmem %s9, %s368
      %p370 = pneg %p264
      %p371 = pneg %p261
      %p372 = scmp.lt.s32.totalorder %s23, 7
      %s373 = scalar_select %p372, %s23, 7
      %s374 = smul.addr %s373, 2
      %s375 = scalar_lea.vmem %s10, %s374
      %p376 = pneg %p285
      %p377 = pneg %p282
      %p378 = scmp.lt.s32.totalorder %s23, 7
      %s379 = scalar_select %p378, %s23, 7
      %s380 = smul.addr %s379, 2
      %s381 = scalar_lea.vmem %s0, %s380
      %p382 = scmp.lt.s32.totalorder %s23, 7
      %s383 = scalar_select %p382, %s23, 7
      %s384 = smul.addr %s383, 2
      %s385 = scalar_lea.vmem %s9, %s384
      %p386 = scmp.lt.s32.totalorder %s23, 7
      %s387 = scalar_select %p386, %s23, 7
      %s388 = smul.addr %s387, 2
      %s389 = scalar_lea.vmem %s10, %s388
      %p390 = scmp.eq.s32.totalorder %s23, 0
      // Predicated region
      $region57: #{_seq2seq_forward_jit.2} parent=55 // pred_check
        %p391 = pneg %p390
      $region58: #{_seq2seq_forward_jit.2} parent=55 // pred_check_branch
        %393 = sbr.rel (%p391) target = $region60
      $region59: #{_seq2seq_forward_jit.2} parent=55 // pred_region
        %vm394 = vcmask 254976
        %395 = vst.msk [vmem:[#allocation2] sm:$0x3] %vm394, 0.0
      $region60: #{_seq2seq_forward_jit.2} parent=55 // pred_fallthru
        _
      %v396 = vld [vmem:[%s381] sm:$0x3]
      %v397 = vld [vmem:[%s1] sm:$0x3]
      %v398 = vstv %s23
      %vm399 = vcmp.gt.s32.totalorder %v397, %v398
      %v400 = vsel %vm399, 1, 0
      %v401 = vcvt.s32.f32 %v400
      %v402 = vld [vmem:[#allocation2] sm:$0x3]
      %v403 = vld [vmem:[%s2] sm:$0xff]
      %v404 = vld [vmem:[%s2 + $0x8] sm:$0xff]
      %v405 = vld [vmem:[%s4] sm:$0x1]
      %v407 = vlaneseq
      %v408 = vshrl.u32 %v407, 7
      %v409 = vsub.s32 0, %v408
      %v410 = vrot.slane %v405, %v409
      %vm412 = vcmask 130048
      %v414 = vsel %vm412, %v396, 0
      %416 = vmatprep.subr.mxu0 0.0
      %417 = vmatpush1.msra.mxu0 %v403
      %418 = vmatprep.subr.mxu0 0.0
      %419 = vmatpush1.msra.mxu0 %v404
      %420 = vmatprep.subr.mxu0 0.0
      %421 = vmatpush1.msra.mxu0 0.0
      %422 = vmatprep.subr.mxu0 0.0
      %423 = vmatpush1.msra.mxu0 0.0
      %424 = vmatprep.subr.mxu0 0.0
      %425 = vmatpush1.msra.mxu0 0.0
      %426 = vmatprep.subr.mxu0 0.0
      %427 = vmatpush1.msra.mxu0 0.0
      %428 = vmatprep.subr.mxu0 0.0
      %429 = vmatpush1.msra.mxu0 0.0
      %430 = vmatprep.subr.mxu0 0.0
      %431 = vmatpush1.msra.mxu0 0.0
      %432 = vmatprep.subr.mxu0 0.0
      %433 = vmatpush1.msra.mxu0 0.0
      %434 = vmatprep.subr.mxu0 0.0
      %435 = vmatpush1.msra.mxu0 0.0
      %436 = vmatprep.subr.mxu0 0.0
      %437 = vmatpush1.msra.mxu0 0.0
      %438 = vmatprep.subr.mxu0 0.0
      %439 = vmatpush1.msra.mxu0 0.0
      %440 = vmatprep.subr.mxu0 0.0
      %441 = vmatpush1.msra.mxu0 0.0
      %442 = vmatprep.subr.mxu0 0.0
      %443 = vmatpush1.msra.mxu0 0.0
      %444 = vmatprep.subr.mxu0 0.0
      %445 = vmatpush1.msra.mxu0 0.0
      %446 = vmatprep.subr.mxu0 0.0
      %447 = vmatpush1.msra.mxu0 0.0
      %448 = vmatprep.subr.mxu0 0.0
      %449 = vmatpush1.msra.mxu0 0.0
      %450 = vmatprep.subr.mxu0 0.0
      %451 = vmatpush1.msra.mxu0 0.0
      %452 = vmatprep.subr.mxu0 0.0
      %453 = vmatpush1.msra.mxu0 0.0
      %454 = vmatprep.subr.mxu0 0.0
      %455 = vmatpush1.msra.mxu0 0.0
      %456 = vmatprep.subr.mxu0 0.0
      %457 = vmatpush1.msra.mxu0 0.0
      %458 = vmatprep.subr.mxu0 0.0
      %459 = vmatpush1.msra.mxu0 0.0
      %460 = vmatprep.subr.mxu0 0.0
      %461 = vmatpush1.msra.mxu0 0.0
      %462 = vmatprep.subr.mxu0 0.0
      %463 = vmatpush1.msra.mxu0 0.0
      %464 = vmatprep.subr.mxu0 0.0
      %465 = vmatpush1.msra.mxu0 0.0
      %466 = vmatprep.subr.mxu0 0.0
      %467 = vmatpush1.msra.mxu0 0.0
      %468 = vmatprep.subr.mxu0 0.0
      %469 = vmatpush1.msra.mxu0 0.0
      %470 = vmatprep.subr.mxu0 0.0
      %471 = vmatpush1.msra.mxu0 0.0
      %472 = vmatprep.subr.mxu0 0.0
      %473 = vmatpush1.msra.mxu0 0.0
      %474 = vmatprep.subr.mxu0 0.0
      %475 = vmatpush1.msra.mxu0 0.0
      %476 = vmatprep.subr.mxu0 0.0
      %477 = vmatpush1.msra.mxu0 0.0
      %478 = vmatprep.subr.mxu0 0.0
      %479 = vmatpush1.msra.mxu0 0.0
      %480 = vmatprep.mubr.f32.mxu0 0.0
      %481 = vmatmul.mubr.f32.gmra.mrb[0].mxu0 %v414
      %v482 = vpop.f32.mrb[0].mxu0
      %v483 = vadd.f32 %v410, %v482
      %v484 = vpop.f32.mrb[0].mxu0
      %485 = vdwg.mxu0
      %v486 = vld [vmem:[%s3] sm:$0xff]
      %v487 = vld [vmem:[%s3 + $0x8] sm:$0xff]
      %v488 = vld [vmem:[%s3 + $0x10] sm:$0xff]
      %v489 = vld [vmem:[%s3 + $0x18] sm:$0xff]
      %v490 = vld [vmem:[%s5] sm:$0x1]
      %v492 = vlaneseq
      %v493 = vshrl.u32 %v492, 7
      %v494 = vsub.s32 0, %v493
      %v495 = vrot.slane %v490, %v494
      %vm497 = vcmask 261120
      %v499 = vsel %vm497, %v402, 0
      %501 = vmatprep.subr.mxu0 0.0
      %502 = vmatpush1.msra.mxu0 %v486
      %503 = vmatprep.subr.mxu0 0.0
      %504 = vmatpush1.msra.mxu0 %v487
      %505 = vmatprep.subr.mxu0 0.0
      %506 = vmatpush1.msra.mxu0 %v488
      %507 = vmatprep.subr.mxu0 0.0
      %508 = vmatpush1.msra.mxu0 %v489
      %509 = vmatprep.subr.mxu0 0.0
      %510 = vmatpush1.msra.mxu0 0.0
      %511 = vmatprep.subr.mxu0 0.0
      %512 = vmatpush1.msra.mxu0 0.0
      %513 = vmatprep.subr.mxu0 0.0
      %514 = vmatpush1.msra.mxu0 0.0
      %515 = vmatprep.subr.mxu0 0.0
      %516 = vmatpush1.msra.mxu0 0.0
      %517 = vmatprep.subr.mxu0 0.0
      %518 = vmatpush1.msra.mxu0 0.0
      %519 = vmatprep.subr.mxu0 0.0
      %520 = vmatpush1.msra.mxu0 0.0
      %521 = vmatprep.subr.mxu0 0.0
      %522 = vmatpush1.msra.mxu0 0.0
      %523 = vmatprep.subr.mxu0 0.0
      %524 = vmatpush1.msra.mxu0 0.0
      %525 = vmatprep.subr.mxu0 0.0
      %526 = vmatpush1.msra.mxu0 0.0
      %527 = vmatprep.subr.mxu0 0.0
      %528 = vmatpush1.msra.mxu0 0.0
      %529 = vmatprep.subr.mxu0 0.0
      %530 = vmatpush1.msra.mxu0 0.0
      %531 = vmatprep.subr.mxu0 0.0
      %532 = vmatpush1.msra.mxu0 0.0
      %533 = vmatprep.subr.mxu0 0.0
      %534 = vmatpush1.msra.mxu0 0.0
      %535 = vmatprep.subr.mxu0 0.0
      %536 = vmatpush1.msra.mxu0 0.0
      %537 = vmatprep.subr.mxu0 0.0
      %538 = vmatpush1.msra.mxu0 0.0
      %539 = vmatprep.subr.mxu0 0.0
      %540 = vmatpush1.msra.mxu0 0.0
      %541 = vmatprep.subr.mxu0 0.0
      %542 = vmatpush1.msra.mxu0 0.0
      %543 = vmatprep.subr.mxu0 0.0
      %544 = vmatpush1.msra.mxu0 0.0
      %545 = vmatprep.subr.mxu0 0.0
      %546 = vmatpush1.msra.mxu0 0.0
      %547 = vmatprep.subr.mxu0 0.0
      %548 = vmatpush1.msra.mxu0 0.0
      %549 = vmatprep.subr.mxu0 0.0
      %550 = vmatpush1.msra.mxu0 0.0
      %551 = vmatprep.subr.mxu0 0.0
      %552 = vmatpush1.msra.mxu0 0.0
      %553 = vmatprep.subr.mxu0 0.0
      %554 = vmatpush1.msra.mxu0 0.0
      %555 = vmatprep.subr.mxu0 0.0
      %556 = vmatpush1.msra.mxu0 0.0
      %557 = vmatprep.subr.mxu0 0.0
      %558 = vmatpush1.msra.mxu0 0.0
      %559 = vmatprep.subr.mxu0 0.0
      %560 = vmatpush1.msra.mxu0 0.0
      %561 = vmatprep.subr.mxu0 0.0
      %562 = vmatpush1.msra.mxu0 0.0
      %563 = vmatprep.subr.mxu0 0.0
      %564 = vmatpush1.msra.mxu0 0.0
      %565 = vmatprep.mubr.f32.mxu0 0.0
      %566 = vmatmul.mubr.f32.gmra.mrb[0].mxu0 %v499
      %v567 = vpop.f32.mrb[0].mxu0
      %v568 = vadd.f32 %v495, %v567
      %v569 = vpop.f32.mrb[0].mxu0
      %570 = vdwg.mxu0
      %v571 = vadd.f32 %v483, %v568
      %v572 = vxor.u32 %v571, 2147483648
      %v573 = vmul.f32 %v572, 1.442695
      %v574 = vpow.pop %v573
      %v575 = vadd.f32 %v574, 1.0
      %v576 = vrcp.pop %v575
      %v577 = vmul.f32 1.0, %v576
      %579 = vrot.lane.b32.xlu0 %v568, 64
      %v580 = vpop.permute.xlu0 %579
      %v582 = vmul.f32 %v577, %v580
      %584 = vrot.lane.b32.xlu0 %v582, 64
      %v585 = vpop.permute.xlu0 %584
      %v587 = vadd.f32 %v483, %v585
      %v588 = vtanh.pop %v587
      %v589 = vsub.f32 1.0, %v577
      %591 = vrot.lane.b32.xlu0 %v588, 96
      %v592 = vpop.permute.xlu0 %591
      %v594 = vmul.f32 %v589, %v592
      %595 = vrot.lane.b32.xlu0 %v402, 32
      %v596 = vpop.permute.xlu0 %595
      %v598 = vmul.f32 %v577, %v596
      %v599 = vadd.f32 %v594, %v598
      %601 = vset.pattern.permute.xlu0 0
      %602 = vperm.xlu0 %601, %v401
      %v603 = vpop.permute.xlu0 %602
      %v605 = vmul.f32 %v603, %v599
      %v606 = vsub.f32 1.0, %v401
      %608 = vset.pattern.permute.xlu0 0
      %609 = vperm.xlu0 %608, %v606
      %v610 = vpop.permute.xlu0 %609
      %v612 = vmul.f32 %v610, %v402
      %614 = vrot.lane.b32.xlu0 %v612, 32
      %v615 = vpop.permute.xlu0 %614
      %v617 = vadd.f32 %v605, %v615
      %619 = vrot.lane.b32.xlu0 %v617, 96
      %v620 = vpop.permute.xlu0 %619
      %vm622 = vcmask 254976
      %623 = vst.msk [vmem:[#allocation2] sm:$0x3] %vm622, %v620
      %v624 = vmul.f32 %v617, %v603
      %626 = vrot.lane.b32.xlu0 %v624, 96
      %v627 = vpop.permute.xlu0 %626
      %629 = vst.msk [vmem:[%s385] sm:$0x3] %vm622, %v627
      %v630 = vld [vmem:[%s8] sm:$0xff]
      %v631 = vld [vmem:[%s8 + $0x8] sm:$0xff]
      %v632 = vld [vmem:[%s8 + $0x10] sm:$0xff]
      %v633 = vld [vmem:[%s8 + $0x18] sm:$0xff]
      %v634 = vsel %vm497, %v627, 0
      %636 = vmatprep.subr.mxu0 0.0
      %637 = vmatpush1.msra.mxu0 %v630
      %638 = vmatprep.subr.mxu0 0.0
      %639 = vmatpush1.msra.mxu0 %v631
      %640 = vmatprep.subr.mxu0 0.0
      %641 = vmatpush1.msra.mxu0 %v632
      %642 = vmatprep.subr.mxu0 0.0
      %643 = vmatpush1.msra.mxu0 %v633
      %644 = vmatprep.subr.mxu0 0.0
      %645 = vmatpush1.msra.mxu0 0.0
      %646 = vmatprep.subr.mxu0 0.0
      %647 = vmatpush1.msra.mxu0 0.0
      %648 = vmatprep.subr.mxu0 0.0
      %649 = vmatpush1.msra.mxu0 0.0
      %650 = vmatprep.subr.mxu0 0.0
      %651 = vmatpush1.msra.mxu0 0.0
      %652 = vmatprep.subr.mxu0 0.0
      %653 = vmatpush1.msra.mxu0 0.0
      %654 = vmatprep.subr.mxu0 0.0
      %655 = vmatpush1.msra.mxu0 0.0
      %656 = vmatprep.subr.mxu0 0.0
      %657 = vmatpush1.msra.mxu0 0.0
      %658 = vmatprep.subr.mxu0 0.0
      %659 = vmatpush1.msra.mxu0 0.0
      %660 = vmatprep.subr.mxu0 0.0
      %661 = vmatpush1.msra.mxu0 0.0
      %662 = vmatprep.subr.mxu0 0.0
      %663 = vmatpush1.msra.mxu0 0.0
      %664 = vmatprep.subr.mxu0 0.0
      %665 = vmatpush1.msra.mxu0 0.0
      %666 = vmatprep.subr.mxu0 0.0
      %667 = vmatpush1.msra.mxu0 0.0
      %668 = vmatprep.subr.mxu0 0.0
      %669 = vmatpush1.msra.mxu0 0.0
      %670 = vmatprep.subr.mxu0 0.0
      %671 = vmatpush1.msra.mxu0 0.0
      %672 = vmatprep.subr.mxu0 0.0
      %673 = vmatpush1.msra.mxu0 0.0
      %674 = vmatprep.subr.mxu0 0.0
      %675 = vmatpush1.msra.mxu0 0.0
      %676 = vmatprep.subr.mxu0 0.0
      %677 = vmatpush1.msra.mxu0 0.0
      %678 = vmatprep.subr.mxu0 0.0
      %679 = vmatpush1.msra.mxu0 0.0
      %680 = vmatprep.subr.mxu0 0.0
      %681 = vmatpush1.msra.mxu0 0.0
      %682 = vmatprep.subr.mxu0 0.0
      %683 = vmatpush1.msra.mxu0 0.0
      %684 = vmatprep.subr.mxu0 0.0
      %685 = vmatpush1.msra.mxu0 0.0
      %686 = vmatprep.subr.mxu0 0.0
      %687 = vmatpush1.msra.mxu0 0.0
      %688 = vmatprep.subr.mxu0 0.0
      %689 = vmatpush1.msra.mxu0 0.0
      %690 = vmatprep.subr.mxu0 0.0
      %691 = vmatpush1.msra.mxu0 0.0
      %692 = vmatprep.subr.mxu0 0.0
      %693 = vmatpush1.msra.mxu0 0.0
      %694 = vmatprep.subr.mxu0 0.0
      %695 = vmatpush1.msra.mxu0 0.0
      %696 = vmatprep.subr.mxu0 0.0
      %697 = vmatpush1.msra.mxu0 0.0
      %698 = vmatprep.subr.mxu0 0.0
      %699 = vmatpush1.msra.mxu0 0.0
      %700 = vmatprep.mubr.f32.mxu0 0.0
      %701 = vmatmul.mubr.f32.gmra.mrb[0].mxu0 %v634
      %v702 = vpop.f32.mrb[0].mxu0
      %v703 = vadd.f32 0.0, %v702
      %v704 = vpop.f32.mrb[0].mxu0
      %705 = vdwg.mxu0
      %706 = vst.msk [vmem:[%s389] sm:$0x3] %vm622, %v703
      %p707 = scmp.eq.s32.totalorder %s23, 7
      // Predicated region
      $region61: #{_seq2seq_forward_jit.2} parent=55 // pred_check
        %p708 = pneg %p707
      $region62: #{_seq2seq_forward_jit.2} parent=55 // pred_check_branch
        %710 = sbr.rel (%p708) target = $region64
      $region63: #{_seq2seq_forward_jit.2} parent=55 // pred_region
        %v711 = vld [vmem:[%s6] sm:$0xff]
        %v712 = vld [vmem:[%s6 + $0x8] sm:$0xff]
        %v713 = vld [vmem:[%s6 + $0x10] sm:$0xff]
        %v714 = vld [vmem:[%s6 + $0x18] sm:$0xff]
        %v715 = vld [vmem:[%s7] sm:$0x1]
        %v717 = vlaneseq
        %v718 = vshrl.u32 %v717, 7
        %v719 = vsub.s32 0, %v718
        %v720 = vrot.slane %v715, %v719
        %v722 = vsel %vm497, %v620, 0
        %724 = vmatprep.subr.mxu0 0.0
        %725 = vmatpush1.msra.mxu0 %v711
        %726 = vmatprep.subr.mxu0 0.0
        %727 = vmatpush1.msra.mxu0 %v712
        %728 = vmatprep.subr.mxu0 0.0
        %729 = vmatpush1.msra.mxu0 %v713
        %730 = vmatprep.subr.mxu0 0.0
        %731 = vmatpush1.msra.mxu0 %v714
        %732 = vmatprep.subr.mxu0 0.0
        %733 = vmatpush1.msra.mxu0 0.0
        %734 = vmatprep.subr.mxu0 0.0
        %735 = vmatpush1.msra.mxu0 0.0
        %736 = vmatprep.subr.mxu0 0.0
        %737 = vmatpush1.msra.mxu0 0.0
        %738 = vmatprep.subr.mxu0 0.0
        %739 = vmatpush1.msra.mxu0 0.0
        %740 = vmatprep.subr.mxu0 0.0
        %741 = vmatpush1.msra.mxu0 0.0
        %742 = vmatprep.subr.mxu0 0.0
        %743 = vmatpush1.msra.mxu0 0.0
        %744 = vmatprep.subr.mxu0 0.0
        %745 = vmatpush1.msra.mxu0 0.0
        %746 = vmatprep.subr.mxu0 0.0
        %747 = vmatpush1.msra.mxu0 0.0
        %748 = vmatprep.subr.mxu0 0.0
        %749 = vmatpush1.msra.mxu0 0.0
        %750 = vmatprep.subr.mxu0 0.0
        %751 = vmatpush1.msra.mxu0 0.0
        %752 = vmatprep.subr.mxu0 0.0
        %753 = vmatpush1.msra.mxu0 0.0
        %754 = vmatprep.subr.mxu0 0.0
        %755 = vmatpush1.msra.mxu0 0.0
        %756 = vmatprep.subr.mxu0 0.0
        %757 = vmatpush1.msra.mxu0 0.0
        %758 = vmatprep.subr.mxu0 0.0
        %759 = vmatpush1.msra.mxu0 0.0
        %760 = vmatprep.subr.mxu0 0.0
        %761 = vmatpush1.msra.mxu0 0.0
        %762 = vmatprep.subr.mxu0 0.0
        %763 = vmatpush1.msra.mxu0 0.0
        %764 = vmatprep.subr.mxu0 0.0
        %765 = vmatpush1.msra.mxu0 0.0
        %766 = vmatprep.subr.mxu0 0.0
        %767 = vmatpush1.msra.mxu0 0.0
        %768 = vmatprep.subr.mxu0 0.0
        %769 = vmatpush1.msra.mxu0 0.0
        %770 = vmatprep.subr.mxu0 0.0
        %771 = vmatpush1.msra.mxu0 0.0
        %772 = vmatprep.subr.mxu0 0.0
        %773 = vmatpush1.msra.mxu0 0.0
        %774 = vmatprep.subr.mxu0 0.0
        %775 = vmatpush1.msra.mxu0 0.0
        %776 = vmatprep.subr.mxu0 0.0
        %777 = vmatpush1.msra.mxu0 0.0
        %778 = vmatprep.subr.mxu0 0.0
        %779 = vmatpush1.msra.mxu0 0.0
        %780 = vmatprep.subr.mxu0 0.0
        %781 = vmatpush1.msra.mxu0 0.0
        %782 = vmatprep.subr.mxu0 0.0
        %783 = vmatpush1.msra.mxu0 0.0
        %784 = vmatprep.subr.mxu0 0.0
        %785 = vmatpush1.msra.mxu0 0.0
        %786 = vmatprep.subr.mxu0 0.0
        %787 = vmatpush1.msra.mxu0 0.0
        %788 = vmatprep.mubr.f32.mxu0 0.0
        %789 = vmatmul.mubr.f32.gmra.mrb[0].mxu0 %v722
        %v790 = vpop.f32.mrb[0].mxu0
        %v791 = vadd.f32 %v720, %v790
        %v792 = vpop.f32.mrb[0].mxu0
        %793 = vdwg.mxu0
        %v794 = vtanh.pop %v791
        %795 = vst.msk [vmem:[%s11] sm:$0x3] %vm622, %v794
      $region64: #{_seq2seq_forward_jit.2} parent=55 // pred_fallthru
        _
      %p796 = scmp.lt.s32.totalorder %s23, 7
      %s797 = scalar_select %p796, %s23, 7
      %s798 = smul.addr %s797, 2
      %s799 = scalar_lea.vmem %s9, %s798
      %p800 = scmp.lt.s32.totalorder %s23, 7
      %s801 = scalar_select %p800, %s23, 7
      %s802 = smul.addr %s801, 2
      %s803 = scalar_lea.vmem %s10, %s802
      // Predicated region
      $region65: #{_seq2seq_forward_jit.2} parent=55 // pred_check
        %p804 = pneg %p235
      $region66: #{_seq2seq_forward_jit.2} parent=55 // pred_check_branch
        %806 = sbr.rel (%p804) target = $region68
      $region67: #{_seq2seq_forward_jit.2} parent=55 // pred_region
        _
      $region68: #{_seq2seq_forward_jit.2} parent=55 // pred_fallthru
        _
      // Predicated region
      $region69: #{_seq2seq_forward_jit.2} parent=55 // pred_check
        %p807 = pneg %p261
      $region70: #{_seq2seq_forward_jit.2} parent=55 // pred_check_branch
        %809 = sbr.rel (%p807) target = $region72
      $region71: #{_seq2seq_forward_jit.2} parent=55 // pred_region
        _
      $region72: #{_seq2seq_forward_jit.2} parent=55 // pred_fallthru
        _
      // Predicated region
      $region73: #{_seq2seq_forward_jit.2} parent=55 // pred_check
        %p810 = pneg %p282
      $region74: #{_seq2seq_forward_jit.2} parent=55 // pred_check_branch
        %812 = sbr.rel (%p810) target = $region76
      $region75: #{_seq2seq_forward_jit.2} parent=55 // pred_region
        _
      $region76: #{_seq2seq_forward_jit.2} parent=55 // pred_fallthru
        _
      // Predicated region
      $region77: #{_seq2seq_forward_jit.2} parent=55 // pred_check
        %p813 = pneg %p282
      $region78: #{_seq2seq_forward_jit.2} parent=55 // pred_check_branch
        %815 = sbr.rel (%p813) target = $region80
      $region79: #{_seq2seq_forward_jit.2} parent=55 // pred_region
        _
      $region80: #{_seq2seq_forward_jit.2} parent=55 // pred_fallthru
        _
    $region56: #{_seq2seq_forward_jit.2} parent=5 // pred_fallthru
      _
    %p816 = scmp.le.s32.totalorder 2, %s18
    // Predicated region
    $region81: #{_seq2seq_forward_jit.2} parent=5 // pred_check
      %p817 = pneg %p816
    $region82: #{_seq2seq_forward_jit.2} parent=5 // pred_check_branch
      %819 = sbr.rel (%p817) target = $region84
    $region83: #{_seq2seq_forward_jit.2} parent=5 // pred_region
      %s820 = ssub.s32 %s18, 2
      // Predicated region
      $region85: #{_seq2seq_forward_jit.2} parent=83 // pred_check
        %p821 = pneg %p241
      $region86: #{_seq2seq_forward_jit.2} parent=83 // pred_check_branch
        %823 = sbr.rel (%p821) target = $region88
      $region87: #{_seq2seq_forward_jit.2} parent=83 // pred_region
        %p824 = scmp.lt.s32.totalorder %s24, 7
        %s825 = scalar_select %p824, %s24, 7
        %s826 = smul.addr %s825, 2
        %s827 = scalar_lea.vmem %s9, %s826
      $region88: #{_seq2seq_forward_jit.2} parent=83 // pred_fallthru
        _
      // Predicated region
      $region89: #{_seq2seq_forward_jit.2} parent=83 // pred_check
        %p828 = pneg %p267
      $region90: #{_seq2seq_forward_jit.2} parent=83 // pred_check_branch
        %830 = sbr.rel (%p828) target = $region92
      $region91: #{_seq2seq_forward_jit.2} parent=83 // pred_region
        %p831 = scmp.lt.s32.totalorder %s24, 7
        %s832 = scalar_select %p831, %s24, 7
        %s833 = smul.addr %s832, 2
        %s834 = scalar_lea.vmem %s10, %s833
      $region92: #{_seq2seq_forward_jit.2} parent=83 // pred_fallthru
        _
    $region84: #{_seq2seq_forward_jit.2} parent=5 // pred_fallthru
      _
  $region6: #{_seq2seq_forward_jit.2} parent=0 // loop_footer
    %s22 = sadd.s32 1, %s18
  $region7: #{_seq2seq_forward_jit.2} parent=0 // loop_footer_branch
    %17 = sbr.rel target = $region3
  $region8: #{_seq2seq_forward_jit.2} parent=0 // loop_exit
    _

// kernel: _seq2seq_forward_jit.3
$region0: #{_seq2seq_forward_jit.3}
  #allocation0 [shape = 'u32[]', space=smem, size = 0x4, offset = 0x4, fixed_abs, tag = 'smem constant byte address 0x4 - core index']
  #allocation1 [shape = 'u32[144,128]{1,0:T(1,128)}', space=vmem, size = 0x12000, scoped, tag = 'internal scratch']
  #allocation2 [shape = 'f32[2,32]{1,0:T(2,128)}', space=vmem, size = 0x400, scoped, tag = 'scratch operand']
  #allocation3 [shape = 'f32[2,16]{1,0:T(2,128)}', space=vmem, size = 0x400, scoped, tag = 'scratch operand']
  #allocation4 [shape = 's32[1]{0}', space=sflag, size = 0x4, scoped, tag = 'scoped memory for _seq2seq_forward_jit.3']
  #allocation5 [shape = 'u8[512]{0}', space=smem, size = 0x200, scoped, tag = 'prefetched SMEM operand 0']
  %s0 = inlined_call_operand.vmem [shape: s32[8], index: 0, kind: input, shape index: {}]
  %s1 = inlined_call_operand.vmem [shape: f32[8,2,16], index: 1, kind: input, shape index: {}]
  %s2 = inlined_call_operand.vmem [shape: f32[8,2,32], index: 2, kind: input, shape index: {}]
  %s3 = inlined_call_operand.vmem [shape: f32[8,2,32], index: 3, kind: input, shape index: {}]
  %s4 = inlined_call_operand.vmem [shape: f32[2,32], index: 4, kind: input, shape index: {}]
  %s5 = inlined_call_operand.vmem [shape: f32[16,16], index: 5, kind: input, shape index: {}]
  %s6 = inlined_call_operand.vmem [shape: f32[32,32], index: 6, kind: input, shape index: {}]
  %s7 = inlined_call_operand.vmem [shape: f32[1,32], index: 7, kind: input, shape index: {}]
  %s8 = inlined_call_operand.vmem [shape: f32[1,32], index: 8, kind: input, shape index: {}]
  %s9 = inlined_call_operand.vmem [shape: f32[16,96], index: 9, kind: input, shape index: {}]
  %s10 = inlined_call_operand.vmem [shape: f32[32,96], index: 10, kind: input, shape index: {}]
  %s11 = inlined_call_operand.vmem [shape: f32[32,96], index: 11, kind: input, shape index: {}]
  %s12 = inlined_call_operand.vmem [shape: f32[1,96], index: 12, kind: input, shape index: {}]
  %s13 = inlined_call_operand.vmem [shape: f32[1,96], index: 13, kind: input, shape index: {}]
  %s14 = inlined_call_operand.vmem [shape: f32[32,16], index: 14, kind: input, shape index: {}]
  %s15 = inlined_call_operand.vmem [shape: f32[32,16], index: 15, kind: input, shape index: {}]
  %s16 = inlined_call_operand.vmem [shape: f32[16,16], index: 16, kind: input, shape index: {}]
  %s17 = inlined_call_operand.vmem [shape: f32[1,16], index: 17, kind: input, shape index: {}]
  %s18 = inlined_call_operand.hbm [shape: f32[8,2,16], index: 18, kind: output, shape index: {}]
  %s19 = sld [smem:[#allocation0]]
  $region105: #{_seq2seq_forward_jit.3} parent=0
    _
  %s21 = ssub.s32 1, %s19
  %s22 = scalar_select 0, %s21, %s19
  %s23 = sshll.u32 %s0, 4
  %s24 = int_to_ptr.vmem [resolvable:$true] %s23
  %26 = dma.vmem_to_smem %s24, 16, [#allocation5], [#allocation4]
  %27 = dma.done [#allocation4], 16
  %28 = sfence
  $region1: #{_seq2seq_forward_jit.3} parent=0
    #allocation6 [shape = 'u8[2048]{0}', space=vmem, size = 0x800, scoped, tag = 'output window, operand 0']
    #allocation7 [shape = 's32[2]{0}', space=sflag, size = 0x8, scoped, tag = 'scoped memory for _seq2seq_forward_jit.3']
    %29 = vsyncpa [#allocation7], 0
    %s30 = scalar_lea.sflag [#allocation7], 1
    %31 = vsyncpa %s30, 0
    loop: start=0, step=1, limit=10
    $region2: #{_seq2seq_forward_jit.3} parent=1 // loop_pre_header
      _
    $region3: #{_seq2seq_forward_jit.3} parent=1 // loop_header
      %s33 = sphi 0, %s37
      %p34 = scmp.ge.s32.totalorder %s33, 10
      %s43 = sphi 0, %s45
      %s46 = sphi 0, %s43
      %s47 = sphi 0, %s46
      %s63 = sphi 0, %s47
      %s67 = sphi 0, %s67
      %s69 = sphi 0, %s67
      %s70 = sphi 0, %s69
      %s84 = sphi 0, %s70
      %s88 = sphi 0, %s88
      %s90 = sphi 0, %s88
      %s91 = sphi 0, %s90
      %s105 = sphi 0, %s91
      %s109 = sphi 0, %s109
      %s111 = sphi 0, %s109
      %s112 = sphi 0, %s111
      %s126 = sphi 0, %s112
      %s130 = sphi 0, %s130
      %s132 = sphi 0, %s130
      %s133 = sphi 0, %s132
      %s147 = sphi 0, %s133
      %s151 = sphi 0, %s151
      %s153 = sphi 0, %s151
      %s154 = sphi 0, %s153
      %s168 = sphi 0, %s154
      %s172 = sphi 0, %s172
      %s174 = sphi 0, %s172
      %s175 = sphi 0, %s174
      %s189 = sphi 0, %s175
      %s193 = sphi 0, %s193
      %s195 = sphi 0, %s193
      %s196 = sphi 0, %s195
      %s210 = sphi 0, %s196
      %s214 = sphi 0, %s214
      %s216 = sphi 0, %s214
      %s217 = sphi 0, %s216
      %s231 = sphi 0, %s217
      %s235 = sphi 0, %s235
      %s237 = sphi 0, %s235
      %s238 = sphi 0, %s237
      %s252 = sphi 0, %s238
      %s256 = sphi 0, %s256
      %s258 = sphi 0, %s256
      %s259 = sphi 0, %s258
      %s273 = sphi 0, %s259
      %s277 = sphi 0, %s277
      %s279 = sphi 0, %s277
      %s280 = sphi 0, %s279
      %s294 = sphi 0, %s280
      %s298 = sphi 0, %s298
      %s300 = sphi 0, %s298
      %s301 = sphi 0, %s300
      %s315 = sphi 0, %s301
      %s319 = sphi 0, %s319
      %s321 = sphi 0, %s319
      %s322 = sphi 0, %s321
      %s336 = sphi 0, %s322
      %s340 = sphi 0, %s340
      %s342 = sphi 0, %s340
      %s343 = sphi 0, %s342
      %s357 = sphi 0, %s343
      %s361 = sphi 0, %s361
      %s363 = sphi 0, %s361
      %s364 = sphi 0, %s363
      %s378 = sphi 0, %s364
      %s382 = sphi 0, %s382
      %s384 = sphi 0, %s382
      %s385 = sphi 0, %s384
      %s399 = sphi 0, %s385
      %s405 = sphi 0, %s407
      %s408 = sphi 0, %s405
      %s409 = sphi 0, %s408
      %s425 = sphi 0, %s409
    $region4: #{_seq2seq_forward_jit.3} parent=1 // loop_header_branch
      %36 = sbr.rel (%p34) target = $region8
    $region5: #{_seq2seq_forward_jit.3} parent=1 // loop_body
      %s38 = ssub.s32 %s33, 1
      %s39 = ssub.s32 %s33, 2
      %s40 = sadd.s32 %s33, 1
      %s41 = ssub.s32 %s33, %s40
      %p42 = scmp.eq.s32.totalorder %s41, 0
      %s44 = sadd.s32 %s43, 1
      %s45 = scalar_select %p42, %s43, %s44
      %p48 = pneg %p42
      %p49 = scmp.eq.s32.totalorder %s33, 7
      %p50 = por %p48, %p49
      %p51 = scmp.ne.s32.totalorder %s43, %s46
      %p52 = scmp.eq.s32.totalorder %s33, 0
      %p53 = por %p51, %p52
      %p54 = scmp.ne.s32.totalorder %s43, %s46
      %p55 = scmp.eq.s32.totalorder %s38, 7
      %p56 = por %p54, %p55
      %p57 = scmp.ne.s32.totalorder %s46, %s47
      %p58 = scmp.eq.s32.totalorder %s38, 0
      %p59 = por %p57, %p58
      %p60 = scmp.ne.s32.totalorder %s46, %s47
      %p61 = scmp.eq.s32.totalorder %s39, 7
      %p62 = por %p60, %p61
      %p64 = scmp.ne.s32.totalorder %s47, %s63
      %p65 = scmp.eq.s32.totalorder %s39, 0
      %p66 = por %p64, %p65
      %s68 = sadd.s32 %s67, 1
      %p71 = scmp.eq.s32.totalorder %s33, 7
      %p72 = scmp.ne.s32.totalorder %s67, %s69
      %p73 = scmp.eq.s32.totalorder %s33, 0
      %p74 = por %p72, %p73
      %p75 = scmp.ne.s32.totalorder %s67, %s69
      %p76 = scmp.eq.s32.totalorder %s38, 7
      %p77 = por %p75, %p76
      %p78 = scmp.ne.s32.totalorder %s69, %s70
      %p79 = scmp.eq.s32.totalorder %s38, 0
      %p80 = por %p78, %p79
      %p81 = scmp.ne.s32.totalorder %s69, %s70
      %p82 = scmp.eq.s32.totalorder %s39, 7
      %p83 = por %p81, %p82
      %p85 = scmp.ne.s32.totalorder %s70, %s84
      %p86 = scmp.eq.s32.totalorder %s39, 0
      %p87 = por %p85, %p86
      %s89 = sadd.s32 %s88, 1
      %p92 = scmp.eq.s32.totalorder %s33, 7
      %p93 = scmp.ne.s32.totalorder %s88, %s90
      %p94 = scmp.eq.s32.totalorder %s33, 0
      %p95 = por %p93, %p94
      %p96 = scmp.ne.s32.totalorder %s88, %s90
      %p97 = scmp.eq.s32.totalorder %s38, 7
      %p98 = por %p96, %p97
      %p99 = scmp.ne.s32.totalorder %s90, %s91
      %p100 = scmp.eq.s32.totalorder %s38, 0
      %p101 = por %p99, %p100
      %p102 = scmp.ne.s32.totalorder %s90, %s91
      %p103 = scmp.eq.s32.totalorder %s39, 7
      %p104 = por %p102, %p103
      %p106 = scmp.ne.s32.totalorder %s91, %s105
      %p107 = scmp.eq.s32.totalorder %s39, 0
      %p108 = por %p106, %p107
      %s110 = sadd.s32 %s109, 1
      %p113 = scmp.eq.s32.totalorder %s33, 7
      %p114 = scmp.ne.s32.totalorder %s109, %s111
      %p115 = scmp.eq.s32.totalorder %s33, 0
      %p116 = por %p114, %p115
      %p117 = scmp.ne.s32.totalorder %s109, %s111
      %p118 = scmp.eq.s32.totalorder %s38, 7
      %p119 = por %p117, %p118
      %p120 = scmp.ne.s32.totalorder %s111, %s112
      %p121 = scmp.eq.s32.totalorder %s38, 0
      %p122 = por %p120, %p121
      %p123 = scmp.ne.s32.totalorder %s111, %s112
      %p124 = scmp.eq.s32.totalorder %s39, 7
      %p125 = por %p123, %p124
      %p127 = scmp.ne.s32.totalorder %s112, %s126
      %p128 = scmp.eq.s32.totalorder %s39, 0
      %p129 = por %p127, %p128
      %s131 = sadd.s32 %s130, 1
      %p134 = scmp.eq.s32.totalorder %s33, 7
      %p135 = scmp.ne.s32.totalorder %s130, %s132
      %p136 = scmp.eq.s32.totalorder %s33, 0
      %p137 = por %p135, %p136
      %p138 = scmp.ne.s32.totalorder %s130, %s132
      %p139 = scmp.eq.s32.totalorder %s38, 7
      %p140 = por %p138, %p139
      %p141 = scmp.ne.s32.totalorder %s132, %s133
      %p142 = scmp.eq.s32.totalorder %s38, 0
      %p143 = por %p141, %p142
      %p144 = scmp.ne.s32.totalorder %s132, %s133
      %p145 = scmp.eq.s32.totalorder %s39, 7
      %p146 = por %p144, %p145
      %p148 = scmp.ne.s32.totalorder %s133, %s147
      %p149 = scmp.eq.s32.totalorder %s39, 0
      %p150 = por %p148, %p149
      %s152 = sadd.s32 %s151, 1
      %p155 = scmp.eq.s32.totalorder %s33, 7
      %p156 = scmp.ne.s32.totalorder %s151, %s153
      %p157 = scmp.eq.s32.totalorder %s33, 0
      %p158 = por %p156, %p157
      %p159 = scmp.ne.s32.totalorder %s151, %s153
      %p160 = scmp.eq.s32.totalorder %s38, 7
      %p161 = por %p159, %p160
      %p162 = scmp.ne.s32.totalorder %s153, %s154
      %p163 = scmp.eq.s32.totalorder %s38, 0
      %p164 = por %p162, %p163
      %p165 = scmp.ne.s32.totalorder %s153, %s154
      %p166 = scmp.eq.s32.totalorder %s39, 7
      %p167 = por %p165, %p166
      %p169 = scmp.ne.s32.totalorder %s154, %s168
      %p170 = scmp.eq.s32.totalorder %s39, 0
      %p171 = por %p169, %p170
      %s173 = sadd.s32 %s172, 1
      %p176 = scmp.eq.s32.totalorder %s33, 7
      %p177 = scmp.ne.s32.totalorder %s172, %s174
      %p178 = scmp.eq.s32.totalorder %s33, 0
      %p179 = por %p177, %p178
      %p180 = scmp.ne.s32.totalorder %s172, %s174
      %p181 = scmp.eq.s32.totalorder %s38, 7
      %p182 = por %p180, %p181
      %p183 = scmp.ne.s32.totalorder %s174, %s175
      %p184 = scmp.eq.s32.totalorder %s38, 0
      %p185 = por %p183, %p184
      %p186 = scmp.ne.s32.totalorder %s174, %s175
      %p187 = scmp.eq.s32.totalorder %s39, 7
      %p188 = por %p186, %p187
      %p190 = scmp.ne.s32.totalorder %s175, %s189
      %p191 = scmp.eq.s32.totalorder %s39, 0
      %p192 = por %p190, %p191
      %s194 = sadd.s32 %s193, 1
      %p197 = scmp.eq.s32.totalorder %s33, 7
      %p198 = scmp.ne.s32.totalorder %s193, %s195
      %p199 = scmp.eq.s32.totalorder %s33, 0
      %p200 = por %p198, %p199
      %p201 = scmp.ne.s32.totalorder %s193, %s195
      %p202 = scmp.eq.s32.totalorder %s38, 7
      %p203 = por %p201, %p202
      %p204 = scmp.ne.s32.totalorder %s195, %s196
      %p205 = scmp.eq.s32.totalorder %s38, 0
      %p206 = por %p204, %p205
      %p207 = scmp.ne.s32.totalorder %s195, %s196
      %p208 = scmp.eq.s32.totalorder %s39, 7
      %p209 = por %p207, %p208
      %p211 = scmp.ne.s32.totalorder %s196, %s210
      %p212 = scmp.eq.s32.totalorder %s39, 0
      %p213 = por %p211, %p212
      %s215 = sadd.s32 %s214, 1
      %p218 = scmp.eq.s32.totalorder %s33, 7
      %p219 = scmp.ne.s32.totalorder %s214, %s216
      %p220 = scmp.eq.s32.totalorder %s33, 0
      %p221 = por %p219, %p220
      %p222 = scmp.ne.s32.totalorder %s214, %s216
      %p223 = scmp.eq.s32.totalorder %s38, 7
      %p224 = por %p222, %p223
      %p225 = scmp.ne.s32.totalorder %s216, %s217
      %p226 = scmp.eq.s32.totalorder %s38, 0
      %p227 = por %p225, %p226
      %p228 = scmp.ne.s32.totalorder %s216, %s217
      %p229 = scmp.eq.s32.totalorder %s39, 7
      %p230 = por %p228, %p229
      %p232 = scmp.ne.s32.totalorder %s217, %s231
      %p233 = scmp.eq.s32.totalorder %s39, 0
      %p234 = por %p232, %p233
      %s236 = sadd.s32 %s235, 1
      %p239 = scmp.eq.s32.totalorder %s33, 7
      %p240 = scmp.ne.s32.totalorder %s235, %s237
      %p241 = scmp.eq.s32.totalorder %s33, 0
      %p242 = por %p240, %p241
      %p243 = scmp.ne.s32.totalorder %s235, %s237
      %p244 = scmp.eq.s32.totalorder %s38, 7
      %p245 = por %p243, %p244
      %p246 = scmp.ne.s32.totalorder %s237, %s238
      %p247 = scmp.eq.s32.totalorder %s38, 0
      %p248 = por %p246, %p247
      %p249 = scmp.ne.s32.totalorder %s237, %s238
      %p250 = scmp.eq.s32.totalorder %s39, 7
      %p251 = por %p249, %p250
      %p253 = scmp.ne.s32.totalorder %s238, %s252
      %p254 = scmp.eq.s32.totalorder %s39, 0
      %p255 = por %p253, %p254
      %s257 = sadd.s32 %s256, 1
      %p260 = scmp.eq.s32.totalorder %s33, 7
      %p261 = scmp.ne.s32.totalorder %s256, %s258
      %p262 = scmp.eq.s32.totalorder %s33, 0
      %p263 = por %p261, %p262
      %p264 = scmp.ne.s32.totalorder %s256, %s258
      %p265 = scmp.eq.s32.totalorder %s38, 7
      %p266 = por %p264, %p265
      %p267 = scmp.ne.s32.totalorder %s258, %s259
      %p268 = scmp.eq.s32.totalorder %s38, 0
      %p269 = por %p267, %p268
      %p270 = scmp.ne.s32.totalorder %s258, %s259
      %p271 = scmp.eq.s32.totalorder %s39, 7
      %p272 = por %p270, %p271
      %p274 = scmp.ne.s32.totalorder %s259, %s273
      %p275 = scmp.eq.s32.totalorder %s39, 0
      %p276 = por %p274, %p275
      %s278 = sadd.s32 %s277, 1
      %p281 = scmp.eq.s32.totalorder %s33, 7
      %p282 = scmp.ne.s32.totalorder %s277, %s279
      %p283 = scmp.eq.s32.totalorder %s33, 0
      %p284 = por %p282, %p283
      %p285 = scmp.ne.s32.totalorder %s277, %s279
      %p286 = scmp.eq.s32.totalorder %s38, 7
      %p287 = por %p285, %p286
      %p288 = scmp.ne.s32.totalorder %s279, %s280
      %p289 = scmp.eq.s32.totalorder %s38, 0
      %p290 = por %p288, %p289
      %p291 = scmp.ne.s32.totalorder %s279, %s280
      %p292 = scmp.eq.s32.totalorder %s39, 7
      %p293 = por %p291, %p292
      %p295 = scmp.ne.s32.totalorder %s280, %s294
      %p296 = scmp.eq.s32.totalorder %s39, 0
      %p297 = por %p295, %p296
      %s299 = sadd.s32 %s298, 1
      %p302 = scmp.eq.s32.totalorder %s33, 7
      %p303 = scmp.ne.s32.totalorder %s298, %s300
      %p304 = scmp.eq.s32.totalorder %s33, 0
      %p305 = por %p303, %p304
      %p306 = scmp.ne.s32.totalorder %s298, %s300
      %p307 = scmp.eq.s32.totalorder %s38, 7
      %p308 = por %p306, %p307
      %p309 = scmp.ne.s32.totalorder %s300, %s301
      %p310 = scmp.eq.s32.totalorder %s38, 0
      %p311 = por %p309, %p310
      %p312 = scmp.ne.s32.totalorder %s300, %s301
      %p313 = scmp.eq.s32.totalorder %s39, 7
      %p314 = por %p312, %p313
      %p316 = scmp.ne.s32.totalorder %s301, %s315
      %p317 = scmp.eq.s32.totalorder %s39, 0
      %p318 = por %p316, %p317
      %s320 = sadd.s32 %s319, 1
      %p323 = scmp.eq.s32.totalorder %s33, 7
      %p324 = scmp.ne.s32.totalorder %s319, %s321
      %p325 = scmp.eq.s32.totalorder %s33, 0
      %p326 = por %p324, %p325
      %p327 = scmp.ne.s32.totalorder %s319, %s321
      %p328 = scmp.eq.s32.totalorder %s38, 7
      %p329 = por %p327, %p328
      %p330 = scmp.ne.s32.totalorder %s321, %s322
      %p331 = scmp.eq.s32.totalorder %s38, 0
      %p332 = por %p330, %p331
      %p333 = scmp.ne.s32.totalorder %s321, %s322
      %p334 = scmp.eq.s32.totalorder %s39, 7
      %p335 = por %p333, %p334
      %p337 = scmp.ne.s32.totalorder %s322, %s336
      %p338 = scmp.eq.s32.totalorder %s39, 0
      %p339 = por %p337, %p338
      %s341 = sadd.s32 %s340, 1
      %p344 = scmp.eq.s32.totalorder %s33, 7
      %p345 = scmp.ne.s32.totalorder %s340, %s342
      %p346 = scmp.eq.s32.totalorder %s33, 0
      %p347 = por %p345, %p346
      %p348 = scmp.ne.s32.totalorder %s340, %s342
      %p349 = scmp.eq.s32.totalorder %s38, 7
      %p350 = por %p348, %p349
      %p351 = scmp.ne.s32.totalorder %s342, %s343
      %p352 = scmp.eq.s32.totalorder %s38, 0
      %p353 = por %p351, %p352
      %p354 = scmp.ne.s32.totalorder %s342, %s343
      %p355 = scmp.eq.s32.totalorder %s39, 7
      %p356 = por %p354, %p355
      %p358 = scmp.ne.s32.totalorder %s343, %s357
      %p359 = scmp.eq.s32.totalorder %s39, 0
      %p360 = por %p358, %p359
      %s362 = sadd.s32 %s361, 1
      %p365 = scmp.eq.s32.totalorder %s33, 7
      %p366 = scmp.ne.s32.totalorder %s361, %s363
      %p367 = scmp.eq.s32.totalorder %s33, 0
      %p368 = por %p366, %p367
      %p369 = scmp.ne.s32.totalorder %s361, %s363
      %p370 = scmp.eq.s32.totalorder %s38, 7
      %p371 = por %p369, %p370
      %p372 = scmp.ne.s32.totalorder %s363, %s364
      %p373 = scmp.eq.s32.totalorder %s38, 0
      %p374 = por %p372, %p373
      %p375 = scmp.ne.s32.totalorder %s363, %s364
      %p376 = scmp.eq.s32.totalorder %s39, 7
      %p377 = por %p375, %p376
      %p379 = scmp.ne.s32.totalorder %s364, %s378
      %p380 = scmp.eq.s32.totalorder %s39, 0
      %p381 = por %p379, %p380
      %s383 = sadd.s32 %s382, 1
      %p386 = scmp.eq.s32.totalorder %s33, 7
      %p387 = scmp.ne.s32.totalorder %s382, %s384
      %p388 = scmp.eq.s32.totalorder %s33, 0
      %p389 = por %p387, %p388
      %p390 = scmp.ne.s32.totalorder %s382, %s384
      %p391 = scmp.eq.s32.totalorder %s38, 7
      %p392 = por %p390, %p391
      %p393 = scmp.ne.s32.totalorder %s384, %s385
      %p394 = scmp.eq.s32.totalorder %s38, 0
      %p395 = por %p393, %p394
      %p396 = scmp.ne.s32.totalorder %s384, %s385
      %p397 = scmp.eq.s32.totalorder %s39, 7
      %p398 = por %p396, %p397
      %p400 = scmp.ne.s32.totalorder %s385, %s399
      %p401 = scmp.eq.s32.totalorder %s39, 0
      %p402 = por %p400, %p401
      %s403 = ssub.s32 %s33, %s40
      %p404 = scmp.eq.s32.totalorder %s403, 0
      %s406 = sadd.s32 %s405, 1
      %s407 = scalar_select %p404, %s405, %s406
      %p410 = pneg %p404
      %p411 = scmp.eq.s32.totalorder %s33, 7
      %p412 = por %p410, %p411
      %p413 = scmp.ne.s32.totalorder %s405, %s408
      %p414 = scmp.eq.s32.totalorder %s33, 0
      %p415 = por %p413, %p414
      %p416 = scmp.ne.s32.totalorder %s405, %s408
      %p417 = scmp.eq.s32.totalorder %s38, 7
      %p418 = por %p416, %p417
      %p419 = scmp.ne.s32.totalorder %s408, %s409
      %p420 = scmp.eq.s32.totalorder %s38, 0
      %p421 = por %p419, %p420
      %p422 = scmp.ne.s32.totalorder %s408, %s409
      %p423 = scmp.eq.s32.totalorder %s39, 7
      %p424 = por %p422, %p423
      %p426 = scmp.ne.s32.totalorder %s409, %s425
      %p427 = scmp.eq.s32.totalorder %s39, 0
      %p428 = por %p426, %p427
      %p429 = scmp.le.s32.totalorder 1, %s33
      %p430 = scmp.lt.s32.totalorder %s33, 9
      %p431 = pnand %p429, %p430
      %p432 = pneg %p431
      // Predicated region
      $region9: #{_seq2seq_forward_jit.3} parent=5 // pred_check
        _
      $region10: #{_seq2seq_forward_jit.3} parent=5 // pred_check_branch
        %434 = sbr.rel (%p431) target = $region12
      $region11: #{_seq2seq_forward_jit.3} parent=5 // pred_region
        %s435 = ssub.s32 %s33, 1
        // Predicated region
        $region13: #{_seq2seq_forward_jit.3} parent=11 // pred_check
          %p436 = pneg %p80
        $region14: #{_seq2seq_forward_jit.3} parent=11 // pred_check_branch
          %438 = sbr.rel (%p436) target = $region16
        $region15: #{_seq2seq_forward_jit.3} parent=11 // pred_region
          _
        $region16: #{_seq2seq_forward_jit.3} parent=11 // pred_fallthru
          _
        // Predicated region
        $region17: #{_seq2seq_forward_jit.3} parent=11 // pred_check
          %p439 = pneg %p101
        $region18: #{_seq2seq_forward_jit.3} parent=11 // pred_check_branch
          %441 = sbr.rel (%p439) target = $region20
        $region19: #{_seq2seq_forward_jit.3} parent=11 // pred_region
          _
        $region20: #{_seq2seq_forward_jit.3} parent=11 // pred_fallthru
          _
        // Predicated region
        $region21: #{_seq2seq_forward_jit.3} parent=11 // pred_check
          %p442 = pneg %p122
        $region22: #{_seq2seq_forward_jit.3} parent=11 // pred_check_branch
          %444 = sbr.rel (%p442) target = $region24
        $region23: #{_seq2seq_forward_jit.3} parent=11 // pred_region
          _
        $region24: #{_seq2seq_forward_jit.3} parent=11 // pred_fallthru
          _
        // Predicated region
        $region25: #{_seq2seq_forward_jit.3} parent=11 // pred_check
          %p445 = pneg %p143
        $region26: #{_seq2seq_forward_jit.3} parent=11 // pred_check_branch
          %447 = sbr.rel (%p445) target = $region28
        $region27: #{_seq2seq_forward_jit.3} parent=11 // pred_region
          _
        $region28: #{_seq2seq_forward_jit.3} parent=11 // pred_fallthru
          _
        // Predicated region
        $region29: #{_seq2seq_forward_jit.3} parent=11 // pred_check
          %p448 = pneg %p164
        $region30: #{_seq2seq_forward_jit.3} parent=11 // pred_check_branch
          %450 = sbr.rel (%p448) target = $region32
        $region31: #{_seq2seq_forward_jit.3} parent=11 // pred_region
          _
        $region32: #{_seq2seq_forward_jit.3} parent=11 // pred_fallthru
          _
        // Predicated region
        $region33: #{_seq2seq_forward_jit.3} parent=11 // pred_check
          %p451 = pneg %p185
        $region34: #{_seq2seq_forward_jit.3} parent=11 // pred_check_branch
          %453 = sbr.rel (%p451) target = $region36
        $region35: #{_seq2seq_forward_jit.3} parent=11 // pred_region
          _
        $region36: #{_seq2seq_forward_jit.3} parent=11 // pred_fallthru
          _
        // Predicated region
        $region37: #{_seq2seq_forward_jit.3} parent=11 // pred_check
          %p454 = pneg %p206
        $region38: #{_seq2seq_forward_jit.3} parent=11 // pred_check_branch
          %456 = sbr.rel (%p454) target = $region40
        $region39: #{_seq2seq_forward_jit.3} parent=11 // pred_region
          _
        $region40: #{_seq2seq_forward_jit.3} parent=11 // pred_fallthru
          _
        // Predicated region
        $region41: #{_seq2seq_forward_jit.3} parent=11 // pred_check
          %p457 = pneg %p227
        $region42: #{_seq2seq_forward_jit.3} parent=11 // pred_check_branch
          %459 = sbr.rel (%p457) target = $region44
        $region43: #{_seq2seq_forward_jit.3} parent=11 // pred_region
          _
        $region44: #{_seq2seq_forward_jit.3} parent=11 // pred_fallthru
          _
        // Predicated region
        $region45: #{_seq2seq_forward_jit.3} parent=11 // pred_check
          %p460 = pneg %p248
        $region46: #{_seq2seq_forward_jit.3} parent=11 // pred_check_branch
          %462 = sbr.rel (%p460) target = $region48
        $region47: #{_seq2seq_forward_jit.3} parent=11 // pred_region
          _
        $region48: #{_seq2seq_forward_jit.3} parent=11 // pred_fallthru
          _
        // Predicated region
        $region49: #{_seq2seq_forward_jit.3} parent=11 // pred_check
          %p463 = pneg %p269
        $region50: #{_seq2seq_forward_jit.3} parent=11 // pred_check_branch
          %465 = sbr.rel (%p463) target = $region52
        $region51: #{_seq2seq_forward_jit.3} parent=11 // pred_region
          _
        $region52: #{_seq2seq_forward_jit.3} parent=11 // pred_fallthru
          _
        // Predicated region
        $region53: #{_seq2seq_forward_jit.3} parent=11 // pred_check
          %p466 = pneg %p290
        $region54: #{_seq2seq_forward_jit.3} parent=11 // pred_check_branch
          %468 = sbr.rel (%p466) target = $region56
        $region55: #{_seq2seq_forward_jit.3} parent=11 // pred_region
          _
        $region56: #{_seq2seq_forward_jit.3} parent=11 // pred_fallthru
          _
        // Predicated region
        $region57: #{_seq2seq_forward_jit.3} parent=11 // pred_check
          %p469 = pneg %p311
        $region58: #{_seq2seq_forward_jit.3} parent=11 // pred_check_branch
          %471 = sbr.rel (%p469) target = $region60
        $region59: #{_seq2seq_forward_jit.3} parent=11 // pred_region
          _
        $region60: #{_seq2seq_forward_jit.3} parent=11 // pred_fallthru
          _
        // Predicated region
        $region61: #{_seq2seq_forward_jit.3} parent=11 // pred_check
          %p472 = pneg %p332
        $region62: #{_seq2seq_forward_jit.3} parent=11 // pred_check_branch
          %474 = sbr.rel (%p472) target = $region64
        $region63: #{_seq2seq_forward_jit.3} parent=11 // pred_region
          _
        $region64: #{_seq2seq_forward_jit.3} parent=11 // pred_fallthru
          _
        // Predicated region
        $region65: #{_seq2seq_forward_jit.3} parent=11 // pred_check
          %p475 = pneg %p353
        $region66: #{_seq2seq_forward_jit.3} parent=11 // pred_check_branch
          %477 = sbr.rel (%p475) target = $region68
        $region67: #{_seq2seq_forward_jit.3} parent=11 // pred_region
          _
        $region68: #{_seq2seq_forward_jit.3} parent=11 // pred_fallthru
          _
        // Predicated region
        $region69: #{_seq2seq_forward_jit.3} parent=11 // pred_check
          %p478 = pneg %p374
        $region70: #{_seq2seq_forward_jit.3} parent=11 // pred_check_branch
          %480 = sbr.rel (%p478) target = $region72
        $region71: #{_seq2seq_forward_jit.3} parent=11 // pred_region
          _
        $region72: #{_seq2seq_forward_jit.3} parent=11 // pred_fallthru
          _
        // Predicated region
        $region73: #{_seq2seq_forward_jit.3} parent=11 // pred_check
          %p481 = pneg %p395
        $region74: #{_seq2seq_forward_jit.3} parent=11 // pred_check_branch
          %483 = sbr.rel (%p481) target = $region76
        $region75: #{_seq2seq_forward_jit.3} parent=11 // pred_region
          _
        $region76: #{_seq2seq_forward_jit.3} parent=11 // pred_fallthru
          _
      $region12: #{_seq2seq_forward_jit.3} parent=5 // pred_fallthru
        _
      %p484 = scmp.lt.s32.totalorder %s33, 8
      // Predicated region
      $region77: #{_seq2seq_forward_jit.3} parent=5 // pred_check
        %p485 = pneg %p484
      $region78: #{_seq2seq_forward_jit.3} parent=5 // pred_check_branch
        %487 = sbr.rel (%p485) target = $region80
      $region79: #{_seq2seq_forward_jit.3} parent=5 // pred_region
        // Predicated region
        $region81: #{_seq2seq_forward_jit.3} parent=79 // pred_check
          %p488 = pneg %p53
        $region82: #{_seq2seq_forward_jit.3} parent=79 // pred_check_branch
          %490 = sbr.rel (%p488) target = $region84
        $region83: #{_seq2seq_forward_jit.3} parent=79 // pred_region
          %p491 = scmp.lt.s32.totalorder %s33, 7
          %s492 = scalar_select %p491, %s33, 7
          %s493 = smul.addr %s492, 2
          %s494 = scalar_lea.vmem %s1, %s493
        $region84: #{_seq2seq_forward_jit.3} parent=79 // pred_fallthru
          _
      $region80: #{_seq2seq_forward_jit.3} parent=5 // pred_fallthru
        _
      %p495 = scmp.le.s32.totalorder 1, %s33
      %p496 = scmp.lt.s32.totalorder %s33, 9
      %p497 = pnand %p495, %p496
      %p498 = pneg %p497
      // Predicated region
      $region85: #{_seq2seq_forward_jit.3} parent=5 // pred_check
        _
      $region86: #{_seq2seq_forward_jit.3} parent=5 // pred_check_branch
        %500 = sbr.rel (%p497) target = $region88
      $region87: #{_seq2seq_forward_jit.3} parent=5 // pred_region
        %s501 = ssub.s32 %s33, 1
        %p502 = scmp.lt.s32.totalorder %s38, 7
        %s503 = scalar_select %p502, %s38, 7
        %s504 = smul.addr %s503, 2
        %s505 = scalar_lea.vmem %s1, %s504
        %p506 = pneg %p59
        %p507 = pneg %p56
        %p508 = pneg %p80
        %p509 = pneg %p77
        %p510 = pneg %p101
        %p511 = pneg %p98
        %p512 = pneg %p122
        %p513 = pneg %p119
        %p514 = pneg %p143
        %p515 = pneg %p140
        %p516 = pneg %p164
        %p517 = pneg %p161
        %p518 = pneg %p185
        %p519 = pneg %p182
        %p520 = pneg %p206
        %p521 = pneg %p203
        %p522 = pneg %p227
        %p523 = pneg %p224
        %p524 = pneg %p248
        %p525 = pneg %p245
        %p526 = pneg %p269
        %p527 = pneg %p266
        %p528 = pneg %p290
        %p529 = pneg %p287
        %p530 = pneg %p311
        %p531 = pneg %p308
        %p532 = pneg %p332
        %p533 = pneg %p329
        %p534 = pneg %p353
        %p535 = pneg %p350
        %p536 = pneg %p374
        %p537 = pneg %p371
        %p538 = pneg %p395
        %p539 = pneg %p392
        %p540 = pneg %p421
        %p541 = pneg %p418
        %s542 = sand.u32 %s408, 1
        %s543 = scalar_lea.sflag [#allocation7], %s542
        %s544 = sand.u32 %s408, 1
        %s545 = smul.addr %s544, 2
        %s546 = scalar_lea.vmem [#allocation6], %s545
        %p547 = scmp.lt.s32.totalorder %s38, 7
        %s548 = scalar_select %p547, %s38, 7
        %s549 = smul.addr %s548, 2
        %s550 = scalar_lea.vmem %s1, %s549
        %p551 = scmp.eq.s32.totalorder %s38, 0
        // Predicated region
        $region89: #{_seq2seq_forward_jit.3} parent=87 // pred_check
          %p552 = pneg %p551
        $region90: #{_seq2seq_forward_jit.3} parent=87 // pred_check_branch
          %554 = sbr.rel (%p552) target = $region92
        $region91: #{_seq2seq_forward_jit.3} parent=87 // pred_region
          %v555 = vld [vmem:[%s4] sm:$0x3]
          %vm556 = vcmask 254976
          %557 = vst.msk [vmem:[#allocation2] sm:$0x3] %vm556, %v555
          %v558 = vlaneseq
          %v559 = vand.u32 %v558, 127
          %vm560 = vcmp.eq.s32.totalorder %v559, 0
          %v561 = vsel %vm560, 1, 0
          %v562 = vcvt.s32.f32 %v561
          %vm563 = vcmask 123904
          %564 = vst.msk [vmem:[#allocation3] sm:$0x3] %vm563, %v562
        $region92: #{_seq2seq_forward_jit.3} parent=87 // pred_fallthru
          _
        %v565 = vld [vmem:[#allocation2] sm:$0x3]
        %v566 = vld [vmem:[#allocation3] sm:$0x3]
        %v567 = vld [vmem:[%s5] sm:$0xff]
        %v568 = vld [vmem:[%s5 + $0x8] sm:$0xff]
        %vm569 = vcmask 130048
        %v571 = vsel %vm569, %v566, 0
        %573 = vmatprep.subr.mxu0 0.0
        %574 = vmatpush1.msra.mxu0 %v567
        %575 = vmatprep.subr.mxu0 0.0
        %576 = vmatpush1.msra.mxu0 %v568
        %577 = vmatprep.subr.mxu0 0.0
        %578 = vmatpush1.msra.mxu0 0.0
        %579 = vmatprep.subr.mxu0 0.0
        %580 = vmatpush1.msra.mxu0 0.0
        %581 = vmatprep.subr.mxu0 0.0
        %582 = vmatpush1.msra.mxu0 0.0
        %583 = vmatprep.subr.mxu0 0.0
        %584 = vmatpush1.msra.mxu0 0.0
        %585 = vmatprep.subr.mxu0 0.0
        %586 = vmatpush1.msra.mxu0 0.0
        %587 = vmatprep.subr.mxu0 0.0
        %588 = vmatpush1.msra.mxu0 0.0
        %589 = vmatprep.subr.mxu0 0.0
        %590 = vmatpush1.msra.mxu0 0.0
        %591 = vmatprep.subr.mxu0 0.0
        %592 = vmatpush1.msra.mxu0 0.0
        %593 = vmatprep.subr.mxu0 0.0
        %594 = vmatpush1.msra.mxu0 0.0
        %595 = vmatprep.subr.mxu0 0.0
        %596 = vmatpush1.msra.mxu0 0.0
        %597 = vmatprep.subr.mxu0 0.0
        %598 = vmatpush1.msra.mxu0 0.0
        %599 = vmatprep.subr.mxu0 0.0
        %600 = vmatpush1.msra.mxu0 0.0
        %601 = vmatprep.subr.mxu0 0.0
        %602 = vmatpush1.msra.mxu0 0.0
        %603 = vmatprep.subr.mxu0 0.0
        %604 = vmatpush1.msra.mxu0 0.0
        %605 = vmatprep.subr.mxu0 0.0
        %606 = vmatpush1.msra.mxu0 0.0
        %607 = vmatprep.subr.mxu0 0.0
        %608 = vmatpush1.msra.mxu0 0.0
        %609 = vmatprep.subr.mxu0 0.0
        %610 = vmatpush1.msra.mxu0 0.0
        %611 = vmatprep.subr.mxu0 0.0
        %612 = vmatpush1.msra.mxu0 0.0
        %613 = vmatprep.subr.mxu0 0.0
        %614 = vmatpush1.msra.mxu0 0.0
        %615 = vmatprep.subr.mxu0 0.0
        %616 = vmatpush1.msra.mxu0 0.0
        %617 = vmatprep.subr.mxu0 0.0
        %618 = vmatpush1.msra.mxu0 0.0
        %619 = vmatprep.subr.mxu0 0.0
        %620 = vmatpush1.msra.mxu0 0.0
        %621 = vmatprep.subr.mxu0 0.0
        %622 = vmatpush1.msra.mxu0 0.0
        %623 = vmatprep.subr.mxu0 0.0
        %624 = vmatpush1.msra.mxu0 0.0
        %625 = vmatprep.subr.mxu0 0.0
        %626 = vmatpush1.msra.mxu0 0.0
        %627 = vmatprep.subr.mxu0 0.0
        %628 = vmatpush1.msra.mxu0 0.0
        %629 = vmatprep.subr.mxu0 0.0
        %630 = vmatpush1.msra.mxu0 0.0
        %631 = vmatprep.subr.mxu0 0.0
        %632 = vmatpush1.msra.mxu0 0.0
        %633 = vmatprep.subr.mxu0 0.0
        %634 = vmatpush1.msra.mxu0 0.0
        %635 = vmatprep.subr.mxu0 0.0
        %636 = vmatpush1.msra.mxu0 0.0
        %637 = vmatprep.mubr.f32.mxu0 0.0
        %638 = vmatmul.mubr.f32.gmra.mrb[0].mxu0 %v571
        %v639 = vpop.f32.mrb[0].mxu0
        %v640 = vadd.f32 0.0, %v639
        %v641 = vpop.f32.mrb[0].mxu0
        %642 = vdwg.mxu0
        %v643 = vld [vmem:[%s6] sm:$0xff]
        %v644 = vld [vmem:[%s6 + $0x8] sm:$0xff]
        %v645 = vld [vmem:[%s6 + $0x10] sm:$0xff]
        %v646 = vld [vmem:[%s6 + $0x18] sm:$0xff]
        %v647 = vld [vmem:[%s7] sm:$0x1]
        %v649 = vlaneseq
        %v650 = vshrl.u32 %v649, 7
        %v651 = vsub.s32 0, %v650
        %v652 = vrot.slane %v647, %v651
        %vm654 = vcmask 261120
        %v656 = vsel %vm654, %v565, 0
        %658 = vmatprep.subr.mxu0 0.0
        %659 = vmatpush1.msra.mxu0 %v643
        %660 = vmatprep.subr.mxu0 0.0
        %661 = vmatpush1.msra.mxu0 %v644
        %662 = vmatprep.subr.mxu0 0.0
        %663 = vmatpush1.msra.mxu0 %v645
        %664 = vmatprep.subr.mxu0 0.0
        %665 = vmatpush1.msra.mxu0 %v646
        %666 = vmatprep.subr.mxu0 0.0
        %667 = vmatpush1.msra.mxu0 0.0
        %668 = vmatprep.subr.mxu0 0.0
        %669 = vmatpush1.msra.mxu0 0.0
        %670 = vmatprep.subr.mxu0 0.0
        %671 = vmatpush1.msra.mxu0 0.0
        %672 = vmatprep.subr.mxu0 0.0
        %673 = vmatpush1.msra.mxu0 0.0
        %674 = vmatprep.subr.mxu0 0.0
        %675 = vmatpush1.msra.mxu0 0.0
        %676 = vmatprep.subr.mxu0 0.0
        %677 = vmatpush1.msra.mxu0 0.0
        %678 = vmatprep.subr.mxu0 0.0
        %679 = vmatpush1.msra.mxu0 0.0
        %680 = vmatprep.subr.mxu0 0.0
        %681 = vmatpush1.msra.mxu0 0.0
        %682 = vmatprep.subr.mxu0 0.0
        %683 = vmatpush1.msra.mxu0 0.0
        %684 = vmatprep.subr.mxu0 0.0
        %685 = vmatpush1.msra.mxu0 0.0
        %686 = vmatprep.subr.mxu0 0.0
        %687 = vmatpush1.msra.mxu0 0.0
        %688 = vmatprep.subr.mxu0 0.0
        %689 = vmatpush1.msra.mxu0 0.0
        %690 = vmatprep.subr.mxu0 0.0
        %691 = vmatpush1.msra.mxu0 0.0
        %692 = vmatprep.subr.mxu0 0.0
        %693 = vmatpush1.msra.mxu0 0.0
        %694 = vmatprep.subr.mxu0 0.0
        %695 = vmatpush1.msra.mxu0 0.0
        %696 = vmatprep.subr.mxu0 0.0
        %697 = vmatpush1.msra.mxu0 0.0
        %698 = vmatprep.subr.mxu0 0.0
        %699 = vmatpush1.msra.mxu0 0.0
        %700 = vmatprep.subr.mxu0 0.0
        %701 = vmatpush1.msra.mxu0 0.0
        %702 = vmatprep.subr.mxu0 0.0
        %703 = vmatpush1.msra.mxu0 0.0
        %704 = vmatprep.subr.mxu0 0.0
        %705 = vmatpush1.msra.mxu0 0.0
        %706 = vmatprep.subr.mxu0 0.0
        %707 = vmatpush1.msra.mxu0 0.0
        %708 = vmatprep.subr.mxu0 0.0
        %709 = vmatpush1.msra.mxu0 0.0
        %710 = vmatprep.subr.mxu0 0.0
        %711 = vmatpush1.msra.mxu0 0.0
        %712 = vmatprep.subr.mxu0 0.0
        %713 = vmatpush1.msra.mxu0 0.0
        %714 = vmatprep.subr.mxu0 0.0
        %715 = vmatpush1.msra.mxu0 0.0
        %716 = vmatprep.subr.mxu0 0.0
        %717 = vmatpush1.msra.mxu0 0.0
        %718 = vmatprep.subr.mxu0 0.0
        %719 = vmatpush1.msra.mxu0 0.0
        %720 = vmatprep.subr.mxu0 0.0
        %721 = vmatpush1.msra.mxu0 0.0
        %722 = vmatprep.mubr.f32.mxu0 0.0
        %723 = vmatmul.mubr.f32.gmra.mrb[0].mxu0 %v656
        %v724 = vpop.f32.mrb[0].mxu0
        %v725 = vadd.f32 %v652, %v724
        %v726 = vpop.f32.mrb[0].mxu0
        %727 = vdwg.mxu0
        %v728 = vld [vmem:[%s3] sm:$0x3]
        %v729 = vld [vmem:[%s3 + $0x2] sm:$0x3]
        %v730 = vld [vmem:[%s3 + $0x4] sm:$0x3]
        %v731 = vld [vmem:[%s3 + $0x6] sm:$0x3]
        %v732 = vld [vmem:[%s3 + $0x8] sm:$0x3]
        %v733 = vld [vmem:[%s3 + $0xa] sm:$0x3]
        %v734 = vld [vmem:[%s3 + $0xc] sm:$0x3]
        %v735 = vld [vmem:[%s3 + $0xe] sm:$0x3]
        %v736 = vadd.f32 %v728, %v725
        %v737 = vadd.f32 %v729, %v725
        %v738 = vadd.f32 %v730, %v725
        %v739 = vadd.f32 %v731, %v725
        %v740 = vadd.f32 %v732, %v725
        %v741 = vadd.f32 %v733, %v725
        %v742 = vadd.f32 %v734, %v725
        %v743 = vadd.f32 %v735, %v725
        %v744 = vtanh.pop %v736
        %v745 = vtanh.pop %v737
        %v746 = vtanh.pop %v738
        %v747 = vtanh.pop %v739
        %v748 = vtanh.pop %v740
        %v749 = vtanh.pop %v741
        %v750 = vtanh.pop %v742
        %v751 = vtanh.pop %v743
        %v752 = vld [vmem:[%s8] sm:$0x1]
        %v754 = vlaneseq
        %v755 = vshrl.u32 %v754, 7
        %v756 = vsub.s32 0, %v755
        %v757 = vrot.slane %v752, %v756
        %v759 = vmul.f32 %v744, %v757
        %v760 = vmul.f32 %v745, %v757
        %v761 = vmul.f32 %v746, %v757
        %v762 = vmul.f32 %v747, %v757
        %v763 = vmul.f32 %v748, %v757
        %v764 = vmul.f32 %v749, %v757
        %v765 = vmul.f32 %v750, %v757
        %v766 = vmul.f32 %v751, %v757
        %vm767 = vcmask 254976
        %v768 = vsel %vm767, %v759, 0.0
        %769 = vadd.xlane.f32.xlu0 %v768
        %v770 = vpop.xlane.xlu0 %769
        %v771 = vsel %vm767, %v760, 0.0
        %772 = vadd.xlane.f32.xlu0 %v771
        %v773 = vpop.xlane.xlu0 %772
        %v774 = vsel %vm767, %v761, 0.0
        %775 = vadd.xlane.f32.xlu0 %v774
        %v776 = vpop.xlane.xlu0 %775
        %v777 = vsel %vm767, %v762, 0.0
        %778 = vadd.xlane.f32.xlu0 %v777
        %v779 = vpop.xlane.xlu0 %778
        %v780 = vsel %vm767, %v763, 0.0
        %781 = vadd.xlane.f32.xlu0 %v780
        %v782 = vpop.xlane.xlu0 %781
        %v783 = vsel %vm767, %v764, 0.0
        %784 = vadd.xlane.f32.xlu0 %v783
        %v785 = vpop.xlane.xlu0 %784
        %v786 = vsel %vm767, %v765, 0.0
        %787 = vadd.xlane.f32.xlu0 %v786
        %v788 = vpop.xlane.xlu0 %787
        %v789 = vsel %vm767, %v766, 0.0
        %790 = vadd.xlane.f32.xlu0 %v789
        %v791 = vpop.xlane.xlu0 %790
        %vm792 = vcmask 1041408
        %v793 = vsel %vm792, %v770, -inf
        %v794 = vsel %vm792, %v773, -inf
        %v795 = vsel %vm792, %v776, -inf
        %v796 = vsel %vm792, %v779, -inf
        %v797 = vsel %vm792, %v782, -inf
        %v798 = vmax.f32 %v793, %v797
        %v799 = vsel %vm792, %v785, -inf
        %v800 = vmax.f32 %v794, %v799
        %v801 = vsel %vm792, %v788, -inf
        %v802 = vmax.f32 %v795, %v801
        %v803 = vsel %vm792, %v791, -inf
        %v804 = vmax.f32 %v796, %v803
        %v805 = vmax.f32 %v798, %v800
        %v806 = vmax.f32 %v802, %v804
        %v807 = vmax.f32 %v805, %v806
        %v808 = vsub.f32 %v770, %v807
        %v809 = vsub.f32 %v773, %v807
        %v810 = vsub.f32 %v776, %v807
        %v811 = vsub.f32 %v779, %v807
        %v812 = vsub.f32 %v782, %v807
        %v813 = vsub.f32 %v785, %v807
        %v814 = vsub.f32 %v788, %v807
        %v815 = vsub.f32 %v791, %v807
        %v816 = vmul.f32 %v808, 1.442695
        %v817 = vpow.pop %v816
        %v818 = vmul.f32 %v809, 1.442695
        %v819 = vpow.pop %v818
        %v820 = vmul.f32 %v810, 1.442695
        %v821 = vpow.pop %v820
        %v822 = vmul.f32 %v811, 1.442695
        %v823 = vpow.pop %v822
        %v824 = vmul.f32 %v812, 1.442695
        %v825 = vpow.pop %v824
        %v826 = vmul.f32 %v813, 1.442695
        %v827 = vpow.pop %v826
        %v828 = vmul.f32 %v814, 1.442695
        %v829 = vpow.pop %v828
        %v830 = vmul.f32 %v815, 1.442695
        %v831 = vpow.pop %v830
        %v832 = vsel %vm792, %v817, 0.0
        %v833 = vsel %vm792, %v819, 0.0
        %v834 = vadd.f32 %v832, %v833
        %v835 = vsel %vm792, %v821, 0.0
        %v836 = vadd.f32 %v834, %v835
        %v837 = vsel %vm792, %v823, 0.0
        %v838 = vadd.f32 %v836, %v837
        %v839 = vsel %vm792, %v825, 0.0
        %v840 = vadd.f32 %v838, %v839
        %v841 = vsel %vm792, %v827, 0.0
        %v842 = vadd.f32 %v840, %v841
        %v843 = vsel %vm792, %v829, 0.0
        %v844 = vadd.f32 %v842, %v843
        %v845 = vsel %vm792, %v831, 0.0
        %v846 = vadd.f32 %v844, %v845
        %v847 = vrcp.pop %v846
        %v848 = vmul.f32 %v817, %v847
        %v849 = vmul.f32 %v819, %v847
        %v850 = vmul.f32 %v821, %v847
        %v851 = vmul.f32 %v823, %v847
        %v852 = vmul.f32 %v825, %v847
        %v853 = vmul.f32 %v827, %v847
        %v854 = vmul.f32 %v829, %v847
        %v855 = vmul.f32 %v831, %v847
        %v856 = vld [vmem:[%s2] sm:$0x3]
        %v857 = vld [vmem:[%s2 + $0x2] sm:$0x3]
        %v858 = vld [vmem:[%s2 + $0x4] sm:$0x3]
        %v859 = vld [vmem:[%s2 + $0x6] sm:$0x3]
        %v860 = vld [vmem:[%s2 + $0x8] sm:$0x3]
        %v861 = vld [vmem:[%s2 + $0xa] sm:$0x3]
        %v862 = vld [vmem:[%s2 + $0xc] sm:$0x3]
        %v863 = vld [vmem:[%s2 + $0xe] sm:$0x3]
        %v864 = vmul.f32 %v848, %v856
        %v865 = vmul.f32 %v849, %v857
        %v866 = vmul.f32 %v850, %v858
        %v867 = vmul.f32 %v851, %v859
        %v868 = vmul.f32 %v852, %v860
        %v869 = vmul.f32 %v853, %v861
        %v870 = vmul.f32 %v854, %v862
        %v871 = vmul.f32 %v855, %v863
        %v872 = vsel %vm767, %v864, 0.0
        %v873 = vsel %vm767, %v865, 0.0
        %v874 = vadd.f32 %v872, %v873
        %v875 = vsel %vm767, %v866, 0.0
        %v876 = vadd.f32 %v874, %v875
        %v877 = vsel %vm767, %v867, 0.0
        %v878 = vadd.f32 %v876, %v877
        %v879 = vsel %vm767, %v868, 0.0
        %v880 = vadd.f32 %v878, %v879
        %v881 = vsel %vm767, %v869, 0.0
        %v882 = vadd.f32 %v880, %v881
        %v883 = vsel %vm767, %v870, 0.0
        %v884 = vadd.f32 %v882, %v883
        %v885 = vsel %vm767, %v871, 0.0
        %v886 = vadd.f32 %v884, %v885
        %v887 = vld [vmem:[%s9] sm:$0xff]
        %v888 = vld [vmem:[%s9 + $0x8] sm:$0xff]
        %v889 = vld [vmem:[%s10] sm:$0xff]
        %v890 = vld [vmem:[%s10 + $0x8] sm:$0xff]
        %v891 = vld [vmem:[%s10 + $0x10] sm:$0xff]
        %v892 = vld [vmem:[%s10 + $0x18] sm:$0xff]
        %v894 = vsel %vm654, %v886, 0
        %896 = vmatprep.subr.mxu0 0.0
        %897 = vmatpush1.msra.mxu0 %v889
        %898 = vmatprep.subr.mxu0 0.0
        %899 = vmatpush1.msra.mxu0 %v890
        %900 = vmatprep.subr.mxu0 0.0
        %901 = vmatpush1.msra.mxu0 %v891
        %902 = vmatprep.subr.mxu0 0.0
        %903 = vmatpush1.msra.mxu0 %v892
        %904 = vmatprep.subr.mxu0 0.0
        %905 = vmatpush1.msra.mxu0 0.0
        %906 = vmatprep.subr.mxu0 0.0
        %907 = vmatpush1.msra.mxu0 0.0
        %908 = vmatprep.subr.mxu0 0.0
        %909 = vmatpush1.msra.mxu0 0.0
        %910 = vmatprep.subr.mxu0 0.0
        %911 = vmatpush1.msra.mxu0 0.0
        %912 = vmatprep.subr.mxu0 0.0
        %913 = vmatpush1.msra.mxu0 0.0
        %914 = vmatprep.subr.mxu0 0.0
        %915 = vmatpush1.msra.mxu0 0.0
        %916 = vmatprep.subr.mxu0 0.0
        %917 = vmatpush1.msra.mxu0 0.0
        %918 = vmatprep.subr.mxu0 0.0
        %919 = vmatpush1.msra.mxu0 0.0
        %920 = vmatprep.subr.mxu0 0.0
        %921 = vmatpush1.msra.mxu0 0.0
        %922 = vmatprep.subr.mxu0 0.0
        %923 = vmatpush1.msra.mxu0 0.0
        %924 = vmatprep.subr.mxu0 0.0
        %925 = vmatpush1.msra.mxu0 0.0
        %926 = vmatprep.subr.mxu0 0.0
        %927 = vmatpush1.msra.mxu0 0.0
        %928 = vmatprep.subr.mxu0 0.0
        %929 = vmatpush1.msra.mxu0 0.0
        %930 = vmatprep.subr.mxu0 0.0
        %931 = vmatpush1.msra.mxu0 0.0
        %932 = vmatprep.subr.mxu0 0.0
        %933 = vmatpush1.msra.mxu0 0.0
        %934 = vmatprep.subr.mxu0 0.0
        %935 = vmatpush1.msra.mxu0 0.0
        %936 = vmatprep.subr.mxu0 0.0
        %937 = vmatpush1.msra.mxu0 0.0
        %938 = vmatprep.subr.mxu0 0.0
        %939 = vmatpush1.msra.mxu0 0.0
        %940 = vmatprep.subr.mxu0 0.0
        %941 = vmatpush1.msra.mxu0 0.0
        %942 = vmatprep.subr.mxu0 0.0
        %943 = vmatpush1.msra.mxu0 0.0
        %944 = vmatprep.subr.mxu0 0.0
        %945 = vmatpush1.msra.mxu0 0.0
        %946 = vmatprep.subr.mxu0 0.0
        %947 = vmatpush1.msra.mxu0 0.0
        %948 = vmatprep.subr.mxu0 0.0
        %949 = vmatpush1.msra.mxu0 0.0
        %950 = vmatprep.subr.mxu0 0.0
        %951 = vmatpush1.msra.mxu0 0.0
        %952 = vmatprep.subr.mxu0 0.0
        %953 = vmatpush1.msra.mxu0 0.0
        %954 = vmatprep.subr.mxu0 0.0
        %955 = vmatpush1.msra.mxu0 0.0
        %956 = vmatprep.subr.mxu0 0.0
        %957 = vmatpush1.msra.mxu0 0.0
        %958 = vmatprep.subr.mxu0 0.0
        %959 = vmatpush1.msra.mxu0 0.0
        %960 = vmatprep.mubr.f32.mxu0 0.0
        %961 = vmatmul.mubr.f32.gmra.mrb[0].mxu0 %v894
        %v962 = vpop.f32.mrb[0].mxu0
        %v963 = vadd.f32 0.0, %v962
        %v964 = vpop.f32.mrb[0].mxu0
        %965 = vdwg.mxu0
        %v967 = vsel %vm569, %v640, 0
        %969 = vmatprep.subr.mxu0 0.0
        %970 = vmatpush1.msra.mxu0 %v887
        %971 = vmatprep.subr.mxu0 0.0
        %972 = vmatpush1.msra.mxu0 %v888
        %973 = vmatprep.subr.mxu0 0.0
        %974 = vmatpush1.msra.mxu0 0.0
        %975 = vmatprep.subr.mxu0 0.0
        %976 = vmatpush1.msra.mxu0 0.0
        %977 = vmatprep.subr.mxu0 0.0
        %978 = vmatpush1.msra.mxu0 0.0
        %979 = vmatprep.subr.mxu0 0.0
        %980 = vmatpush1.msra.mxu0 0.0
        %981 = vmatprep.subr.mxu0 0.0
        %982 = vmatpush1.msra.mxu0 0.0
        %983 = vmatprep.subr.mxu0 0.0
        %984 = vmatpush1.msra.mxu0 0.0
        %985 = vmatprep.subr.mxu0 0.0
        %986 = vmatpush1.msra.mxu0 0.0
        %987 = vmatprep.subr.mxu0 0.0
        %988 = vmatpush1.msra.mxu0 0.0
        %989 = vmatprep.subr.mxu0 0.0
        %990 = vmatpush1.msra.mxu0 0.0
        %991 = vmatprep.subr.mxu0 0.0
        %992 = vmatpush1.msra.mxu0 0.0
        %993 = vmatprep.subr.mxu0 0.0
        %994 = vmatpush1.msra.mxu0 0.0
        %995 = vmatprep.subr.mxu0 0.0
        %996 = vmatpush1.msra.mxu0 0.0
        %997 = vmatprep.subr.mxu0 0.0
        %998 = vmatpush1.msra.mxu0 0.0
        %999 = vmatprep.subr.mxu0 0.0
        %1000 = vmatpush1.msra.mxu0 0.0
        %1001 = vmatprep.subr.mxu0 0.0
        %1002 = vmatpush1.msra.mxu0 0.0
        %1003 = vmatprep.subr.mxu0 0.0
        %1004 = vmatpush1.msra.mxu0 0.0
        %1005 = vmatprep.subr.mxu0 0.0
        %1006 = vmatpush1.msra.mxu0 0.0
        %1007 = vmatprep.subr.mxu0 0.0
        %1008 = vmatpush1.msra.mxu0 0.0
        %1009 = vmatprep.subr.mxu0 0.0
        %1010 = vmatpush1.msra.mxu0 0.0
        %1011 = vmatprep.subr.mxu0 0.0
        %1012 = vmatpush1.msra.mxu0 0.0
        %1013 = vmatprep.subr.mxu0 0.0
        %1014 = vmatpush1.msra.mxu0 0.0
        %1015 = vmatprep.subr.mxu0 0.0
        %1016 = vmatpush1.msra.mxu0 0.0
        %1017 = vmatprep.subr.mxu0 0.0
        %1018 = vmatpush1.msra.mxu0 0.0
        %1019 = vmatprep.subr.mxu0 0.0
        %1020 = vmatpush1.msra.mxu0 0.0
        %1021 = vmatprep.subr.mxu0 0.0
        %1022 = vmatpush1.msra.mxu0 0.0
        %1023 = vmatprep.subr.mxu0 0.0
        %1024 = vmatpush1.msra.mxu0 0.0
        %1025 = vmatprep.subr.mxu0 0.0
        %1026 = vmatpush1.msra.mxu0 0.0
        %1027 = vmatprep.subr.mxu0 0.0
        %1028 = vmatpush1.msra.mxu0 0.0
        %1029 = vmatprep.subr.mxu0 0.0
        %1030 = vmatpush1.msra.mxu0 0.0
        %1031 = vmatprep.subr.mxu0 0.0
        %1032 = vmatpush1.msra.mxu0 0.0
        %1033 = vmatprep.mubr.f32.mxu0 0.0
        %1034 = vmatmul.mubr.f32.gmra.mrb[0].mxu0 %v967
        %v1035 = vpop.f32.mrb[0].mxu0
        %v1036 = vadd.f32 %v963, %v1035
        %v1037 = vpop.f32.mrb[0].mxu0
        %1038 = vdwg.mxu0
        %v1039 = vld [vmem:[%s12] sm:$0x1]
        %v1041 = vlaneseq
        %v1042 = vshrl.u32 %v1041, 7
        %v1043 = vsub.s32 0, %v1042
        %v1044 = vrot.slane %v1039, %v1043
        %v1046 = vadd.f32 %v1036, %v1044
        %v1047 = vld [vmem:[%s11] sm:$0xff]
        %v1048 = vld [vmem:[%s11 + $0x8] sm:$0xff]
        %v1049 = vld [vmem:[%s11 + $0x10] sm:$0xff]
        %v1050 = vld [vmem:[%s11 + $0x18] sm:$0xff]
        %v1051 = vld [vmem:[%s13] sm:$0x1]
        %v1053 = vlaneseq
        %v1054 = vshrl.u32 %v1053, 7
        %v1055 = vsub.s32 0, %v1054
        %v1056 = vrot.slane %v1051, %v1055
        %1058 = vmatprep.subr.mxu0 0.0
        %1059 = vmatpush1.msra.mxu0 %v1047
        %1060 = vmatprep.subr.mxu0 0.0
        %1061 = vmatpush1.msra.mxu0 %v1048
        %1062 = vmatprep.subr.mxu0 0.0
        %1063 = vmatpush1.msra.mxu0 %v1049
        %1064 = vmatprep.subr.mxu0 0.0
        %1065 = vmatpush1.msra.mxu0 %v1050
        %1066 = vmatprep.subr.mxu0 0.0
        %1067 = vmatpush1.msra.mxu0 0.0
        %1068 = vmatprep.subr.mxu0 0.0
        %1069 = vmatpush1.msra.mxu0 0.0
        %1070 = vmatprep.subr.mxu0 0.0
        %1071 = vmatpush1.msra.mxu0 0.0
        %1072 = vmatprep.subr.mxu0 0.0
        %1073 = vmatpush1.msra.mxu0 0.0
        %1074 = vmatprep.subr.mxu0 0.0
        %1075 = vmatpush1.msra.mxu0 0.0
        %1076 = vmatprep.subr.mxu0 0.0
        %1077 = vmatpush1.msra.mxu0 0.0
        %1078 = vmatprep.subr.mxu0 0.0
        %1079 = vmatpush1.msra.mxu0 0.0
        %1080 = vmatprep.subr.mxu0 0.0
        %1081 = vmatpush1.msra.mxu0 0.0
        %1082 = vmatprep.subr.mxu0 0.0
        %1083 = vmatpush1.msra.mxu0 0.0
        %1084 = vmatprep.subr.mxu0 0.0
        %1085 = vmatpush1.msra.mxu0 0.0
        %1086 = vmatprep.subr.mxu0 0.0
        %1087 = vmatpush1.msra.mxu0 0.0
        %1088 = vmatprep.subr.mxu0 0.0
        %1089 = vmatpush1.msra.mxu0 0.0
        %1090 = vmatprep.subr.mxu0 0.0
        %1091 = vmatpush1.msra.mxu0 0.0
        %1092 = vmatprep.subr.mxu0 0.0
        %1093 = vmatpush1.msra.mxu0 0.0
        %1094 = vmatprep.subr.mxu0 0.0
        %1095 = vmatpush1.msra.mxu0 0.0
        %1096 = vmatprep.subr.mxu0 0.0
        %1097 = vmatpush1.msra.mxu0 0.0
        %1098 = vmatprep.subr.mxu0 0.0
        %1099 = vmatpush1.msra.mxu0 0.0
        %1100 = vmatprep.subr.mxu0 0.0
        %1101 = vmatpush1.msra.mxu0 0.0
        %1102 = vmatprep.subr.mxu0 0.0
        %1103 = vmatpush1.msra.mxu0 0.0
        %1104 = vmatprep.subr.mxu0 0.0
        %1105 = vmatpush1.msra.mxu0 0.0
        %1106 = vmatprep.subr.mxu0 0.0
        %1107 = vmatpush1.msra.mxu0 0.0
        %1108 = vmatprep.subr.mxu0 0.0
        %1109 = vmatpush1.msra.mxu0 0.0
        %1110 = vmatprep.subr.mxu0 0.0
        %1111 = vmatpush1.msra.mxu0 0.0
        %1112 = vmatprep.subr.mxu0 0.0
        %1113 = vmatpush1.msra.mxu0 0.0
        %1114 = vmatprep.subr.mxu0 0.0
        %1115 = vmatpush1.msra.mxu0 0.0
        %1116 = vmatprep.subr.mxu0 0.0
        %1117 = vmatpush1.msra.mxu0 0.0
        %1118 = vmatprep.subr.mxu0 0.0
        %1119 = vmatpush1.msra.mxu0 0.0
        %1120 = vmatprep.subr.mxu0 0.0
        %1121 = vmatpush1.msra.mxu0 0.0
        %1122 = vmatprep.mubr.f32.mxu0 0.0
        %1123 = vmatmul.mubr.f32.gmra.mrb[0].mxu0 %v656
        %v1124 = vpop.f32.mrb[0].mxu0
        %v1125 = vadd.f32 %v1056, %v1124
        %v1126 = vpop.f32.mrb[0].mxu0
        %1127 = vdwg.mxu0
        %v1128 = vadd.f32 %v1046, %v1125
        %v1129 = vxor.u32 %v1128, 2147483648
        %v1130 = vmul.f32 %v1129, 1.442695
        %v1131 = vpow.pop %v1130
        %v1132 = vadd.f32 %v1131, 1.0
        %v1133 = vrcp.pop %v1132
        %v1134 = vmul.f32 1.0, %v1133
        %1136 = vrot.lane.b32.xlu0 %v1125, 64
        %v1137 = vpop.permute.xlu0 %1136
        %v1139 = vmul.f32 %v1134, %v1137
        %1141 = vrot.lane.b32.xlu0 %v1139, 64
        %v1142 = vpop.permute.xlu0 %1141
        %v1144 = vadd.f32 %v1046, %v1142
        %v1145 = vtanh.pop %v1144
        %v1146 = vsub.f32 1.0, %v1134
        %1148 = vrot.lane.b32.xlu0 %v1145, 96
        %v1149 = vpop.permute.xlu0 %1148
        %v1151 = vmul.f32 %v1146, %v1149
        %1152 = vrot.lane.b32.xlu0 %v565, 32
        %v1153 = vpop.permute.xlu0 %1152
        %v1155 = vmul.f32 %v1134, %v1153
        %v1156 = vadd.f32 %v1151, %v1155
        %1158 = vrot.lane.b32.xlu0 %v1156, 96
        %v1159 = vpop.permute.xlu0 %1158
        %1161 = vst.msk [vmem:[#allocation2] sm:$0x3] %vm767, %v1159
        %v1162 = vld [vmem:[%s14] sm:$0xff]
        %v1163 = vld [vmem:[%s14 + $0x8] sm:$0xff]
        %v1164 = vld [vmem:[%s14 + $0x10] sm:$0xff]
        %v1165 = vld [vmem:[%s14 + $0x18] sm:$0xff]
        %v1166 = vld [vmem:[%s15] sm:$0xff]
        %v1167 = vld [vmem:[%s15 + $0x8] sm:$0xff]
        %v1168 = vld [vmem:[%s15 + $0x10] sm:$0xff]
        %v1169 = vld [vmem:[%s15 + $0x18] sm:$0xff]
        %1170 = vmatprep.subr.mxu0 0.0
        %1171 = vmatpush1.msra.mxu0 %v1166
        %1172 = vmatprep.subr.mxu0 0.0
        %1173 = vmatpush1.msra.mxu0 %v1167
        %1174 = vmatprep.subr.mxu0 0.0
        %1175 = vmatpush1.msra.mxu0 %v1168
        %1176 = vmatprep.subr.mxu0 0.0
        %1177 = vmatpush1.msra.mxu0 %v1169
        %1178 = vmatprep.subr.mxu0 0.0
        %1179 = vmatpush1.msra.mxu0 0.0
        %1180 = vmatprep.subr.mxu0 0.0
        %1181 = vmatpush1.msra.mxu0 0.0
        %1182 = vmatprep.subr.mxu0 0.0
        %1183 = vmatpush1.msra.mxu0 0.0
        %1184 = vmatprep.subr.mxu0 0.0
        %1185 = vmatpush1.msra.mxu0 0.0
        %1186 = vmatprep.subr.mxu0 0.0
        %1187 = vmatpush1.msra.mxu0 0.0
        %1188 = vmatprep.subr.mxu0 0.0
        %1189 = vmatpush1.msra.mxu0 0.0
        %1190 = vmatprep.subr.mxu0 0.0
        %1191 = vmatpush1.msra.mxu0 0.0
        %1192 = vmatprep.subr.mxu0 0.0
        %1193 = vmatpush1.msra.mxu0 0.0
        %1194 = vmatprep.subr.mxu0 0.0
        %1195 = vmatpush1.msra.mxu0 0.0
        %1196 = vmatprep.subr.mxu0 0.0
        %1197 = vmatpush1.msra.mxu0 0.0
        %1198 = vmatprep.subr.mxu0 0.0
        %1199 = vmatpush1.msra.mxu0 0.0
        %1200 = vmatprep.subr.mxu0 0.0
        %1201 = vmatpush1.msra.mxu0 0.0
        %1202 = vmatprep.subr.mxu0 0.0
        %1203 = vmatpush1.msra.mxu0 0.0
        %1204 = vmatprep.subr.mxu0 0.0
        %1205 = vmatpush1.msra.mxu0 0.0
        %1206 = vmatprep.subr.mxu0 0.0
        %1207 = vmatpush1.msra.mxu0 0.0
        %1208 = vmatprep.subr.mxu0 0.0
        %1209 = vmatpush1.msra.mxu0 0.0
        %1210 = vmatprep.subr.mxu0 0.0
        %1211 = vmatpush1.msra.mxu0 0.0
        %1212 = vmatprep.subr.mxu0 0.0
        %1213 = vmatpush1.msra.mxu0 0.0
        %1214 = vmatprep.subr.mxu0 0.0
        %1215 = vmatpush1.msra.mxu0 0.0
        %1216 = vmatprep.subr.mxu0 0.0
        %1217 = vmatpush1.msra.mxu0 0.0
        %1218 = vmatprep.subr.mxu0 0.0
        %1219 = vmatpush1.msra.mxu0 0.0
        %1220 = vmatprep.subr.mxu0 0.0
        %1221 = vmatpush1.msra.mxu0 0.0
        %1222 = vmatprep.subr.mxu0 0.0
        %1223 = vmatpush1.msra.mxu0 0.0
        %1224 = vmatprep.subr.mxu0 0.0
        %1225 = vmatpush1.msra.mxu0 0.0
        %1226 = vmatprep.subr.mxu0 0.0
        %1227 = vmatpush1.msra.mxu0 0.0
        %1228 = vmatprep.subr.mxu0 0.0
        %1229 = vmatpush1.msra.mxu0 0.0
        %1230 = vmatprep.subr.mxu0 0.0
        %1231 = vmatpush1.msra.mxu0 0.0
        %1232 = vmatprep.subr.mxu0 0.0
        %1233 = vmatpush1.msra.mxu0 0.0
        %1234 = vmatprep.mubr.f32.mxu0 0.0
        %1235 = vmatmul.mubr.f32.gmra.mrb[0].mxu0 %v894
        %v1236 = vpop.f32.mrb[0].mxu0
        %v1237 = vadd.f32 0.0, %v1236
        %v1238 = vpop.f32.mrb[0].mxu0
        %1239 = vdwg.mxu0
        %v1240 = vsel %vm654, %v1159, 0
        %1242 = vmatprep.subr.mxu0 0.0
        %1243 = vmatpush1.msra.mxu0 %v1162
        %1244 = vmatprep.subr.mxu0 0.0
        %1245 = vmatpush1.msra.mxu0 %v1163
        %1246 = vmatprep.subr.mxu0 0.0
        %1247 = vmatpush1.msra.mxu0 %v1164
        %1248 = vmatprep.subr.mxu0 0.0
        %1249 = vmatpush1.msra.mxu0 %v1165
        %1250 = vmatprep.subr.mxu0 0.0
        %1251 = vmatpush1.msra.mxu0 0.0
        %1252 = vmatprep.subr.mxu0 0.0
        %1253 = vmatpush1.msra.mxu0 0.0
        %1254 = vmatprep.subr.mxu0 0.0
        %1255 = vmatpush1.msra.mxu0 0.0
        %1256 = vmatprep.subr.mxu0 0.0
        %1257 = vmatpush1.msra.mxu0 0.0
        %1258 = vmatprep.subr.mxu0 0.0
        %1259 = vmatpush1.msra.mxu0 0.0
        %1260 = vmatprep.subr.mxu0 0.0
        %1261 = vmatpush1.msra.mxu0 0.0
        %1262 = vmatprep.subr.mxu0 0.0
        %1263 = vmatpush1.msra.mxu0 0.0
        %1264 = vmatprep.subr.mxu0 0.0
        %1265 = vmatpush1.msra.mxu0 0.0
        %1266 = vmatprep.subr.mxu0 0.0
        %1267 = vmatpush1.msra.mxu0 0.0
        %1268 = vmatprep.subr.mxu0 0.0
        %1269 = vmatpush1.msra.mxu0 0.0
        %1270 = vmatprep.subr.mxu0 0.0
        %1271 = vmatpush1.msra.mxu0 0.0
        %1272 = vmatprep.subr.mxu0 0.0
        %1273 = vmatpush1.msra.mxu0 0.0
        %1274 = vmatprep.subr.mxu0 0.0
        %1275 = vmatpush1.msra.mxu0 0.0
        %1276 = vmatprep.subr.mxu0 0.0
        %1277 = vmatpush1.msra.mxu0 0.0
        %1278 = vmatprep.subr.mxu0 0.0
        %1279 = vmatpush1.msra.mxu0 0.0
        %1280 = vmatprep.subr.mxu0 0.0
        %1281 = vmatpush1.msra.mxu0 0.0
        %1282 = vmatprep.subr.mxu0 0.0
        %1283 = vmatpush1.msra.mxu0 0.0
        %1284 = vmatprep.subr.mxu0 0.0
        %1285 = vmatpush1.msra.mxu0 0.0
        %1286 = vmatprep.subr.mxu0 0.0
        %1287 = vmatpush1.msra.mxu0 0.0
        %1288 = vmatprep.subr.mxu0 0.0
        %1289 = vmatpush1.msra.mxu0 0.0
        %1290 = vmatprep.subr.mxu0 0.0
        %1291 = vmatpush1.msra.mxu0 0.0
        %1292 = vmatprep.subr.mxu0 0.0
        %1293 = vmatpush1.msra.mxu0 0.0
        %1294 = vmatprep.subr.mxu0 0.0
        %1295 = vmatpush1.msra.mxu0 0.0
        %1296 = vmatprep.subr.mxu0 0.0
        %1297 = vmatpush1.msra.mxu0 0.0
        %1298 = vmatprep.subr.mxu0 0.0
        %1299 = vmatpush1.msra.mxu0 0.0
        %1300 = vmatprep.subr.mxu0 0.0
        %1301 = vmatpush1.msra.mxu0 0.0
        %1302 = vmatprep.subr.mxu0 0.0
        %1303 = vmatpush1.msra.mxu0 0.0
        %1304 = vmatprep.subr.mxu0 0.0
        %1305 = vmatpush1.msra.mxu0 0.0
        %1306 = vmatprep.mubr.f32.mxu0 0.0
        %1307 = vmatmul.mubr.f32.gmra.mrb[0].mxu0 %v1240
        %v1308 = vpop.f32.mrb[0].mxu0
        %v1309 = vadd.f32 %v1237, %v1308
        %v1310 = vpop.f32.mrb[0].mxu0
        %1311 = vdwg.mxu0
        %v1312 = vld [vmem:[%s16] sm:$0xff]
        %v1313 = vld [vmem:[%s16 + $0x8] sm:$0xff]
        %1314 = vmatprep.subr.mxu0 0.0
        %1315 = vmatpush1.msra.mxu0 %v1312
        %1316 = vmatprep.subr.mxu0 0.0
        %1317 = vmatpush1.msra.mxu0 %v1313
        %1318 = vmatprep.subr.mxu0 0.0
        %1319 = vmatpush1.msra.mxu0 0.0
        %1320 = vmatprep.subr.mxu0 0.0
        %1321 = vmatpush1.msra.mxu0 0.0
        %1322 = vmatprep.subr.mxu0 0.0
        %1323 = vmatpush1.msra.mxu0 0.0
        %1324 = vmatprep.subr.mxu0 0.0
        %1325 = vmatpush1.msra.mxu0 0.0
        %1326 = vmatprep.subr.mxu0 0.0
        %1327 = vmatpush1.msra.mxu0 0.0
        %1328 = vmatprep.subr.mxu0 0.0
        %1329 = vmatpush1.msra.mxu0 0.0
        %1330 = vmatprep.subr.mxu0 0.0
        %1331 = vmatpush1.msra.mxu0 0.0
        %1332 = vmatprep.subr.mxu0 0.0
        %1333 = vmatpush1.msra.mxu0 0.0
        %1334 = vmatprep.subr.mxu0 0.0
        %1335 = vmatpush1.msra.mxu0 0.0
        %1336 = vmatprep.subr.mxu0 0.0
        %1337 = vmatpush1.msra.mxu0 0.0
        %1338 = vmatprep.subr.mxu0 0.0
        %1339 = vmatpush1.msra.mxu0 0.0
        %1340 = vmatprep.subr.mxu0 0.0
        %1341 = vmatpush1.msra.mxu0 0.0
        %1342 = vmatprep.subr.mxu0 0.0
        %1343 = vmatpush1.msra.mxu0 0.0
        %1344 = vmatprep.subr.mxu0 0.0
        %1345 = vmatpush1.msra.mxu0 0.0
        %1346 = vmatprep.subr.mxu0 0.0
        %1347 = vmatpush1.msra.mxu0 0.0
        %1348 = vmatprep.subr.mxu0 0.0
        %1349 = vmatpush1.msra.mxu0 0.0
        %1350 = vmatprep.subr.mxu0 0.0
        %1351 = vmatpush1.msra.mxu0 0.0
        %1352 = vmatprep.subr.mxu0 0.0
        %1353 = vmatpush1.msra.mxu0 0.0
        %1354 = vmatprep.subr.mxu0 0.0
        %1355 = vmatpush1.msra.mxu0 0.0
        %1356 = vmatprep.subr.mxu0 0.0
        %1357 = vmatpush1.msra.mxu0 0.0
        %1358 = vmatprep.subr.mxu0 0.0
        %1359 = vmatpush1.msra.mxu0 0.0
        %1360 = vmatprep.subr.mxu0 0.0
        %1361 = vmatpush1.msra.mxu0 0.0
        %1362 = vmatprep.subr.mxu0 0.0
        %1363 = vmatpush1.msra.mxu0 0.0
        %1364 = vmatprep.subr.mxu0 0.0
        %1365 = vmatpush1.msra.mxu0 0.0
        %1366 = vmatprep.subr.mxu0 0.0
        %1367 = vmatpush1.msra.mxu0 0.0
        %1368 = vmatprep.subr.mxu0 0.0
        %1369 = vmatpush1.msra.mxu0 0.0
        %1370 = vmatprep.subr.mxu0 0.0
        %1371 = vmatpush1.msra.mxu0 0.0
        %1372 = vmatprep.subr.mxu0 0.0
        %1373 = vmatpush1.msra.mxu0 0.0
        %1374 = vmatprep.subr.mxu0 0.0
        %1375 = vmatpush1.msra.mxu0 0.0
        %1376 = vmatprep.subr.mxu0 0.0
        %1377 = vmatpush1.msra.mxu0 0.0
        %1378 = vmatprep.mubr.f32.mxu0 0.0
        %1379 = vmatmul.mubr.f32.gmra.mrb[0].mxu0 %v967
        %v1380 = vpop.f32.mrb[0].mxu0
        %v1381 = vadd.f32 0.0, %v1380
        %v1382 = vpop.f32.mrb[0].mxu0
        %1383 = vdwg.mxu0
        %v1384 = vadd.f32 %v1309, %v1381
        %v1385 = vld [vmem:[%s17] sm:$0x1]
        %v1387 = vlaneseq
        %v1388 = vshrl.u32 %v1387, 7
        %v1389 = vsub.s32 0, %v1388
        %v1390 = vrot.slane %v1385, %v1389
        %v1392 = vadd.f32 %v1384, %v1390
        %vm1393 = vcmask 123904
        %1394 = vst.msk [vmem:[%s546] sm:$0x3] %vm1393, %v1392
        %v1395 = vlaneseq
        %v1396 = vand.u32 %v1395, 127
        %v1397 = vsel %vm1393, %v1392, -inf
        %1398 = vmax.xlane.f32.xlu0 %v1397
        %v1399 = vpop.xlane.xlu0 %1398
        %vm1400 = vcmp.eq.f32.partialorder %v1392, %v1399
        %v1401 = vsel %vm1400, %v1396, 16
        %v1402 = vsel %vm1393, %v1401, 2147483647
        %v1403 = vand.u32 %v1402, 65535
        %v1404 = vshra.s32 %v1402, 16
        %v1405 = vcvt.s32.f32 %v1403
        %v1406 = vcvt.s32.f32 %v1404
        %1407 = vmin.xlane.f32.xlu0 %v1406
        %v1408 = vpop.xlane.xlu0 %1407
        %vm1409 = vcmp.eq.f32.partialorder %v1406, %v1408
        %v1410 = vsel %vm1409, %v1405, inf
        %1411 = vmin.xlane.f32.xlu0 %v1410
        %v1412 = vpop.xlane.xlu0 %1411
        %v1413 = vcvt.f32.s32 %v1412
        %v1414 = vcvt.f32.s32 %v1408
        %v1415 = vshll.u32 %v1414, 16
        %v1416 = vadd.s32 %v1415, %v1413
        %vm1417 = vcmp.eq.s32.totalorder %v1396, %v1416
        %v1418 = vsel %vm1417, 1, 0
        %v1419 = vcvt.s32.f32 %v1418
        %s1420 = sld [smem:[#allocation5 + %s38]]
        %s1421 = scvt.s32.f32 %s1420
        %v1422 = vld [vmem:[%s550] sm:$0x3]
        %v1423 = vstv %s1421
        %v1424 = vmul.f32 %v1423, %v1422
        %s1425 = ssub.f32 1.0, %s1421
        %v1426 = vstv %s1425
        %v1427 = vmul.f32 %v1426, %v1419
        %v1428 = vadd.f32 %v1424, %v1427
        %1429 = vst.msk [vmem:[#allocation3] sm:$0x3] %vm1393, %v1428
        %s1430 = sand.u32 %s408, 1
        %s1431 = scalar_lea.sflag [#allocation7], %s1430
        %s1432 = sand.u32 %s408, 1
        %s1433 = smul.addr %s1432, 2
        %s1434 = scalar_lea.vmem [#allocation6], %s1433
        // Predicated region
        $region93: #{_seq2seq_forward_jit.3} parent=87 // pred_check
          %p1435 = pneg %p418
        $region94: #{_seq2seq_forward_jit.3} parent=87 // pred_check_branch
          %1437 = sbr.rel (%p1435) target = $region96
        $region95: #{_seq2seq_forward_jit.3} parent=87 // pred_region
          %s1439 = ssub.s32 32, 32
          %1440 = vsyncadd %s1431, %s1439
          %s1441 = smul.addr %s38, 32
          %s1442 = scalar_lea.hbm %s18, %s1441
          %s1444 = sshll.u32 %s1434, 4
          %s1445 = int_to_ptr.vmem [resolvable:$true] %s1444
          %1447 = dma.vmem_to_hbm [thread:$0]  %s1445, 32, %s1442, %s1431
        $region96: #{_seq2seq_forward_jit.3} parent=87 // pred_fallthru
          _
      $region88: #{_seq2seq_forward_jit.3} parent=5 // pred_fallthru
        _
      %p1448 = scmp.le.s32.totalorder 2, %s33
      // Predicated region
      $region97: #{_seq2seq_forward_jit.3} parent=5 // pred_check
        %p1449 = pneg %p1448
      $region98: #{_seq2seq_forward_jit.3} parent=5 // pred_check_branch
        %1451 = sbr.rel (%p1449) target = $region100
      $region99: #{_seq2seq_forward_jit.3} parent=5 // pred_region
        %s1452 = ssub.s32 %s33, 2
        // Predicated region
        $region101: #{_seq2seq_forward_jit.3} parent=99 // pred_check
          %p1453 = pneg %p424
        $region102: #{_seq2seq_forward_jit.3} parent=99 // pred_check_branch
          %1455 = sbr.rel (%p1453) target = $region104
        $region103: #{_seq2seq_forward_jit.3} parent=99 // pred_region
          %s1456 = sand.u32 %s409, 1
          %s1457 = scalar_lea.sflag [#allocation7], %s1456
          %s1458 = sand.u32 %s409, 1
          %s1459 = smul.addr %s1458, 2
          %s1460 = scalar_lea.vmem [#allocation6], %s1459
          %1461 = dma.done %s1457, 32
        $region104: #{_seq2seq_forward_jit.3} parent=99 // pred_fallthru
          _
      $region100: #{_seq2seq_forward_jit.3} parent=5 // pred_fallthru
        _
    $region6: #{_seq2seq_forward_jit.3} parent=1 // loop_footer
      %s37 = sadd.s32 1, %s33
    $region7: #{_seq2seq_forward_jit.3} parent=1 // loop_footer_branch
      %32 = sbr.rel target = $region3
    $region8: #{_seq2seq_forward_jit.3} parent=1 // loop_exit
      _
    %1462 = vsyncpa [#allocation7], 1
    %s1463 = scalar_lea.sflag [#allocation7], 1
    %1464 = vsyncpa %s1463, 1

</llo_original>
